<compile_context>
chip_gen: v5e
topology: v5e:2x2
jax: 0.10.0
libtpu: 0.0.40
codegen_flags: <defaults>
</compile_context>

<pallas_src>
import math
import functools

import jax
import jax.numpy as jnp
from jax.experimental import pallas as pl
from jax.experimental.pallas import tpu as pltpu

NEG_INF = -1e9   # large negative instead of -inf (same softmax, no NaN risk)
LANE = 128


def _round_up(x, m):
    return (x + m - 1) // m * m


# --------------------------- fused transformer kernel -----------------------

def _transformer_kernel(
    # per-batch activations (leading batch dim squeezed) + PE slices
    src_ref, trg_ref, pe_src_ref, pe_trg_ref,
    # tiny mask pieces: (Sq,Sk) additive attn masks, per-batch (1,Sk) padding
    src_am_ref, trg_am_ref, kp_src_ref, kp_trg_ref, kp_mem_ref,
    # encoder layer params (weights pre-transposed to (in, out), bf16)
    e_wqkv_ref, e_bqkv_ref, e_wo_ref, e_bo_ref,
    e_w1_ref, e_b1_ref, e_w2_ref, e_b2_ref, e_norms_ref,
    # decoder layer params
    d_swqkv_ref, d_sbqkv_ref, d_swo_ref, d_sbo_ref,
    d_cwq_ref, d_cbq_ref, d_cwkv_ref, d_cbkv_ref, d_cwo_ref, d_cbo_ref,
    d_w1_ref, d_b1_ref, d_w2_ref, d_b2_ref, d_norms_ref,
    # output projection (vocab padded to a multiple of 128, tiled over grid j)
    out_w_ref, out_b_ref,
    # output tile
    logits_ref,
    # scratch: decoder output, reused across the vocab-tile axis
    y_scr,
    *, heads, d_model):
    H = heads
    D = d_model
    Dh = D // H

    def ln(x, norms, idx):
        # norm rows are packed as [g0, b0, g1, b1, ...]; math stays f32
        g = norms[2 * idx:2 * idx + 1, :]
        b = norms[2 * idx + 1:2 * idx + 2, :]
        mu = jnp.mean(x, axis=-1, keepdims=True)
        var = jnp.mean((x - mu) ** 2, axis=-1, keepdims=True)
        return (x - mu) * jax.lax.rsqrt(var + 1e-5) * g + b

    def dot_bias(x, w_ref, b_ref):
        w = w_ref[...]                       # bf16 weights, f32 accumulation
        return jnp.dot(x.astype(w.dtype), w,
                       preferred_element_type=jnp.float32) + b_ref[...]

    def mha(q, k, v, mask, wo_ref, bo_ref):
        # q: (Mq, D), k/v: (Mk, D).  1/sqrt(Dh) is already folded into the Q
        # projection weights at init.  Heads via static lane slices; contexts
        # are concatenated so Wo is ONE (Mq,D)x(D,D) matmul (not H depth-Dh ones).
        wo = wo_ref[...]
        cdt = wo.dtype
        qc = q.astype(cdt)
        kc = k.astype(cdt)
        vc = v.astype(cdt)
        ctxs = []
        for h in range(H):
            lo = h * Dh
            s = jax.lax.dot_general(                       # (Mq, Mk), f32 acc
                qc[:, lo:lo + Dh], kc[:, lo:lo + Dh],
                (((1,), (1,)), ((), ())),
                preferred_element_type=jnp.float32)
            s = s + mask                                   # mask stays f32
            s = s - jnp.max(s, axis=-1, keepdims=True)
            p = jnp.exp(s)
            p = p * pl.reciprocal(jnp.sum(p, axis=-1, keepdims=True),
                                  approx=False)
            ctxs.append(jnp.dot(p.astype(cdt), vc[:, lo:lo + Dh],
                                preferred_element_type=jnp.float32))
        ctx = jnp.concatenate(ctxs, axis=-1)               # (Mq, D)
        return jnp.dot(ctx.astype(cdt), wo,
                       preferred_element_type=jnp.float32) + bo_ref[...]

    j = pl.program_id(1)

    # Heavy part (encoder + decoder) only on the first vocab tile of this batch
    # element; the result is held in VMEM scratch for the remaining tiles.
    @pl.when(j == 0)
    def _compute_transformer():
        # ---------------- masks (built in-kernel, tiny inputs, clamped) -----
        enc_mask = jnp.maximum(src_am_ref[...] + kp_src_ref[...], NEG_INF)
        self_mask = jnp.maximum(trg_am_ref[...] + kp_trg_ref[...], NEG_INF)
        cross_mask = kp_mem_ref[...]          # (1, Ss) broadcasts over queries

        # ---------------- encoder layer (+ final encoder norm) --------------
        x = src_ref[...] + pe_src_ref[...]                     # (Ss, D) f32
        en = e_norms_ref[...]
        qkv = dot_bias(x, e_wqkv_ref, e_bqkv_ref)
        a = mha(qkv[:, :D], qkv[:, D:2 * D], qkv[:, 2 * D:],
                enc_mask, e_wo_ref, e_bo_ref)
        x = ln(x + a, en, 0)
        hdn = jnp.maximum(dot_bias(x, e_w1_ref, e_b1_ref), 0.0)
        x = ln(x + dot_bias(hdn, e_w2_ref, e_b2_ref), en, 1)
        mem = ln(x, en, 2)                    # nn.Transformer final enc norm

        # ---------------- decoder layer (+ final decoder norm) --------------
        y = trg_ref[...] + pe_trg_ref[...]                     # (St, D) f32
        dn = d_norms_ref[...]
        qkv = dot_bias(y, d_swqkv_ref, d_sbqkv_ref)
        a = mha(qkv[:, :D], qkv[:, D:2 * D], qkv[:, 2 * D:],
                self_mask, d_swo_ref, d_sbo_ref)
        y = ln(y + a, dn, 0)

        cq = dot_bias(y, d_cwq_ref, d_cbq_ref)
        ckv = dot_bias(mem, d_cwkv_ref, d_cbkv_ref)
        c = mha(cq, ckv[:, :D], ckv[:, D:], cross_mask, d_cwo_ref, d_cbo_ref)
        y = ln(y + c, dn, 1)

        hdn = jnp.maximum(dot_bias(y, d_w1_ref, d_b1_ref), 0.0)
        y = ln(y + dot_bias(hdn, d_w2_ref, d_b2_ref), dn, 2)
        y_scr[...] = ln(y, dn, 3)             # nn.Transformer final dec norm

    # ------------- output projection: one lane-dense (St, TN) tile ----------
    logits_ref[...] = dot_bias(y_scr[...], out_w_ref, out_b_ref
                               ).astype(logits_ref.dtype)


# ----------------------------- forward wrapper -------------------------------

@functools.partial(jax.jit, static_argnames=("heads", "trg_vocab_size"))
def translator_forward(params, src, trg, src_mask, trg_mask,
                       src_padding_mask, trg_padding_mask, memory_padding_mask,
                       heads, trg_vocab_size):
    B, Ss = src.shape
    _, St = trg.shape
    D = params["src_emb"].shape[1]
    Vp = params["out_w"].shape[1]             # padded vocab (multiple of 128)
    TN = next(c for c in (512, 256, 128) if Vp % c == 0)
    Vt = Vp // TN

    # embedding lookup stays in XLA glue; PE add is fused into the kernel.
    # TODO(synk): at real sizes, move the gather in-kernel via scalar-prefetched
    # token ids (PrefetchScalarGridSpec + pl.Element row gather).
    src_x = jnp.take(params["src_emb"], src, axis=0)           # (B, Ss, D) f32
    trg_x = jnp.take(params["trg_emb"], trg, axis=0)           # (B, St, D) f32
    pe_src = params["pe"][:Ss]
    pe_trg = params["pe"][:St]

    # tiny per-batch additive key-padding rows (True = pad)
    kp_src = jnp.where(src_padding_mask, NEG_INF, 0.0).astype(jnp.float32)[:, None, :]
    kp_trg = jnp.where(trg_padding_mask, NEG_INF, 0.0).astype(jnp.float32)[:, None, :]
    kp_mem = jnp.where(memory_padding_mask, NEG_INF, 0.0).astype(jnp.float32)[:, None, :]
    src_am = src_mask.astype(jnp.float32)                      # (Ss, Ss) additive
    trg_am = trg_mask.astype(jnp.float32)                      # (St, St) additive

    enc = params["enc"]
    dec = params["dec"]
    args = [
        src_x, trg_x, pe_src, pe_trg,
        src_am, trg_am, kp_src, kp_trg, kp_mem,
        enc["wqkv"], enc["bqkv"], enc["wo"], enc["bo"],
        enc["w1"], enc["b1"], enc["w2"], enc["b2"], enc["norms"],
        dec["s_wqkv"], dec["s_bqkv"], dec["s_wo"], dec["s_bo"],
        dec["c_wq"], dec["c_bq"], dec["c_wkv"], dec["c_bkv"],
        dec["c_wo"], dec["c_bo"],
        dec["w1"], dec["b1"], dec["w2"], dec["b2"], dec["norms"],
        params["out_w"], params["out_b"],
    ]

    def inv_spec(arr):                       # grid-invariant, whole array
        nd = arr.ndim
        return pl.BlockSpec(arr.shape, lambda b, j: (0,) * nd)
        # TODO(synk): once supported everywhere, add pipeline_mode=pl.Buffered(1)
        # here so grid-invariant weights are single-buffered (halves weight VMEM).

    def batch_spec(arr):                     # one batch element per grid step
        return pl.BlockSpec((None,) + arr.shape[1:], lambda b, j: (b, 0, 0))

    in_specs = (
        [batch_spec(src_x), batch_spec(trg_x), inv_spec(pe_src), inv_spec(pe_trg),
         inv_spec(src_am), inv_spec(trg_am),
         batch_spec(kp_src), batch_spec(kp_trg), batch_spec(kp_mem)]
        + [inv_spec(a) for a in args[9:33]]                    # all layer params
        + [pl.BlockSpec((D, TN), lambda b, j: (0, j)),         # out_w vocab tile
           pl.BlockSpec((1, TN), lambda b, j: (0, j))]         # out_b vocab tile
    )

    logits_padded = pl.pallas_call(
        functools.partial(_transformer_kernel, heads=heads, d_model=D),
        out_shape=jax.ShapeDtypeStruct((B, St, Vp), jnp.float32),
        grid=(B, Vt),
        in_specs=in_specs,
        out_specs=pl.BlockSpec((None, St, TN), lambda b, j: (b, 0, j)),
        scratch_shapes=[pltpu.VMEM((St, D), jnp.float32)],
        compiler_params=pltpu.CompilerParams(
            dimension_semantics=("parallel", "arbitrary")),
    )(*args)

    # drop vocab padding; PyTorch forward returns logits (no softmax)
    return logits_padded[:, :, :trg_vocab_size]


# ----------------------------- parameter init --------------------------------

def positional_encoding(max_len, d_model):
    pos = jnp.arange(max_len, dtype=jnp.float32)[:, None]
    div = jnp.exp(jnp.arange(0, d_model, 2, dtype=jnp.float32)
                  * (-math.log(10000.0) / d_model))
    pe = jnp.zeros((max_len, d_model), jnp.float32)
    pe = pe.at[:, 0::2].set(jnp.sin(pos * div))
    pe = pe.at[:, 1::2].set(jnp.cos(pos * div))
    return pe


def init_params(key, src_vocab, trg_vocab, d_model, heads, dff, max_len,
                weight_dtype=jnp.bfloat16):
    keys = iter(jax.random.split(key, 32))
    D, F = d_model, dff
    Dh = D // heads
    q_scale = 1.0 / math.sqrt(Dh)      # softmax scale folded into Q weights
    # NOTE: when porting real PyTorch weights, scale the Q weight AND Q bias
    # by 1/sqrt(Dh) the same way (biases here are zero-initialized).

    def xavier(fan_in, fan_out):
        lim = math.sqrt(6.0 / (fan_in + fan_out))
        # weights stored pre-transposed: (in, out)
        return jax.random.uniform(next(keys), (fan_in, fan_out),
                                  jnp.float32, -lim, lim)

    def w(arr):                        # matmul weights stored in compute dtype
        return arr.astype(weight_dtype)

    def zeros(*shape):                 # biases stay f32 (added post-accumulate)
        return jnp.zeros(shape, jnp.float32)

    def norm_rows(n):                  # packed LayerNorm params [g0,b0,g1,b1,...]
        rows = []
        for _ in range(n):
            rows += [jnp.ones((1, D), jnp.float32), jnp.zeros((1, D), jnp.float32)]
        return jnp.concatenate(rows, axis=0)

    wqkv_e = xavier(D, 3 * D).at[:, :D].multiply(q_scale)
    wqkv_d = xavier(D, 3 * D).at[:, :D].multiply(q_scale)
    cwq_d = xavier(D, D) * q_scale

    vocab_pad = _round_up(trg_vocab, LANE)
    out_w = jnp.zeros((D, vocab_pad), jnp.float32).at[:, :trg_vocab].set(
        xavier(D, trg_vocab))

    return dict(
        src_emb=xavier(src_vocab, D),
        trg_emb=xavier(trg_vocab, D),
        pe=positional_encoding(max_len, D),
        enc=dict(
            wqkv=w(wqkv_e), bqkv=zeros(1, 3 * D),
            wo=w(xavier(D, D)), bo=zeros(1, D),
            w1=w(xavier(D, F)), b1=zeros(1, F),
            w2=w(xavier(F, D)), b2=zeros(1, D),
            norms=norm_rows(3),        # norm1, norm2, final encoder norm
        ),
        dec=dict(
            s_wqkv=w(wqkv_d), s_bqkv=zeros(1, 3 * D),
            s_wo=w(xavier(D, D)), s_bo=zeros(1, D),
            c_wq=w(cwq_d), c_bq=zeros(1, D),
            c_wkv=w(xavier(D, 2 * D)), c_bkv=zeros(1, 2 * D),
            c_wo=w(xavier(D, D)), c_bo=zeros(1, D),
            w1=w(xavier(D, F)), b1=zeros(1, F),
            w2=w(xavier(F, D)), b2=zeros(1, D),
            norms=norm_rows(4),        # norm1, norm2, norm3, final decoder norm
        ),
        out_w=w(out_w),
        out_b=zeros(1, vocab_pad),
    )


# --------------------------------- main --------------------------------------

if __name__ == "__main__":
    B, S_SRC, S_TRG = 2, 8, 8
    D_MODEL, HEADS, DFF = 32, 4, 64
    SRC_VOCAB, TRG_VOCAB = 50, 60
    MAX_LEN = 64

    root = jax.random.PRNGKey(0)
    pkey, skey, tkey = jax.random.split(root, 3)

    params = init_params(pkey, SRC_VOCAB, TRG_VOCAB, D_MODEL, HEADS, DFF, MAX_LEN)

    src = jax.random.randint(skey, (B, S_SRC), 0, SRC_VOCAB, dtype=jnp.int32)
    trg = jax.random.randint(tkey, (B, S_TRG), 0, TRG_VOCAB, dtype=jnp.int32)

    # masks: additive float attn masks, boolean key-padding masks (True = pad)
    src_mask = jnp.zeros((S_SRC, S_SRC), jnp.float32)
    trg_mask = jnp.where(jnp.triu(jnp.ones((S_TRG, S_TRG), bool), k=1),
                         NEG_INF, 0.0).astype(jnp.float32)
    src_padding_mask = jnp.zeros((B, S_SRC), bool).at[1, -1].set(True)
    trg_padding_mask = jnp.zeros((B, S_TRG), bool)
    memory_padding_mask = src_padding_mask

    logits = translator_forward(params, src, trg, src_mask, trg_mask,
                                src_padding_mask, trg_padding_mask,
                                memory_padding_mask,
                                heads=HEADS, trg_vocab_size=TRG_VOCAB)
    logits = jax.block_until_ready(logits)

    assert logits.shape == (B, S_TRG, TRG_VOCAB)
    assert bool(jnp.all(jnp.isfinite(logits)))
    # TODO(synk): dropout layers are identity here (eval semantics).
    print("KERNEL_OK")
</pallas_src>

<mosaic_0001>
module attributes {stable_mosaic.version = 11 : i64} {
  func.func @_transformer_kernel(%arg0: i32, %arg1: i32, %arg2: memref<1x8x32xf32, #tpu.memory_space<vmem>>, %arg3: memref<1x8x32xf32, #tpu.memory_space<vmem>>, %arg4: memref<8x32xf32, #tpu.memory_space<vmem>>, %arg5: memref<8x32xf32, #tpu.memory_space<vmem>>, %arg6: memref<8x8xf32, #tpu.memory_space<vmem>>, %arg7: memref<8x8xf32, #tpu.memory_space<vmem>>, %arg8: memref<1x1x8xf32, #tpu.memory_space<vmem>>, %arg9: memref<1x1x8xf32, #tpu.memory_space<vmem>>, %arg10: memref<1x1x8xf32, #tpu.memory_space<vmem>>, %arg11: memref<32x96xbf16, #tpu.memory_space<vmem>>, %arg12: memref<1x96xf32, #tpu.memory_space<vmem>>, %arg13: memref<32x32xbf16, #tpu.memory_space<vmem>>, %arg14: memref<1x32xf32, #tpu.memory_space<vmem>>, %arg15: memref<32x64xbf16, #tpu.memory_space<vmem>>, %arg16: memref<1x64xf32, #tpu.memory_space<vmem>>, %arg17: memref<64x32xbf16, #tpu.memory_space<vmem>>, %arg18: memref<1x32xf32, #tpu.memory_space<vmem>>, %arg19: memref<6x32xf32, #tpu.memory_space<vmem>>, %arg20: memref<32x96xbf16, #tpu.memory_space<vmem>>, %arg21: memref<1x96xf32, #tpu.memory_space<vmem>>, %arg22: memref<32x32xbf16, #tpu.memory_space<vmem>>, %arg23: memref<1x32xf32, #tpu.memory_space<vmem>>, %arg24: memref<32x32xbf16, #tpu.memory_space<vmem>>, %arg25: memref<1x32xf32, #tpu.memory_space<vmem>>, %arg26: memref<32x64xbf16, #tpu.memory_space<vmem>>, %arg27: memref<1x64xf32, #tpu.memory_space<vmem>>, %arg28: memref<32x32xbf16, #tpu.memory_space<vmem>>, %arg29: memref<1x32xf32, #tpu.memory_space<vmem>>, %arg30: memref<32x64xbf16, #tpu.memory_space<vmem>>, %arg31: memref<1x64xf32, #tpu.memory_space<vmem>>, %arg32: memref<64x32xbf16, #tpu.memory_space<vmem>>, %arg33: memref<1x32xf32, #tpu.memory_space<vmem>>, %arg34: memref<8x32xf32, #tpu.memory_space<vmem>>, %arg35: memref<32x128xbf16, #tpu.memory_space<vmem>>, %arg36: memref<1x128xf32, #tpu.memory_space<vmem>>, %arg37: memref<1x8x128xf32, #tpu.memory_space<vmem>>, %arg38: memref<8x32xf32, #tpu.memory_space<vmem>>) attributes {dimension_semantics = [#tpu.dimension_semantics<parallel>, #tpu.dimension_semantics<arbitrary>], iteration_bounds = array<i64: 2, 1>, scalar_prefetch = 0 : i64, scratch_operands = 1 : i64, tpu.core_type = #tpu.core_type<tc>, window_params = [{transform_indices = @transform_0, window_bounds = array<i64: 1, 8, 32>}, {transform_indices = @transform_1, window_bounds = array<i64: 1, 8, 32>}, {pipeline_mode = #tpu.pipeline_mode<synchronous>, transform_indices = @transform_2, window_bounds = array<i64: 8, 32>}, {pipeline_mode = #tpu.pipeline_mode<synchronous>, transform_indices = @transform_3, window_bounds = array<i64: 8, 32>}, {pipeline_mode = #tpu.pipeline_mode<synchronous>, transform_indices = @transform_4, window_bounds = array<i64: 8, 8>}, {pipeline_mode = #tpu.pipeline_mode<synchronous>, transform_indices = @transform_5, window_bounds = array<i64: 8, 8>}, {transform_indices = @transform_6, window_bounds = array<i64: 1, 1, 8>}, {transform_indices = @transform_7, window_bounds = array<i64: 1, 1, 8>}, {transform_indices = @transform_8, window_bounds = array<i64: 1, 1, 8>}, {pipeline_mode = #tpu.pipeline_mode<synchronous>, transform_indices = @transform_9, window_bounds = array<i64: 32, 96>}, {pipeline_mode = #tpu.pipeline_mode<synchronous>, transform_indices = @transform_10, window_bounds = array<i64: 1, 96>}, {pipeline_mode = #tpu.pipeline_mode<synchronous>, transform_indices = @transform_11, window_bounds = array<i64: 32, 32>}, {pipeline_mode = #tpu.pipeline_mode<synchronous>, transform_indices = @transform_12, window_bounds = array<i64: 1, 32>}, {pipeline_mode = #tpu.pipeline_mode<synchronous>, transform_indices = @transform_13, window_bounds = array<i64: 32, 64>}, {pipeline_mode = #tpu.pipeline_mode<synchronous>, transform_indices = @transform_14, window_bounds = array<i64: 1, 64>}, {pipeline_mode = #tpu.pipeline_mode<synchronous>, transform_indices = @transform_15, window_bounds = array<i64: 64, 32>}, {pipeline_mode = #tpu.pipeline_mode<synchronous>, transform_indices = @transform_16, window_bounds = array<i64: 1, 32>}, {pipeline_mode = #tpu.pipeline_mode<synchronous>, transform_indices = @transform_17, window_bounds = array<i64: 6, 32>}, {pipeline_mode = #tpu.pipeline_mode<synchronous>, transform_indices = @transform_18, window_bounds = array<i64: 32, 96>}, {pipeline_mode = #tpu.pipeline_mode<synchronous>, transform_indices = @transform_19, window_bounds = array<i64: 1, 96>}, {pipeline_mode = #tpu.pipeline_mode<synchronous>, transform_indices = @transform_20, window_bounds = array<i64: 32, 32>}, {pipeline_mode = #tpu.pipeline_mode<synchronous>, transform_indices = @transform_21, window_bounds = array<i64: 1, 32>}, {pipeline_mode = #tpu.pipeline_mode<synchronous>, transform_indices = @transform_22, window_bounds = array<i64: 32, 32>}, {pipeline_mode = #tpu.pipeline_mode<synchronous>, transform_indices = @transform_23, window_bounds = array<i64: 1, 32>}, {pipeline_mode = #tpu.pipeline_mode<synchronous>, transform_indices = @transform_24, window_bounds = array<i64: 32, 64>}, {pipeline_mode = #tpu.pipeline_mode<synchronous>, transform_indices = @transform_25, window_bounds = array<i64: 1, 64>}, {pipeline_mode = #tpu.pipeline_mode<synchronous>, transform_indices = @transform_26, window_bounds = array<i64: 32, 32>}, {pipeline_mode = #tpu.pipeline_mode<synchronous>, transform_indices = @transform_27, window_bounds = array<i64: 1, 32>}, {pipeline_mode = #tpu.pipeline_mode<synchronous>, transform_indices = @transform_28, window_bounds = array<i64: 32, 64>}, {pipeline_mode = #tpu.pipeline_mode<synchronous>, transform_indices = @transform_29, window_bounds = array<i64: 1, 64>}, {pipeline_mode = #tpu.pipeline_mode<synchronous>, transform_indices = @transform_30, window_bounds = array<i64: 64, 32>}, {pipeline_mode = #tpu.pipeline_mode<synchronous>, transform_indices = @transform_31, window_bounds = array<i64: 1, 32>}, {pipeline_mode = #tpu.pipeline_mode<synchronous>, transform_indices = @transform_32, window_bounds = array<i64: 8, 32>}, {transform_indices = @transform_33, window_bounds = array<i64: 32, 128>}, {transform_indices = @transform_34, window_bounds = array<i64: 1, 128>}, {transform_indices = @transform_35, window_bounds = array<i64: 1, 8, 128>}]} {
    %c0_i32 = arith.constant 0 : i32
    %0 = arith.cmpi eq, %arg1, %c0_i32 : i32
    %1 = arith.extui %0 : i1 to i32
    %c0_i32_0 = arith.constant 0 : i32
    %2 = arith.cmpi ne, %1, %c0_i32_0 : i32
    scf.if %2 {
      %c0_9 = arith.constant 0 : index
      %c0_10 = arith.constant 0 : index
      %13 = vector.load %arg6[%c0_9, %c0_10] : memref<8x8xf32, #tpu.memory_space<vmem>>, vector<8x8xf32>
      %c0_11 = arith.constant 0 : index
      %c0_12 = arith.constant 0 : index
      %c0_13 = arith.constant 0 : index
      %14 = vector.load %arg8[%c0_11, %c0_12, %c0_13] : memref<1x1x8xf32, #tpu.memory_space<vmem>>, vector<1x1x8xf32>
      %15 = vector.shape_cast %14 : vector<1x1x8xf32> to vector<1x8xf32>
      %16 = vector.broadcast %15 : vector<1x8xf32> to vector<8x8xf32>
      %17 = arith.addf %13, %16 : vector<8x8xf32>
      %cst_14 = arith.constant -1.000000e+09 : f32
      %18 = vector.broadcast %cst_14 : f32 to vector<8x8xf32>
      %19 = arith.maximumf %17, %18 : vector<8x8xf32>
      %c0_15 = arith.constant 0 : index
      %c0_16 = arith.constant 0 : index
      %20 = vector.load %arg7[%c0_15, %c0_16] : memref<8x8xf32, #tpu.memory_space<vmem>>, vector<8x8xf32>
      %c0_17 = arith.constant 0 : index
      %c0_18 = arith.constant 0 : index
      %c0_19 = arith.constant 0 : index
      %21 = vector.load %arg9[%c0_17, %c0_18, %c0_19] : memref<1x1x8xf32, #tpu.memory_space<vmem>>, vector<1x1x8xf32>
      %22 = vector.shape_cast %21 : vector<1x1x8xf32> to vector<1x8xf32>
      %23 = vector.broadcast %22 : vector<1x8xf32> to vector<8x8xf32>
      %24 = arith.addf %20, %23 : vector<8x8xf32>
      %cst_20 = arith.constant -1.000000e+09 : f32
      %25 = vector.broadcast %cst_20 : f32 to vector<8x8xf32>
      %26 = arith.maximumf %24, %25 : vector<8x8xf32>
      %c0_21 = arith.constant 0 : index
      %c0_22 = arith.constant 0 : index
      %c0_23 = arith.constant 0 : index
      %27 = vector.load %arg10[%c0_21, %c0_22, %c0_23] : memref<1x1x8xf32, #tpu.memory_space<vmem>>, vector<1x1x8xf32>
      %28 = vector.shape_cast %27 : vector<1x1x8xf32> to vector<1x8xf32>
      %c0_24 = arith.constant 0 : index
      %c0_25 = arith.constant 0 : index
      %c0_26 = arith.constant 0 : index
      %29 = vector.load %arg2[%c0_24, %c0_25, %c0_26] : memref<1x8x32xf32, #tpu.memory_space<vmem>>, vector<1x8x32xf32>
      %30 = vector.shape_cast %29 : vector<1x8x32xf32> to vector<8x32xf32>
      %c0_27 = arith.constant 0 : index
      %c0_28 = arith.constant 0 : index
      %31 = vector.load %arg4[%c0_27, %c0_28] : memref<8x32xf32, #tpu.memory_space<vmem>>, vector<8x32xf32>
      %32 = arith.addf %30, %31 : vector<8x32xf32>
      %c0_29 = arith.constant 0 : index
      %c0_30 = arith.constant 0 : index
      %33 = vector.load %arg19[%c0_29, %c0_30] : memref<6x32xf32, #tpu.memory_space<vmem>>, vector<6x32xf32>
      %c0_31 = arith.constant 0 : index
      %c0_32 = arith.constant 0 : index
      %34 = vector.load %arg11[%c0_31, %c0_32] : memref<32x96xbf16, #tpu.memory_space<vmem>>, vector<32x96xbf16>
      %35 = arith.truncf %32 : vector<8x32xf32> to vector<8x32xbf16>
      %cst_33 = arith.constant dense<0.000000e+00> : vector<8x96xf32>
      %36 = tpu.matmul %35, %34, %cst_33 {dimension_numbers = #tpu.dot_dimension_numbers<[1], [0], [0], [1], [0, 0, 1, 1], [], []>} : vector<8x32xbf16>, vector<32x96xbf16>, vector<8x96xf32> -> vector<8x96xf32>
      %c0_34 = arith.constant 0 : index
      %c0_35 = arith.constant 0 : index
      %37 = vector.load %arg12[%c0_34, %c0_35] : memref<1x96xf32, #tpu.memory_space<vmem>>, vector<1x96xf32>
      %38 = vector.broadcast %37 : vector<1x96xf32> to vector<8x96xf32>
      %39 = arith.addf %36, %38 : vector<8x96xf32>
      %40 = vector.extract_strided_slice %39 {offsets = [0, 0], sizes = [8, 32], strides = [1, 1]} : vector<8x96xf32> to vector<8x32xf32>
      %41 = vector.extract_strided_slice %39 {offsets = [0, 32], sizes = [8, 32], strides = [1, 1]} : vector<8x96xf32> to vector<8x32xf32>
      %42 = vector.extract_strided_slice %39 {offsets = [0, 64], sizes = [8, 32], strides = [1, 1]} : vector<8x96xf32> to vector<8x32xf32>
      %c0_36 = arith.constant 0 : index
      %c0_37 = arith.constant 0 : index
      %43 = vector.load %arg13[%c0_36, %c0_37] : memref<32x32xbf16, #tpu.memory_space<vmem>>, vector<32x32xbf16>
      %44 = arith.truncf %40 : vector<8x32xf32> to vector<8x32xbf16>
      %45 = arith.truncf %41 : vector<8x32xf32> to vector<8x32xbf16>
      %46 = arith.truncf %42 : vector<8x32xf32> to vector<8x32xbf16>
      %47 = vector.extract_strided_slice %44 {offsets = [0, 0], sizes = [8, 8], strides = [1, 1]} : vector<8x32xbf16> to vector<8x8xbf16>
      %48 = vector.extract_strided_slice %45 {offsets = [0, 0], sizes = [8, 8], strides = [1, 1]} : vector<8x32xbf16> to vector<8x8xbf16>
      %cst_38 = arith.constant dense<0.000000e+00> : vector<8x8xf32>
      %49 = tpu.matmul %47, %48, %cst_38 {dimension_numbers = #tpu.dot_dimension_numbers<[1], [1], [0], [0], [0, 0, 1, 0], [], []>} : vector<8x8xbf16>, vector<8x8xbf16>, vector<8x8xf32> -> vector<8x8xf32>
      %50 = arith.addf %49, %19 : vector<8x8xf32>
      %cst_39 = arith.constant dense<0xFF800000> : vector<8xf32>
      %51 = vector.multi_reduction <maximumf>, %50, %cst_39 [1] : vector<8x8xf32> to vector<8xf32>
      %52 = vector.shape_cast %51 : vector<8xf32> to vector<8x1xf32>
      %53 = vector.broadcast %52 : vector<8x1xf32> to vector<8x8xf32>
      %54 = arith.subf %50, %53 : vector<8x8xf32>
      %55 = math.exp %54 : vector<8x8xf32>
      %cst_40 = arith.constant dense<0.000000e+00> : vector<8xf32>
      %56 = vector.multi_reduction <add>, %55, %cst_40 [1] : vector<8x8xf32> to vector<8xf32>
      %57 = vector.shape_cast %56 : vector<8xf32> to vector<8x1xf32>
      %58 = tpu.reciprocal %57 : vector<8x1xf32> -> vector<8x1xf32>
      %59 = vector.broadcast %58 : vector<8x1xf32> to vector<8x8xf32>
      %60 = arith.mulf %55, %59 : vector<8x8xf32>
      %61 = arith.truncf %60 : vector<8x8xf32> to vector<8x8xbf16>
      %62 = vector.extract_strided_slice %46 {offsets = [0, 0], sizes = [8, 8], strides = [1, 1]} : vector<8x32xbf16> to vector<8x8xbf16>
      %cst_41 = arith.constant dense<0.000000e+00> : vector<8x8xf32>
      %63 = tpu.matmul %61, %62, %cst_41 {dimension_numbers = #tpu.dot_dimension_numbers<[1], [0], [0], [1], [0, 0, 1, 1], [], []>} : vector<8x8xbf16>, vector<8x8xbf16>, vector<8x8xf32> -> vector<8x8xf32>
      %64 = vector.extract_strided_slice %44 {offsets = [0, 8], sizes = [8, 8], strides = [1, 1]} : vector<8x32xbf16> to vector<8x8xbf16>
      %65 = vector.extract_strided_slice %45 {offsets = [0, 8], sizes = [8, 8], strides = [1, 1]} : vector<8x32xbf16> to vector<8x8xbf16>
      %cst_42 = arith.constant dense<0.000000e+00> : vector<8x8xf32>
      %66 = tpu.matmul %64, %65, %cst_42 {dimension_numbers = #tpu.dot_dimension_numbers<[1], [1], [0], [0], [0, 0, 1, 0], [], []>} : vector<8x8xbf16>, vector<8x8xbf16>, vector<8x8xf32> -> vector<8x8xf32>
      %67 = arith.addf %66, %19 : vector<8x8xf32>
      %cst_43 = arith.constant dense<0xFF800000> : vector<8xf32>
      %68 = vector.multi_reduction <maximumf>, %67, %cst_43 [1] : vector<8x8xf32> to vector<8xf32>
      %69 = vector.shape_cast %68 : vector<8xf32> to vector<8x1xf32>
      %70 = vector.broadcast %69 : vector<8x1xf32> to vector<8x8xf32>
      %71 = arith.subf %67, %70 : vector<8x8xf32>
      %72 = math.exp %71 : vector<8x8xf32>
      %cst_44 = arith.constant dense<0.000000e+00> : vector<8xf32>
      %73 = vector.multi_reduction <add>, %72, %cst_44 [1] : vector<8x8xf32> to vector<8xf32>
      %74 = vector.shape_cast %73 : vector<8xf32> to vector<8x1xf32>
      %75 = tpu.reciprocal %74 : vector<8x1xf32> -> vector<8x1xf32>
      %76 = vector.broadcast %75 : vector<8x1xf32> to vector<8x8xf32>
      %77 = arith.mulf %72, %76 : vector<8x8xf32>
      %78 = arith.truncf %77 : vector<8x8xf32> to vector<8x8xbf16>
      %79 = vector.extract_strided_slice %46 {offsets = [0, 8], sizes = [8, 8], strides = [1, 1]} : vector<8x32xbf16> to vector<8x8xbf16>
      %cst_45 = arith.constant dense<0.000000e+00> : vector<8x8xf32>
      %80 = tpu.matmul %78, %79, %cst_45 {dimension_numbers = #tpu.dot_dimension_numbers<[1], [0], [0], [1], [0, 0, 1, 1], [], []>} : vector<8x8xbf16>, vector<8x8xbf16>, vector<8x8xf32> -> vector<8x8xf32>
      %81 = vector.extract_strided_slice %44 {offsets = [0, 16], sizes = [8, 8], strides = [1, 1]} : vector<8x32xbf16> to vector<8x8xbf16>
      %82 = vector.extract_strided_slice %45 {offsets = [0, 16], sizes = [8, 8], strides = [1, 1]} : vector<8x32xbf16> to vector<8x8xbf16>
      %cst_46 = arith.constant dense<0.000000e+00> : vector<8x8xf32>
      %83 = tpu.matmul %81, %82, %cst_46 {dimension_numbers = #tpu.dot_dimension_numbers<[1], [1], [0], [0], [0, 0, 1, 0], [], []>} : vector<8x8xbf16>, vector<8x8xbf16>, vector<8x8xf32> -> vector<8x8xf32>
      %84 = arith.addf %83, %19 : vector<8x8xf32>
      %cst_47 = arith.constant dense<0xFF800000> : vector<8xf32>
      %85 = vector.multi_reduction <maximumf>, %84, %cst_47 [1] : vector<8x8xf32> to vector<8xf32>
      %86 = vector.shape_cast %85 : vector<8xf32> to vector<8x1xf32>
      %87 = vector.broadcast %86 : vector<8x1xf32> to vector<8x8xf32>
      %88 = arith.subf %84, %87 : vector<8x8xf32>
      %89 = math.exp %88 : vector<8x8xf32>
      %cst_48 = arith.constant dense<0.000000e+00> : vector<8xf32>
      %90 = vector.multi_reduction <add>, %89, %cst_48 [1] : vector<8x8xf32> to vector<8xf32>
      %91 = vector.shape_cast %90 : vector<8xf32> to vector<8x1xf32>
      %92 = tpu.reciprocal %91 : vector<8x1xf32> -> vector<8x1xf32>
      %93 = vector.broadcast %92 : vector<8x1xf32> to vector<8x8xf32>
      %94 = arith.mulf %89, %93 : vector<8x8xf32>
      %95 = arith.truncf %94 : vector<8x8xf32> to vector<8x8xbf16>
      %96 = vector.extract_strided_slice %46 {offsets = [0, 16], sizes = [8, 8], strides = [1, 1]} : vector<8x32xbf16> to vector<8x8xbf16>
      %cst_49 = arith.constant dense<0.000000e+00> : vector<8x8xf32>
      %97 = tpu.matmul %95, %96, %cst_49 {dimension_numbers = #tpu.dot_dimension_numbers<[1], [0], [0], [1], [0, 0, 1, 1], [], []>} : vector<8x8xbf16>, vector<8x8xbf16>, vector<8x8xf32> -> vector<8x8xf32>
      %98 = vector.extract_strided_slice %44 {offsets = [0, 24], sizes = [8, 8], strides = [1, 1]} : vector<8x32xbf16> to vector<8x8xbf16>
      %99 = vector.extract_strided_slice %45 {offsets = [0, 24], sizes = [8, 8], strides = [1, 1]} : vector<8x32xbf16> to vector<8x8xbf16>
      %cst_50 = arith.constant dense<0.000000e+00> : vector<8x8xf32>
      %100 = tpu.matmul %98, %99, %cst_50 {dimension_numbers = #tpu.dot_dimension_numbers<[1], [1], [0], [0], [0, 0, 1, 0], [], []>} : vector<8x8xbf16>, vector<8x8xbf16>, vector<8x8xf32> -> vector<8x8xf32>
      %101 = arith.addf %100, %19 : vector<8x8xf32>
      %cst_51 = arith.constant dense<0xFF800000> : vector<8xf32>
      %102 = vector.multi_reduction <maximumf>, %101, %cst_51 [1] : vector<8x8xf32> to vector<8xf32>
      %103 = vector.shape_cast %102 : vector<8xf32> to vector<8x1xf32>
      %104 = vector.broadcast %103 : vector<8x1xf32> to vector<8x8xf32>
      %105 = arith.subf %101, %104 : vector<8x8xf32>
      %106 = math.exp %105 : vector<8x8xf32>
      %cst_52 = arith.constant dense<0.000000e+00> : vector<8xf32>
      %107 = vector.multi_reduction <add>, %106, %cst_52 [1] : vector<8x8xf32> to vector<8xf32>
      %108 = vector.shape_cast %107 : vector<8xf32> to vector<8x1xf32>
      %109 = tpu.reciprocal %108 : vector<8x1xf32> -> vector<8x1xf32>
      %110 = vector.broadcast %109 : vector<8x1xf32> to vector<8x8xf32>
      %111 = arith.mulf %106, %110 : vector<8x8xf32>
      %112 = arith.truncf %111 : vector<8x8xf32> to vector<8x8xbf16>
      %113 = vector.extract_strided_slice %46 {offsets = [0, 24], sizes = [8, 8], strides = [1, 1]} : vector<8x32xbf16> to vector<8x8xbf16>
      %cst_53 = arith.constant dense<0.000000e+00> : vector<8x8xf32>
      %114 = tpu.matmul %112, %113, %cst_53 {dimension_numbers = #tpu.dot_dimension_numbers<[1], [0], [0], [1], [0, 0, 1, 1], [], []>} : vector<8x8xbf16>, vector<8x8xbf16>, vector<8x8xf32> -> vector<8x8xf32>
      %115 = tpu.concatenate %63, %80, %97, %114 in 1 : vector<8x8xf32>, vector<8x8xf32>, vector<8x8xf32>, vector<8x8xf32> -> vector<8x32xf32>
      %116 = arith.truncf %115 : vector<8x32xf32> to vector<8x32xbf16>
      %cst_54 = arith.constant dense<0.000000e+00> : vector<8x32xf32>
      %117 = tpu.matmul %116, %43, %cst_54 {dimension_numbers = #tpu.dot_dimension_numbers<[1], [0], [0], [1], [0, 0, 1, 1], [], []>} : vector<8x32xbf16>, vector<32x32xbf16>, vector<8x32xf32> -> vector<8x32xf32>
      %c0_55 = arith.constant 0 : index
      %c0_56 = arith.constant 0 : index
      %118 = vector.load %arg14[%c0_55, %c0_56] : memref<1x32xf32, #tpu.memory_space<vmem>>, vector<1x32xf32>
      %119 = vector.broadcast %118 : vector<1x32xf32> to vector<8x32xf32>
      %120 = arith.addf %117, %119 : vector<8x32xf32>
      %121 = arith.addf %32, %120 : vector<8x32xf32>
      %122 = vector.extract_strided_slice %33 {offsets = [0, 0], sizes = [1, 32], strides = [1, 1]} : vector<6x32xf32> to vector<1x32xf32>
      %123 = vector.extract_strided_slice %33 {offsets = [1, 0], sizes = [1, 32], strides = [1, 1]} : vector<6x32xf32> to vector<1x32xf32>
      %cst_57 = arith.constant dense<0.000000e+00> : vector<8xf32>
      %124 = vector.multi_reduction <add>, %121, %cst_57 [1] : vector<8x32xf32> to vector<8xf32>
      %125 = vector.shape_cast %124 : vector<8xf32> to vector<8x1xf32>
      %cst_58 = arith.constant 3.200000e+01 : f32
      %126 = vector.broadcast %cst_58 : f32 to vector<8x1xf32>
      %127 = arith.divf %125, %126 : vector<8x1xf32>
      %128 = vector.broadcast %127 : vector<8x1xf32> to vector<8x32xf32>
      %129 = arith.subf %121, %128 : vector<8x32xf32>
      %130 = arith.mulf %129, %129 : vector<8x32xf32>
      %cst_59 = arith.constant dense<0.000000e+00> : vector<8xf32>
      %131 = vector.multi_reduction <add>, %130, %cst_59 [1] : vector<8x32xf32> to vector<8xf32>
      %132 = vector.shape_cast %131 : vector<8xf32> to vector<8x1xf32>
      %cst_60 = arith.constant 3.200000e+01 : f32
      %133 = vector.broadcast %cst_60 : f32 to vector<8x1xf32>
      %134 = arith.divf %132, %133 : vector<8x1xf32>
      %135 = vector.broadcast %127 : vector<8x1xf32> to vector<8x32xf32>
      %136 = arith.subf %121, %135 : vector<8x32xf32>
      %cst_61 = arith.constant 9.99999974E-6 : f32
      %137 = vector.broadcast %cst_61 : f32 to vector<8x1xf32>
      %138 = arith.addf %134, %137 : vector<8x1xf32>
      %139 = math.rsqrt %138 : vector<8x1xf32>
      %140 = vector.broadcast %139 : vector<8x1xf32> to vector<8x32xf32>
      %141 = arith.mulf %136, %140 : vector<8x32xf32>
      %142 = vector.broadcast %122 : vector<1x32xf32> to vector<8x32xf32>
      %143 = arith.mulf %141, %142 : vector<8x32xf32>
      %144 = vector.broadcast %123 : vector<1x32xf32> to vector<8x32xf32>
      %145 = arith.addf %143, %144 : vector<8x32xf32>
      %c0_62 = arith.constant 0 : index
      %c0_63 = arith.constant 0 : index
      %146 = vector.load %arg15[%c0_62, %c0_63] : memref<32x64xbf16, #tpu.memory_space<vmem>>, vector<32x64xbf16>
      %147 = arith.truncf %145 : vector<8x32xf32> to vector<8x32xbf16>
      %cst_64 = arith.constant dense<0.000000e+00> : vector<8x64xf32>
      %148 = tpu.matmul %147, %146, %cst_64 {dimension_numbers = #tpu.dot_dimension_numbers<[1], [0], [0], [1], [0, 0, 1, 1], [], []>} : vector<8x32xbf16>, vector<32x64xbf16>, vector<8x64xf32> -> vector<8x64xf32>
      %c0_65 = arith.constant 0 : index
      %c0_66 = arith.constant 0 : index
      %149 = vector.load %arg16[%c0_65, %c0_66] : memref<1x64xf32, #tpu.memory_space<vmem>>, vector<1x64xf32>
      %150 = vector.broadcast %149 : vector<1x64xf32> to vector<8x64xf32>
      %151 = arith.addf %148, %150 : vector<8x64xf32>
      %cst_67 = arith.constant 0.000000e+00 : f32
      %152 = vector.broadcast %cst_67 : f32 to vector<8x64xf32>
      %153 = arith.maximumf %151, %152 : vector<8x64xf32>
      %c0_68 = arith.constant 0 : index
      %c0_69 = arith.constant 0 : index
      %154 = vector.load %arg17[%c0_68, %c0_69] : memref<64x32xbf16, #tpu.memory_space<vmem>>, vector<64x32xbf16>
      %155 = arith.truncf %153 : vector<8x64xf32> to vector<8x64xbf16>
      %cst_70 = arith.constant dense<0.000000e+00> : vector<8x32xf32>
      %156 = tpu.matmul %155, %154, %cst_70 {dimension_numbers = #tpu.dot_dimension_numbers<[1], [0], [0], [1], [0, 0, 1, 1], [], []>} : vector<8x64xbf16>, vector<64x32xbf16>, vector<8x32xf32> -> vector<8x32xf32>
      %c0_71 = arith.constant 0 : index
      %c0_72 = arith.constant 0 : index
      %157 = vector.load %arg18[%c0_71, %c0_72] : memref<1x32xf32, #tpu.memory_space<vmem>>, vector<1x32xf32>
      %158 = vector.broadcast %157 : vector<1x32xf32> to vector<8x32xf32>
      %159 = arith.addf %156, %158 : vector<8x32xf32>
      %160 = arith.addf %145, %159 : vector<8x32xf32>
      %161 = vector.extract_strided_slice %33 {offsets = [2, 0], sizes = [1, 32], strides = [1, 1]} : vector<6x32xf32> to vector<1x32xf32>
      %162 = vector.extract_strided_slice %33 {offsets = [3, 0], sizes = [1, 32], strides = [1, 1]} : vector<6x32xf32> to vector<1x32xf32>
      %cst_73 = arith.constant dense<0.000000e+00> : vector<8xf32>
      %163 = vector.multi_reduction <add>, %160, %cst_73 [1] : vector<8x32xf32> to vector<8xf32>
      %164 = vector.shape_cast %163 : vector<8xf32> to vector<8x1xf32>
      %cst_74 = arith.constant 3.200000e+01 : f32
      %165 = vector.broadcast %cst_74 : f32 to vector<8x1xf32>
      %166 = arith.divf %164, %165 : vector<8x1xf32>
      %167 = vector.broadcast %166 : vector<8x1xf32> to vector<8x32xf32>
      %168 = arith.subf %160, %167 : vector<8x32xf32>
      %169 = arith.mulf %168, %168 : vector<8x32xf32>
      %cst_75 = arith.constant dense<0.000000e+00> : vector<8xf32>
      %170 = vector.multi_reduction <add>, %169, %cst_75 [1] : vector<8x32xf32> to vector<8xf32>
      %171 = vector.shape_cast %170 : vector<8xf32> to vector<8x1xf32>
      %cst_76 = arith.constant 3.200000e+01 : f32
      %172 = vector.broadcast %cst_76 : f32 to vector<8x1xf32>
      %173 = arith.divf %171, %172 : vector<8x1xf32>
      %174 = vector.broadcast %166 : vector<8x1xf32> to vector<8x32xf32>
      %175 = arith.subf %160, %174 : vector<8x32xf32>
      %cst_77 = arith.constant 9.99999974E-6 : f32
      %176 = vector.broadcast %cst_77 : f32 to vector<8x1xf32>
      %177 = arith.addf %173, %176 : vector<8x1xf32>
      %178 = math.rsqrt %177 : vector<8x1xf32>
      %179 = vector.broadcast %178 : vector<8x1xf32> to vector<8x32xf32>
      %180 = arith.mulf %175, %179 : vector<8x32xf32>
      %181 = vector.broadcast %161 : vector<1x32xf32> to vector<8x32xf32>
      %182 = arith.mulf %180, %181 : vector<8x32xf32>
      %183 = vector.broadcast %162 : vector<1x32xf32> to vector<8x32xf32>
      %184 = arith.addf %182, %183 : vector<8x32xf32>
      %185 = vector.extract_strided_slice %33 {offsets = [4, 0], sizes = [1, 32], strides = [1, 1]} : vector<6x32xf32> to vector<1x32xf32>
      %186 = vector.extract_strided_slice %33 {offsets = [5, 0], sizes = [1, 32], strides = [1, 1]} : vector<6x32xf32> to vector<1x32xf32>
      %cst_78 = arith.constant dense<0.000000e+00> : vector<8xf32>
      %187 = vector.multi_reduction <add>, %184, %cst_78 [1] : vector<8x32xf32> to vector<8xf32>
      %188 = vector.shape_cast %187 : vector<8xf32> to vector<8x1xf32>
      %cst_79 = arith.constant 3.200000e+01 : f32
      %189 = vector.broadcast %cst_79 : f32 to vector<8x1xf32>
      %190 = arith.divf %188, %189 : vector<8x1xf32>
      %191 = vector.broadcast %190 : vector<8x1xf32> to vector<8x32xf32>
      %192 = arith.subf %184, %191 : vector<8x32xf32>
      %193 = arith.mulf %192, %192 : vector<8x32xf32>
      %cst_80 = arith.constant dense<0.000000e+00> : vector<8xf32>
      %194 = vector.multi_reduction <add>, %193, %cst_80 [1] : vector<8x32xf32> to vector<8xf32>
      %195 = vector.shape_cast %194 : vector<8xf32> to vector<8x1xf32>
      %cst_81 = arith.constant 3.200000e+01 : f32
      %196 = vector.broadcast %cst_81 : f32 to vector<8x1xf32>
      %197 = arith.divf %195, %196 : vector<8x1xf32>
      %198 = vector.broadcast %190 : vector<8x1xf32> to vector<8x32xf32>
      %199 = arith.subf %184, %198 : vector<8x32xf32>
      %cst_82 = arith.constant 9.99999974E-6 : f32
      %200 = vector.broadcast %cst_82 : f32 to vector<8x1xf32>
      %201 = arith.addf %197, %200 : vector<8x1xf32>
      %202 = math.rsqrt %201 : vector<8x1xf32>
      %203 = vector.broadcast %202 : vector<8x1xf32> to vector<8x32xf32>
      %204 = arith.mulf %199, %203 : vector<8x32xf32>
      %205 = vector.broadcast %185 : vector<1x32xf32> to vector<8x32xf32>
      %206 = arith.mulf %204, %205 : vector<8x32xf32>
      %207 = vector.broadcast %186 : vector<1x32xf32> to vector<8x32xf32>
      %208 = arith.addf %206, %207 : vector<8x32xf32>
      %c0_83 = arith.constant 0 : index
      %c0_84 = arith.constant 0 : index
      %c0_85 = arith.constant 0 : index
      %209 = vector.load %arg3[%c0_83, %c0_84, %c0_85] : memref<1x8x32xf32, #tpu.memory_space<vmem>>, vector<1x8x32xf32>
      %210 = vector.shape_cast %209 : vector<1x8x32xf32> to vector<8x32xf32>
      %c0_86 = arith.constant 0 : index
      %c0_87 = arith.constant 0 : index
      %211 = vector.load %arg5[%c0_86, %c0_87] : memref<8x32xf32, #tpu.memory_space<vmem>>, vector<8x32xf32>
      %212 = arith.addf %210, %211 : vector<8x32xf32>
      %c0_88 = arith.constant 0 : index
      %c0_89 = arith.constant 0 : index
      %213 = vector.load %arg34[%c0_88, %c0_89] : memref<8x32xf32, #tpu.memory_space<vmem>>, vector<8x32xf32>
      %c0_90 = arith.constant 0 : index
      %c0_91 = arith.constant 0 : index
      %214 = vector.load %arg20[%c0_90, %c0_91] : memref<32x96xbf16, #tpu.memory_space<vmem>>, vector<32x96xbf16>
      %215 = arith.truncf %212 : vector<8x32xf32> to vector<8x32xbf16>
      %cst_92 = arith.constant dense<0.000000e+00> : vector<8x96xf32>
      %216 = tpu.matmul %215, %214, %cst_92 {dimension_numbers = #tpu.dot_dimension_numbers<[1], [0], [0], [1], [0, 0, 1, 1], [], []>} : vector<8x32xbf16>, vector<32x96xbf16>, vector<8x96xf32> -> vector<8x96xf32>
      %c0_93 = arith.constant 0 : index
      %c0_94 = arith.constant 0 : index
      %217 = vector.load %arg21[%c0_93, %c0_94] : memref<1x96xf32, #tpu.memory_space<vmem>>, vector<1x96xf32>
      %218 = vector.broadcast %217 : vector<1x96xf32> to vector<8x96xf32>
      %219 = arith.addf %216, %218 : vector<8x96xf32>
      %220 = vector.extract_strided_slice %219 {offsets = [0, 0], sizes = [8, 32], strides = [1, 1]} : vector<8x96xf32> to vector<8x32xf32>
      %221 = vector.extract_strided_slice %219 {offsets = [0, 32], sizes = [8, 32], strides = [1, 1]} : vector<8x96xf32> to vector<8x32xf32>
      %222 = vector.extract_strided_slice %219 {offsets = [0, 64], sizes = [8, 32], strides = [1, 1]} : vector<8x96xf32> to vector<8x32xf32>
      %c0_95 = arith.constant 0 : index
      %c0_96 = arith.constant 0 : index
      %223 = vector.load %arg22[%c0_95, %c0_96] : memref<32x32xbf16, #tpu.memory_space<vmem>>, vector<32x32xbf16>
      %224 = arith.truncf %220 : vector<8x32xf32> to vector<8x32xbf16>
      %225 = arith.truncf %221 : vector<8x32xf32> to vector<8x32xbf16>
      %226 = arith.truncf %222 : vector<8x32xf32> to vector<8x32xbf16>
      %227 = vector.extract_strided_slice %224 {offsets = [0, 0], sizes = [8, 8], strides = [1, 1]} : vector<8x32xbf16> to vector<8x8xbf16>
      %228 = vector.extract_strided_slice %225 {offsets = [0, 0], sizes = [8, 8], strides = [1, 1]} : vector<8x32xbf16> to vector<8x8xbf16>
      %cst_97 = arith.constant dense<0.000000e+00> : vector<8x8xf32>
      %229 = tpu.matmul %227, %228, %cst_97 {dimension_numbers = #tpu.dot_dimension_numbers<[1], [1], [0], [0], [0, 0, 1, 0], [], []>} : vector<8x8xbf16>, vector<8x8xbf16>, vector<8x8xf32> -> vector<8x8xf32>
      %230 = arith.addf %229, %26 : vector<8x8xf32>
      %cst_98 = arith.constant dense<0xFF800000> : vector<8xf32>
      %231 = vector.multi_reduction <maximumf>, %230, %cst_98 [1] : vector<8x8xf32> to vector<8xf32>
      %232 = vector.shape_cast %231 : vector<8xf32> to vector<8x1xf32>
      %233 = vector.broadcast %232 : vector<8x1xf32> to vector<8x8xf32>
      %234 = arith.subf %230, %233 : vector<8x8xf32>
      %235 = math.exp %234 : vector<8x8xf32>
      %cst_99 = arith.constant dense<0.000000e+00> : vector<8xf32>
      %236 = vector.multi_reduction <add>, %235, %cst_99 [1] : vector<8x8xf32> to vector<8xf32>
      %237 = vector.shape_cast %236 : vector<8xf32> to vector<8x1xf32>
      %238 = tpu.reciprocal %237 : vector<8x1xf32> -> vector<8x1xf32>
      %239 = vector.broadcast %238 : vector<8x1xf32> to vector<8x8xf32>
      %240 = arith.mulf %235, %239 : vector<8x8xf32>
      %241 = arith.truncf %240 : vector<8x8xf32> to vector<8x8xbf16>
      %242 = vector.extract_strided_slice %226 {offsets = [0, 0], sizes = [8, 8], strides = [1, 1]} : vector<8x32xbf16> to vector<8x8xbf16>
      %cst_100 = arith.constant dense<0.000000e+00> : vector<8x8xf32>
      %243 = tpu.matmul %241, %242, %cst_100 {dimension_numbers = #tpu.dot_dimension_numbers<[1], [0], [0], [1], [0, 0, 1, 1], [], []>} : vector<8x8xbf16>, vector<8x8xbf16>, vector<8x8xf32> -> vector<8x8xf32>
      %244 = vector.extract_strided_slice %224 {offsets = [0, 8], sizes = [8, 8], strides = [1, 1]} : vector<8x32xbf16> to vector<8x8xbf16>
      %245 = vector.extract_strided_slice %225 {offsets = [0, 8], sizes = [8, 8], strides = [1, 1]} : vector<8x32xbf16> to vector<8x8xbf16>
      %cst_101 = arith.constant dense<0.000000e+00> : vector<8x8xf32>
      %246 = tpu.matmul %244, %245, %cst_101 {dimension_numbers = #tpu.dot_dimension_numbers<[1], [1], [0], [0], [0, 0, 1, 0], [], []>} : vector<8x8xbf16>, vector<8x8xbf16>, vector<8x8xf32> -> vector<8x8xf32>
      %247 = arith.addf %246, %26 : vector<8x8xf32>
      %cst_102 = arith.constant dense<0xFF800000> : vector<8xf32>
      %248 = vector.multi_reduction <maximumf>, %247, %cst_102 [1] : vector<8x8xf32> to vector<8xf32>
      %249 = vector.shape_cast %248 : vector<8xf32> to vector<8x1xf32>
      %250 = vector.broadcast %249 : vector<8x1xf32> to vector<8x8xf32>
      %251 = arith.subf %247, %250 : vector<8x8xf32>
      %252 = math.exp %251 : vector<8x8xf32>
      %cst_103 = arith.constant dense<0.000000e+00> : vector<8xf32>
      %253 = vector.multi_reduction <add>, %252, %cst_103 [1] : vector<8x8xf32> to vector<8xf32>
      %254 = vector.shape_cast %253 : vector<8xf32> to vector<8x1xf32>
      %255 = tpu.reciprocal %254 : vector<8x1xf32> -> vector<8x1xf32>
      %256 = vector.broadcast %255 : vector<8x1xf32> to vector<8x8xf32>
      %257 = arith.mulf %252, %256 : vector<8x8xf32>
      %258 = arith.truncf %257 : vector<8x8xf32> to vector<8x8xbf16>
      %259 = vector.extract_strided_slice %226 {offsets = [0, 8], sizes = [8, 8], strides = [1, 1]} : vector<8x32xbf16> to vector<8x8xbf16>
      %cst_104 = arith.constant dense<0.000000e+00> : vector<8x8xf32>
      %260 = tpu.matmul %258, %259, %cst_104 {dimension_numbers = #tpu.dot_dimension_numbers<[1], [0], [0], [1], [0, 0, 1, 1], [], []>} : vector<8x8xbf16>, vector<8x8xbf16>, vector<8x8xf32> -> vector<8x8xf32>
      %261 = vector.extract_strided_slice %224 {offsets = [0, 16], sizes = [8, 8], strides = [1, 1]} : vector<8x32xbf16> to vector<8x8xbf16>
      %262 = vector.extract_strided_slice %225 {offsets = [0, 16], sizes = [8, 8], strides = [1, 1]} : vector<8x32xbf16> to vector<8x8xbf16>
      %cst_105 = arith.constant dense<0.000000e+00> : vector<8x8xf32>
      %263 = tpu.matmul %261, %262, %cst_105 {dimension_numbers = #tpu.dot_dimension_numbers<[1], [1], [0], [0], [0, 0, 1, 0], [], []>} : vector<8x8xbf16>, vector<8x8xbf16>, vector<8x8xf32> -> vector<8x8xf32>
      %264 = arith.addf %263, %26 : vector<8x8xf32>
      %cst_106 = arith.constant dense<0xFF800000> : vector<8xf32>
      %265 = vector.multi_reduction <maximumf>, %264, %cst_106 [1] : vector<8x8xf32> to vector<8xf32>
      %266 = vector.shape_cast %265 : vector<8xf32> to vector<8x1xf32>
      %267 = vector.broadcast %266 : vector<8x1xf32> to vector<8x8xf32>
      %268 = arith.subf %264, %267 : vector<8x8xf32>
      %269 = math.exp %268 : vector<8x8xf32>
      %cst_107 = arith.constant dense<0.000000e+00> : vector<8xf32>
      %270 = vector.multi_reduction <add>, %269, %cst_107 [1] : vector<8x8xf32> to vector<8xf32>
      %271 = vector.shape_cast %270 : vector<8xf32> to vector<8x1xf32>
      %272 = tpu.reciprocal %271 : vector<8x1xf32> -> vector<8x1xf32>
      %273 = vector.broadcast %272 : vector<8x1xf32> to vector<8x8xf32>
      %274 = arith.mulf %269, %273 : vector<8x8xf32>
      %275 = arith.truncf %274 : vector<8x8xf32> to vector<8x8xbf16>
      %276 = vector.extract_strided_slice %226 {offsets = [0, 16], sizes = [8, 8], strides = [1, 1]} : vector<8x32xbf16> to vector<8x8xbf16>
      %cst_108 = arith.constant dense<0.000000e+00> : vector<8x8xf32>
      %277 = tpu.matmul %275, %276, %cst_108 {dimension_numbers = #tpu.dot_dimension_numbers<[1], [0], [0], [1], [0, 0, 1, 1], [], []>} : vector<8x8xbf16>, vector<8x8xbf16>, vector<8x8xf32> -> vector<8x8xf32>
      %278 = vector.extract_strided_slice %224 {offsets = [0, 24], sizes = [8, 8], strides = [1, 1]} : vector<8x32xbf16> to vector<8x8xbf16>
      %279 = vector.extract_strided_slice %225 {offsets = [0, 24], sizes = [8, 8], strides = [1, 1]} : vector<8x32xbf16> to vector<8x8xbf16>
      %cst_109 = arith.constant dense<0.000000e+00> : vector<8x8xf32>
      %280 = tpu.matmul %278, %279, %cst_109 {dimension_numbers = #tpu.dot_dimension_numbers<[1], [1], [0], [0], [0, 0, 1, 0], [], []>} : vector<8x8xbf16>, vector<8x8xbf16>, vector<8x8xf32> -> vector<8x8xf32>
      %281 = arith.addf %280, %26 : vector<8x8xf32>
      %cst_110 = arith.constant dense<0xFF800000> : vector<8xf32>
      %282 = vector.multi_reduction <maximumf>, %281, %cst_110 [1] : vector<8x8xf32> to vector<8xf32>
      %283 = vector.shape_cast %282 : vector<8xf32> to vector<8x1xf32>
      %284 = vector.broadcast %283 : vector<8x1xf32> to vector<8x8xf32>
      %285 = arith.subf %281, %284 : vector<8x8xf32>
      %286 = math.exp %285 : vector<8x8xf32>
      %cst_111 = arith.constant dense<0.000000e+00> : vector<8xf32>
      %287 = vector.multi_reduction <add>, %286, %cst_111 [1] : vector<8x8xf32> to vector<8xf32>
      %288 = vector.shape_cast %287 : vector<8xf32> to vector<8x1xf32>
      %289 = tpu.reciprocal %288 : vector<8x1xf32> -> vector<8x1xf32>
      %290 = vector.broadcast %289 : vector<8x1xf32> to vector<8x8xf32>
      %291 = arith.mulf %286, %290 : vector<8x8xf32>
      %292 = arith.truncf %291 : vector<8x8xf32> to vector<8x8xbf16>
      %293 = vector.extract_strided_slice %226 {offsets = [0, 24], sizes = [8, 8], strides = [1, 1]} : vector<8x32xbf16> to vector<8x8xbf16>
      %cst_112 = arith.constant dense<0.000000e+00> : vector<8x8xf32>
      %294 = tpu.matmul %292, %293, %cst_112 {dimension_numbers = #tpu.dot_dimension_numbers<[1], [0], [0], [1], [0, 0, 1, 1], [], []>} : vector<8x8xbf16>, vector<8x8xbf16>, vector<8x8xf32> -> vector<8x8xf32>
      %295 = tpu.concatenate %243, %260, %277, %294 in 1 : vector<8x8xf32>, vector<8x8xf32>, vector<8x8xf32>, vector<8x8xf32> -> vector<8x32xf32>
      %296 = arith.truncf %295 : vector<8x32xf32> to vector<8x32xbf16>
      %cst_113 = arith.constant dense<0.000000e+00> : vector<8x32xf32>
      %297 = tpu.matmul %296, %223, %cst_113 {dimension_numbers = #tpu.dot_dimension_numbers<[1], [0], [0], [1], [0, 0, 1, 1], [], []>} : vector<8x32xbf16>, vector<32x32xbf16>, vector<8x32xf32> -> vector<8x32xf32>
      %c0_114 = arith.constant 0 : index
      %c0_115 = arith.constant 0 : index
      %298 = vector.load %arg23[%c0_114, %c0_115] : memref<1x32xf32, #tpu.memory_space<vmem>>, vector<1x32xf32>
      %299 = vector.broadcast %298 : vector<1x32xf32> to vector<8x32xf32>
      %300 = arith.addf %297, %299 : vector<8x32xf32>
      %301 = arith.addf %212, %300 : vector<8x32xf32>
      %302 = vector.extract_strided_slice %213 {offsets = [0, 0], sizes = [1, 32], strides = [1, 1]} : vector<8x32xf32> to vector<1x32xf32>
      %303 = vector.extract_strided_slice %213 {offsets = [1, 0], sizes = [1, 32], strides = [1, 1]} : vector<8x32xf32> to vector<1x32xf32>
      %cst_116 = arith.constant dense<0.000000e+00> : vector<8xf32>
      %304 = vector.multi_reduction <add>, %301, %cst_116 [1] : vector<8x32xf32> to vector<8xf32>
      %305 = vector.shape_cast %304 : vector<8xf32> to vector<8x1xf32>
      %cst_117 = arith.constant 3.200000e+01 : f32
      %306 = vector.broadcast %cst_117 : f32 to vector<8x1xf32>
      %307 = arith.divf %305, %306 : vector<8x1xf32>
      %308 = vector.broadcast %307 : vector<8x1xf32> to vector<8x32xf32>
      %309 = arith.subf %301, %308 : vector<8x32xf32>
      %310 = arith.mulf %309, %309 : vector<8x32xf32>
      %cst_118 = arith.constant dense<0.000000e+00> : vector<8xf32>
      %311 = vector.multi_reduction <add>, %310, %cst_118 [1] : vector<8x32xf32> to vector<8xf32>
      %312 = vector.shape_cast %311 : vector<8xf32> to vector<8x1xf32>
      %cst_119 = arith.constant 3.200000e+01 : f32
      %313 = vector.broadcast %cst_119 : f32 to vector<8x1xf32>
      %314 = arith.divf %312, %313 : vector<8x1xf32>
      %315 = vector.broadcast %307 : vector<8x1xf32> to vector<8x32xf32>
      %316 = arith.subf %301, %315 : vector<8x32xf32>
      %cst_120 = arith.constant 9.99999974E-6 : f32
      %317 = vector.broadcast %cst_120 : f32 to vector<8x1xf32>
      %318 = arith.addf %314, %317 : vector<8x1xf32>
      %319 = math.rsqrt %318 : vector<8x1xf32>
      %320 = vector.broadcast %319 : vector<8x1xf32> to vector<8x32xf32>
      %321 = arith.mulf %316, %320 : vector<8x32xf32>
      %322 = vector.broadcast %302 : vector<1x32xf32> to vector<8x32xf32>
      %323 = arith.mulf %321, %322 : vector<8x32xf32>
      %324 = vector.broadcast %303 : vector<1x32xf32> to vector<8x32xf32>
      %325 = arith.addf %323, %324 : vector<8x32xf32>
      %c0_121 = arith.constant 0 : index
      %c0_122 = arith.constant 0 : index
      %326 = vector.load %arg24[%c0_121, %c0_122] : memref<32x32xbf16, #tpu.memory_space<vmem>>, vector<32x32xbf16>
      %327 = arith.truncf %325 : vector<8x32xf32> to vector<8x32xbf16>
      %cst_123 = arith.constant dense<0.000000e+00> : vector<8x32xf32>
      %328 = tpu.matmul %327, %326, %cst_123 {dimension_numbers = #tpu.dot_dimension_numbers<[1], [0], [0], [1], [0, 0, 1, 1], [], []>} : vector<8x32xbf16>, vector<32x32xbf16>, vector<8x32xf32> -> vector<8x32xf32>
      %c0_124 = arith.constant 0 : index
      %c0_125 = arith.constant 0 : index
      %329 = vector.load %arg25[%c0_124, %c0_125] : memref<1x32xf32, #tpu.memory_space<vmem>>, vector<1x32xf32>
      %330 = vector.broadcast %329 : vector<1x32xf32> to vector<8x32xf32>
      %331 = arith.addf %328, %330 : vector<8x32xf32>
      %c0_126 = arith.constant 0 : index
      %c0_127 = arith.constant 0 : index
      %332 = vector.load %arg26[%c0_126, %c0_127] : memref<32x64xbf16, #tpu.memory_space<vmem>>, vector<32x64xbf16>
      %333 = arith.truncf %208 : vector<8x32xf32> to vector<8x32xbf16>
      %cst_128 = arith.constant dense<0.000000e+00> : vector<8x64xf32>
      %334 = tpu.matmul %333, %332, %cst_128 {dimension_numbers = #tpu.dot_dimension_numbers<[1], [0], [0], [1], [0, 0, 1, 1], [], []>} : vector<8x32xbf16>, vector<32x64xbf16>, vector<8x64xf32> -> vector<8x64xf32>
      %c0_129 = arith.constant 0 : index
      %c0_130 = arith.constant 0 : index
      %335 = vector.load %arg27[%c0_129, %c0_130] : memref<1x64xf32, #tpu.memory_space<vmem>>, vector<1x64xf32>
      %336 = vector.broadcast %335 : vector<1x64xf32> to vector<8x64xf32>
      %337 = arith.addf %334, %336 : vector<8x64xf32>
      %338 = vector.extract_strided_slice %337 {offsets = [0, 0], sizes = [8, 32], strides = [1, 1]} : vector<8x64xf32> to vector<8x32xf32>
      %339 = vector.extract_strided_slice %337 {offsets = [0, 32], sizes = [8, 32], strides = [1, 1]} : vector<8x64xf32> to vector<8x32xf32>
      %c0_131 = arith.constant 0 : index
      %c0_132 = arith.constant 0 : index
      %340 = vector.load %arg28[%c0_131, %c0_132] : memref<32x32xbf16, #tpu.memory_space<vmem>>, vector<32x32xbf16>
      %341 = arith.truncf %331 : vector<8x32xf32> to vector<8x32xbf16>
      %342 = arith.truncf %338 : vector<8x32xf32> to vector<8x32xbf16>
      %343 = arith.truncf %339 : vector<8x32xf32> to vector<8x32xbf16>
      %344 = vector.extract_strided_slice %341 {offsets = [0, 0], sizes = [8, 8], strides = [1, 1]} : vector<8x32xbf16> to vector<8x8xbf16>
      %345 = vector.extract_strided_slice %342 {offsets = [0, 0], sizes = [8, 8], strides = [1, 1]} : vector<8x32xbf16> to vector<8x8xbf16>
      %cst_133 = arith.constant dense<0.000000e+00> : vector<8x8xf32>
      %346 = tpu.matmul %344, %345, %cst_133 {dimension_numbers = #tpu.dot_dimension_numbers<[1], [1], [0], [0], [0, 0, 1, 0], [], []>} : vector<8x8xbf16>, vector<8x8xbf16>, vector<8x8xf32> -> vector<8x8xf32>
      %347 = vector.broadcast %28 : vector<1x8xf32> to vector<8x8xf32>
      %348 = arith.addf %346, %347 : vector<8x8xf32>
      %cst_134 = arith.constant dense<0xFF800000> : vector<8xf32>
      %349 = vector.multi_reduction <maximumf>, %348, %cst_134 [1] : vector<8x8xf32> to vector<8xf32>
      %350 = vector.shape_cast %349 : vector<8xf32> to vector<8x1xf32>
      %351 = vector.broadcast %350 : vector<8x1xf32> to vector<8x8xf32>
      %352 = arith.subf %348, %351 : vector<8x8xf32>
      %353 = math.exp %352 : vector<8x8xf32>
      %cst_135 = arith.constant dense<0.000000e+00> : vector<8xf32>
      %354 = vector.multi_reduction <add>, %353, %cst_135 [1] : vector<8x8xf32> to vector<8xf32>
      %355 = vector.shape_cast %354 : vector<8xf32> to vector<8x1xf32>
      %356 = tpu.reciprocal %355 : vector<8x1xf32> -> vector<8x1xf32>
      %357 = vector.broadcast %356 : vector<8x1xf32> to vector<8x8xf32>
      %358 = arith.mulf %353, %357 : vector<8x8xf32>
      %359 = arith.truncf %358 : vector<8x8xf32> to vector<8x8xbf16>
      %360 = vector.extract_strided_slice %343 {offsets = [0, 0], sizes = [8, 8], strides = [1, 1]} : vector<8x32xbf16> to vector<8x8xbf16>
      %cst_136 = arith.constant dense<0.000000e+00> : vector<8x8xf32>
      %361 = tpu.matmul %359, %360, %cst_136 {dimension_numbers = #tpu.dot_dimension_numbers<[1], [0], [0], [1], [0, 0, 1, 1], [], []>} : vector<8x8xbf16>, vector<8x8xbf16>, vector<8x8xf32> -> vector<8x8xf32>
      %362 = vector.extract_strided_slice %341 {offsets = [0, 8], sizes = [8, 8], strides = [1, 1]} : vector<8x32xbf16> to vector<8x8xbf16>
      %363 = vector.extract_strided_slice %342 {offsets = [0, 8], sizes = [8, 8], strides = [1, 1]} : vector<8x32xbf16> to vector<8x8xbf16>
      %cst_137 = arith.constant dense<0.000000e+00> : vector<8x8xf32>
      %364 = tpu.matmul %362, %363, %cst_137 {dimension_numbers = #tpu.dot_dimension_numbers<[1], [1], [0], [0], [0, 0, 1, 0], [], []>} : vector<8x8xbf16>, vector<8x8xbf16>, vector<8x8xf32> -> vector<8x8xf32>
      %365 = vector.broadcast %28 : vector<1x8xf32> to vector<8x8xf32>
      %366 = arith.addf %364, %365 : vector<8x8xf32>
      %cst_138 = arith.constant dense<0xFF800000> : vector<8xf32>
      %367 = vector.multi_reduction <maximumf>, %366, %cst_138 [1] : vector<8x8xf32> to vector<8xf32>
      %368 = vector.shape_cast %367 : vector<8xf32> to vector<8x1xf32>
      %369 = vector.broadcast %368 : vector<8x1xf32> to vector<8x8xf32>
      %370 = arith.subf %366, %369 : vector<8x8xf32>
      %371 = math.exp %370 : vector<8x8xf32>
      %cst_139 = arith.constant dense<0.000000e+00> : vector<8xf32>
      %372 = vector.multi_reduction <add>, %371, %cst_139 [1] : vector<8x8xf32> to vector<8xf32>
      %373 = vector.shape_cast %372 : vector<8xf32> to vector<8x1xf32>
      %374 = tpu.reciprocal %373 : vector<8x1xf32> -> vector<8x1xf32>
      %375 = vector.broadcast %374 : vector<8x1xf32> to vector<8x8xf32>
      %376 = arith.mulf %371, %375 : vector<8x8xf32>
      %377 = arith.truncf %376 : vector<8x8xf32> to vector<8x8xbf16>
      %378 = vector.extract_strided_slice %343 {offsets = [0, 8], sizes = [8, 8], strides = [1, 1]} : vector<8x32xbf16> to vector<8x8xbf16>
      %cst_140 = arith.constant dense<0.000000e+00> : vector<8x8xf32>
      %379 = tpu.matmul %377, %378, %cst_140 {dimension_numbers = #tpu.dot_dimension_numbers<[1], [0], [0], [1], [0, 0, 1, 1], [], []>} : vector<8x8xbf16>, vector<8x8xbf16>, vector<8x8xf32> -> vector<8x8xf32>
      %380 = vector.extract_strided_slice %341 {offsets = [0, 16], sizes = [8, 8], strides = [1, 1]} : vector<8x32xbf16> to vector<8x8xbf16>
      %381 = vector.extract_strided_slice %342 {offsets = [0, 16], sizes = [8, 8], strides = [1, 1]} : vector<8x32xbf16> to vector<8x8xbf16>
      %cst_141 = arith.constant dense<0.000000e+00> : vector<8x8xf32>
      %382 = tpu.matmul %380, %381, %cst_141 {dimension_numbers = #tpu.dot_dimension_numbers<[1], [1], [0], [0], [0, 0, 1, 0], [], []>} : vector<8x8xbf16>, vector<8x8xbf16>, vector<8x8xf32> -> vector<8x8xf32>
      %383 = vector.broadcast %28 : vector<1x8xf32> to vector<8x8xf32>
      %384 = arith.addf %382, %383 : vector<8x8xf32>
      %cst_142 = arith.constant dense<0xFF800000> : vector<8xf32>
      %385 = vector.multi_reduction <maximumf>, %384, %cst_142 [1] : vector<8x8xf32> to vector<8xf32>
      %386 = vector.shape_cast %385 : vector<8xf32> to vector<8x1xf32>
      %387 = vector.broadcast %386 : vector<8x1xf32> to vector<8x8xf32>
      %388 = arith.subf %384, %387 : vector<8x8xf32>
      %389 = math.exp %388 : vector<8x8xf32>
      %cst_143 = arith.constant dense<0.000000e+00> : vector<8xf32>
      %390 = vector.multi_reduction <add>, %389, %cst_143 [1] : vector<8x8xf32> to vector<8xf32>
      %391 = vector.shape_cast %390 : vector<8xf32> to vector<8x1xf32>
      %392 = tpu.reciprocal %391 : vector<8x1xf32> -> vector<8x1xf32>
      %393 = vector.broadcast %392 : vector<8x1xf32> to vector<8x8xf32>
      %394 = arith.mulf %389, %393 : vector<8x8xf32>
      %395 = arith.truncf %394 : vector<8x8xf32> to vector<8x8xbf16>
      %396 = vector.extract_strided_slice %343 {offsets = [0, 16], sizes = [8, 8], strides = [1, 1]} : vector<8x32xbf16> to vector<8x8xbf16>
      %cst_144 = arith.constant dense<0.000000e+00> : vector<8x8xf32>
      %397 = tpu.matmul %395, %396, %cst_144 {dimension_numbers = #tpu.dot_dimension_numbers<[1], [0], [0], [1], [0, 0, 1, 1], [], []>} : vector<8x8xbf16>, vector<8x8xbf16>, vector<8x8xf32> -> vector<8x8xf32>
      %398 = vector.extract_strided_slice %341 {offsets = [0, 24], sizes = [8, 8], strides = [1, 1]} : vector<8x32xbf16> to vector<8x8xbf16>
      %399 = vector.extract_strided_slice %342 {offsets = [0, 24], sizes = [8, 8], strides = [1, 1]} : vector<8x32xbf16> to vector<8x8xbf16>
      %cst_145 = arith.constant dense<0.000000e+00> : vector<8x8xf32>
      %400 = tpu.matmul %398, %399, %cst_145 {dimension_numbers = #tpu.dot_dimension_numbers<[1], [1], [0], [0], [0, 0, 1, 0], [], []>} : vector<8x8xbf16>, vector<8x8xbf16>, vector<8x8xf32> -> vector<8x8xf32>
      %401 = vector.broadcast %28 : vector<1x8xf32> to vector<8x8xf32>
      %402 = arith.addf %400, %401 : vector<8x8xf32>
      %cst_146 = arith.constant dense<0xFF800000> : vector<8xf32>
      %403 = vector.multi_reduction <maximumf>, %402, %cst_146 [1] : vector<8x8xf32> to vector<8xf32>
      %404 = vector.shape_cast %403 : vector<8xf32> to vector<8x1xf32>
      %405 = vector.broadcast %404 : vector<8x1xf32> to vector<8x8xf32>
      %406 = arith.subf %402, %405 : vector<8x8xf32>
      %407 = math.exp %406 : vector<8x8xf32>
      %cst_147 = arith.constant dense<0.000000e+00> : vector<8xf32>
      %408 = vector.multi_reduction <add>, %407, %cst_147 [1] : vector<8x8xf32> to vector<8xf32>
      %409 = vector.shape_cast %408 : vector<8xf32> to vector<8x1xf32>
      %410 = tpu.reciprocal %409 : vector<8x1xf32> -> vector<8x1xf32>
      %411 = vector.broadcast %410 : vector<8x1xf32> to vector<8x8xf32>
      %412 = arith.mulf %407, %411 : vector<8x8xf32>
      %413 = arith.truncf %412 : vector<8x8xf32> to vector<8x8xbf16>
      %414 = vector.extract_strided_slice %343 {offsets = [0, 24], sizes = [8, 8], strides = [1, 1]} : vector<8x32xbf16> to vector<8x8xbf16>
      %cst_148 = arith.constant dense<0.000000e+00> : vector<8x8xf32>
      %415 = tpu.matmul %413, %414, %cst_148 {dimension_numbers = #tpu.dot_dimension_numbers<[1], [0], [0], [1], [0, 0, 1, 1], [], []>} : vector<8x8xbf16>, vector<8x8xbf16>, vector<8x8xf32> -> vector<8x8xf32>
      %416 = tpu.concatenate %361, %379, %397, %415 in 1 : vector<8x8xf32>, vector<8x8xf32>, vector<8x8xf32>, vector<8x8xf32> -> vector<8x32xf32>
      %417 = arith.truncf %416 : vector<8x32xf32> to vector<8x32xbf16>
      %cst_149 = arith.constant dense<0.000000e+00> : vector<8x32xf32>
      %418 = tpu.matmul %417, %340, %cst_149 {dimension_numbers = #tpu.dot_dimension_numbers<[1], [0], [0], [1], [0, 0, 1, 1], [], []>} : vector<8x32xbf16>, vector<32x32xbf16>, vector<8x32xf32> -> vector<8x32xf32>
      %c0_150 = arith.constant 0 : index
      %c0_151 = arith.constant 0 : index
      %419 = vector.load %arg29[%c0_150, %c0_151] : memref<1x32xf32, #tpu.memory_space<vmem>>, vector<1x32xf32>
      %420 = vector.broadcast %419 : vector<1x32xf32> to vector<8x32xf32>
      %421 = arith.addf %418, %420 : vector<8x32xf32>
      %422 = arith.addf %325, %421 : vector<8x32xf32>
      %423 = vector.extract_strided_slice %213 {offsets = [2, 0], sizes = [1, 32], strides = [1, 1]} : vector<8x32xf32> to vector<1x32xf32>
      %424 = vector.extract_strided_slice %213 {offsets = [3, 0], sizes = [1, 32], strides = [1, 1]} : vector<8x32xf32> to vector<1x32xf32>
      %cst_152 = arith.constant dense<0.000000e+00> : vector<8xf32>
      %425 = vector.multi_reduction <add>, %422, %cst_152 [1] : vector<8x32xf32> to vector<8xf32>
      %426 = vector.shape_cast %425 : vector<8xf32> to vector<8x1xf32>
      %cst_153 = arith.constant 3.200000e+01 : f32
      %427 = vector.broadcast %cst_153 : f32 to vector<8x1xf32>
      %428 = arith.divf %426, %427 : vector<8x1xf32>
      %429 = vector.broadcast %428 : vector<8x1xf32> to vector<8x32xf32>
      %430 = arith.subf %422, %429 : vector<8x32xf32>
      %431 = arith.mulf %430, %430 : vector<8x32xf32>
      %cst_154 = arith.constant dense<0.000000e+00> : vector<8xf32>
      %432 = vector.multi_reduction <add>, %431, %cst_154 [1] : vector<8x32xf32> to vector<8xf32>
      %433 = vector.shape_cast %432 : vector<8xf32> to vector<8x1xf32>
      %cst_155 = arith.constant 3.200000e+01 : f32
      %434 = vector.broadcast %cst_155 : f32 to vector<8x1xf32>
      %435 = arith.divf %433, %434 : vector<8x1xf32>
      %436 = vector.broadcast %428 : vector<8x1xf32> to vector<8x32xf32>
      %437 = arith.subf %422, %436 : vector<8x32xf32>
      %cst_156 = arith.constant 9.99999974E-6 : f32
      %438 = vector.broadcast %cst_156 : f32 to vector<8x1xf32>
      %439 = arith.addf %435, %438 : vector<8x1xf32>
      %440 = math.rsqrt %439 : vector<8x1xf32>
      %441 = vector.broadcast %440 : vector<8x1xf32> to vector<8x32xf32>
      %442 = arith.mulf %437, %441 : vector<8x32xf32>
      %443 = vector.broadcast %423 : vector<1x32xf32> to vector<8x32xf32>
      %444 = arith.mulf %442, %443 : vector<8x32xf32>
      %445 = vector.broadcast %424 : vector<1x32xf32> to vector<8x32xf32>
      %446 = arith.addf %444, %445 : vector<8x32xf32>
      %c0_157 = arith.constant 0 : index
      %c0_158 = arith.constant 0 : index
      %447 = vector.load %arg30[%c0_157, %c0_158] : memref<32x64xbf16, #tpu.memory_space<vmem>>, vector<32x64xbf16>
      %448 = arith.truncf %446 : vector<8x32xf32> to vector<8x32xbf16>
      %cst_159 = arith.constant dense<0.000000e+00> : vector<8x64xf32>
      %449 = tpu.matmul %448, %447, %cst_159 {dimension_numbers = #tpu.dot_dimension_numbers<[1], [0], [0], [1], [0, 0, 1, 1], [], []>} : vector<8x32xbf16>, vector<32x64xbf16>, vector<8x64xf32> -> vector<8x64xf32>
      %c0_160 = arith.constant 0 : index
      %c0_161 = arith.constant 0 : index
      %450 = vector.load %arg31[%c0_160, %c0_161] : memref<1x64xf32, #tpu.memory_space<vmem>>, vector<1x64xf32>
      %451 = vector.broadcast %450 : vector<1x64xf32> to vector<8x64xf32>
      %452 = arith.addf %449, %451 : vector<8x64xf32>
      %cst_162 = arith.constant 0.000000e+00 : f32
      %453 = vector.broadcast %cst_162 : f32 to vector<8x64xf32>
      %454 = arith.maximumf %452, %453 : vector<8x64xf32>
      %c0_163 = arith.constant 0 : index
      %c0_164 = arith.constant 0 : index
      %455 = vector.load %arg32[%c0_163, %c0_164] : memref<64x32xbf16, #tpu.memory_space<vmem>>, vector<64x32xbf16>
      %456 = arith.truncf %454 : vector<8x64xf32> to vector<8x64xbf16>
      %cst_165 = arith.constant dense<0.000000e+00> : vector<8x32xf32>
      %457 = tpu.matmul %456, %455, %cst_165 {dimension_numbers = #tpu.dot_dimension_numbers<[1], [0], [0], [1], [0, 0, 1, 1], [], []>} : vector<8x64xbf16>, vector<64x32xbf16>, vector<8x32xf32> -> vector<8x32xf32>
      %c0_166 = arith.constant 0 : index
      %c0_167 = arith.constant 0 : index
      %458 = vector.load %arg33[%c0_166, %c0_167] : memref<1x32xf32, #tpu.memory_space<vmem>>, vector<1x32xf32>
      %459 = vector.broadcast %458 : vector<1x32xf32> to vector<8x32xf32>
      %460 = arith.addf %457, %459 : vector<8x32xf32>
      %461 = arith.addf %446, %460 : vector<8x32xf32>
      %462 = vector.extract_strided_slice %213 {offsets = [4, 0], sizes = [1, 32], strides = [1, 1]} : vector<8x32xf32> to vector<1x32xf32>
      %463 = vector.extract_strided_slice %213 {offsets = [5, 0], sizes = [1, 32], strides = [1, 1]} : vector<8x32xf32> to vector<1x32xf32>
      %cst_168 = arith.constant dense<0.000000e+00> : vector<8xf32>
      %464 = vector.multi_reduction <add>, %461, %cst_168 [1] : vector<8x32xf32> to vector<8xf32>
      %465 = vector.shape_cast %464 : vector<8xf32> to vector<8x1xf32>
      %cst_169 = arith.constant 3.200000e+01 : f32
      %466 = vector.broadcast %cst_169 : f32 to vector<8x1xf32>
      %467 = arith.divf %465, %466 : vector<8x1xf32>
      %468 = vector.broadcast %467 : vector<8x1xf32> to vector<8x32xf32>
      %469 = arith.subf %461, %468 : vector<8x32xf32>
      %470 = arith.mulf %469, %469 : vector<8x32xf32>
      %cst_170 = arith.constant dense<0.000000e+00> : vector<8xf32>
      %471 = vector.multi_reduction <add>, %470, %cst_170 [1] : vector<8x32xf32> to vector<8xf32>
      %472 = vector.shape_cast %471 : vector<8xf32> to vector<8x1xf32>
      %cst_171 = arith.constant 3.200000e+01 : f32
      %473 = vector.broadcast %cst_171 : f32 to vector<8x1xf32>
      %474 = arith.divf %472, %473 : vector<8x1xf32>
      %475 = vector.broadcast %467 : vector<8x1xf32> to vector<8x32xf32>
      %476 = arith.subf %461, %475 : vector<8x32xf32>
      %cst_172 = arith.constant 9.99999974E-6 : f32
      %477 = vector.broadcast %cst_172 : f32 to vector<8x1xf32>
      %478 = arith.addf %474, %477 : vector<8x1xf32>
      %479 = math.rsqrt %478 : vector<8x1xf32>
      %480 = vector.broadcast %479 : vector<8x1xf32> to vector<8x32xf32>
      %481 = arith.mulf %476, %480 : vector<8x32xf32>
      %482 = vector.broadcast %462 : vector<1x32xf32> to vector<8x32xf32>
      %483 = arith.mulf %481, %482 : vector<8x32xf32>
      %484 = vector.broadcast %463 : vector<1x32xf32> to vector<8x32xf32>
      %485 = arith.addf %483, %484 : vector<8x32xf32>
      %486 = vector.extract_strided_slice %213 {offsets = [6, 0], sizes = [1, 32], strides = [1, 1]} : vector<8x32xf32> to vector<1x32xf32>
      %487 = vector.extract_strided_slice %213 {offsets = [7, 0], sizes = [1, 32], strides = [1, 1]} : vector<8x32xf32> to vector<1x32xf32>
      %cst_173 = arith.constant dense<0.000000e+00> : vector<8xf32>
      %488 = vector.multi_reduction <add>, %485, %cst_173 [1] : vector<8x32xf32> to vector<8xf32>
      %489 = vector.shape_cast %488 : vector<8xf32> to vector<8x1xf32>
      %cst_174 = arith.constant 3.200000e+01 : f32
      %490 = vector.broadcast %cst_174 : f32 to vector<8x1xf32>
      %491 = arith.divf %489, %490 : vector<8x1xf32>
      %492 = vector.broadcast %491 : vector<8x1xf32> to vector<8x32xf32>
      %493 = arith.subf %485, %492 : vector<8x32xf32>
      %494 = arith.mulf %493, %493 : vector<8x32xf32>
      %cst_175 = arith.constant dense<0.000000e+00> : vector<8xf32>
      %495 = vector.multi_reduction <add>, %494, %cst_175 [1] : vector<8x32xf32> to vector<8xf32>
      %496 = vector.shape_cast %495 : vector<8xf32> to vector<8x1xf32>
      %cst_176 = arith.constant 3.200000e+01 : f32
      %497 = vector.broadcast %cst_176 : f32 to vector<8x1xf32>
      %498 = arith.divf %496, %497 : vector<8x1xf32>
      %499 = vector.broadcast %491 : vector<8x1xf32> to vector<8x32xf32>
      %500 = arith.subf %485, %499 : vector<8x32xf32>
      %cst_177 = arith.constant 9.99999974E-6 : f32
      %501 = vector.broadcast %cst_177 : f32 to vector<8x1xf32>
      %502 = arith.addf %498, %501 : vector<8x1xf32>
      %503 = math.rsqrt %502 : vector<8x1xf32>
      %504 = vector.broadcast %503 : vector<8x1xf32> to vector<8x32xf32>
      %505 = arith.mulf %500, %504 : vector<8x32xf32>
      %506 = vector.broadcast %486 : vector<1x32xf32> to vector<8x32xf32>
      %507 = arith.mulf %505, %506 : vector<8x32xf32>
      %508 = vector.broadcast %487 : vector<1x32xf32> to vector<8x32xf32>
      %509 = arith.addf %507, %508 : vector<8x32xf32>
      %c0_178 = arith.constant 0 : index
      %c0_179 = arith.constant 0 : index
      %510 = vector.load %arg38[%c0_178, %c0_179] : memref<8x32xf32, #tpu.memory_space<vmem>>, vector<8x32xf32>
      tpu.vector_store %arg38[%c0_178, %c0_179], %509 {strides = array<i32>} : memref<8x32xf32, #tpu.memory_space<vmem>>, vector<8x32xf32>,
    } else {
    }
    %c0 = arith.constant 0 : index
    %c0_1 = arith.constant 0 : index
    %3 = vector.load %arg38[%c0, %c0_1] : memref<8x32xf32, #tpu.memory_space<vmem>>, vector<8x32xf32>
    %c0_2 = arith.constant 0 : index
    %c0_3 = arith.constant 0 : index
    %4 = vector.load %arg35[%c0_2, %c0_3] : memref<32x128xbf16, #tpu.memory_space<vmem>>, vector<32x128xbf16>
    %5 = arith.truncf %3 : vector<8x32xf32> to vector<8x32xbf16>
    %cst = arith.constant dense<0.000000e+00> : vector<8x128xf32>
    %6 = tpu.matmul %5, %4, %cst {dimension_numbers = #tpu.dot_dimension_numbers<[1], [0], [0], [1], [0, 0, 1, 1], [], []>} : vector<8x32xbf16>, vector<32x128xbf16>, vector<8x128xf32> -> vector<8x128xf32>
    %c0_4 = arith.constant 0 : index
    %c0_5 = arith.constant 0 : index
    %7 = vector.load %arg36[%c0_4, %c0_5] : memref<1x128xf32, #tpu.memory_space<vmem>>, vector<1x128xf32>
    %8 = vector.broadcast %7 : vector<1x128xf32> to vector<8x128xf32>
    %9 = arith.addf %6, %8 : vector<8x128xf32>
    %c0_6 = arith.constant 0 : index
    %c0_7 = arith.constant 0 : index
    %c0_8 = arith.constant 0 : index
    %10 = vector.load %arg37[%c0_6, %c0_7, %c0_8] : memref<1x8x128xf32, #tpu.memory_space<vmem>>, vector<1x8x128xf32>
    %11 = vector.shape_cast %10 : vector<1x8x128xf32> to vector<8x128xf32>
    %12 = vector.shape_cast %9 : vector<8x128xf32> to vector<1x8x128xf32>
    tpu.vector_store %arg37[%c0_6, %c0_7, %c0_8], %12 {strides = array<i32>} : memref<1x8x128xf32, #tpu.memory_space<vmem>>, vector<1x8x128xf32>,
    return
  }
  func.func @transform_0(%arg0: i32, %arg1: i32) -> (i32, i32, i32) {
    %c0_i32 = arith.constant 0 : i32
    %c0_i32_0 = arith.constant 0 : i32
    %c0_i32_1 = arith.constant 0 : i32
    return %arg0, %c0_i32, %c0_i32_0 : i32, i32, i32
  }
  func.func @transform_1(%arg0: i32, %arg1: i32) -> (i32, i32, i32) {
    %c0_i32 = arith.constant 0 : i32
    %c0_i32_0 = arith.constant 0 : i32
    %c0_i32_1 = arith.constant 0 : i32
    return %arg0, %c0_i32, %c0_i32_0 : i32, i32, i32
  }
  func.func @transform_2(%arg0: i32, %arg1: i32) -> (i32, i32) {
    %c0_i32 = arith.constant 0 : i32
    %c0_i32_0 = arith.constant 0 : i32
    %c0_i32_1 = arith.constant 0 : i32
    return %c0_i32, %c0_i32_0 : i32, i32
  }
  func.func @transform_3(%arg0: i32, %arg1: i32) -> (i32, i32) {
    %c0_i32 = arith.constant 0 : i32
    %c0_i32_0 = arith.constant 0 : i32
    %c0_i32_1 = arith.constant 0 : i32
    return %c0_i32, %c0_i32_0 : i32, i32
  }
  func.func @transform_4(%arg0: i32, %arg1: i32) -> (i32, i32) {
    %c0_i32 = arith.constant 0 : i32
    %c0_i32_0 = arith.constant 0 : i32
    %c0_i32_1 = arith.constant 0 : i32
    return %c0_i32, %c0_i32_0 : i32, i32
  }
  func.func @transform_5(%arg0: i32, %arg1: i32) -> (i32, i32) {
    %c0_i32 = arith.constant 0 : i32
    %c0_i32_0 = arith.constant 0 : i32
    %c0_i32_1 = arith.constant 0 : i32
    return %c0_i32, %c0_i32_0 : i32, i32
  }
  func.func @transform_6(%arg0: i32, %arg1: i32) -> (i32, i32, i32) {
    %c0_i32 = arith.constant 0 : i32
    %c0_i32_0 = arith.constant 0 : i32
    %c0_i32_1 = arith.constant 0 : i32
    return %arg0, %c0_i32, %c0_i32_0 : i32, i32, i32
  }
  func.func @transform_7(%arg0: i32, %arg1: i32) -> (i32, i32, i32) {
    %c0_i32 = arith.constant 0 : i32
    %c0_i32_0 = arith.constant 0 : i32
    %c0_i32_1 = arith.constant 0 : i32
    return %arg0, %c0_i32, %c0_i32_0 : i32, i32, i32
  }
  func.func @transform_8(%arg0: i32, %arg1: i32) -> (i32, i32, i32) {
    %c0_i32 = arith.constant 0 : i32
    %c0_i32_0 = arith.constant 0 : i32
    %c0_i32_1 = arith.constant 0 : i32
    return %arg0, %c0_i32, %c0_i32_0 : i32, i32, i32
  }
  func.func @transform_9(%arg0: i32, %arg1: i32) -> (i32, i32) {
    %c0_i32 = arith.constant 0 : i32
    %c0_i32_0 = arith.constant 0 : i32
    %c0_i32_1 = arith.constant 0 : i32
    return %c0_i32, %c0_i32_0 : i32, i32
  }
  func.func @transform_10(%arg0: i32, %arg1: i32) -> (i32, i32) {
    %c0_i32 = arith.constant 0 : i32
    %c0_i32_0 = arith.constant 0 : i32
    %c0_i32_1 = arith.constant 0 : i32
    return %c0_i32, %c0_i32_0 : i32, i32
  }
  func.func @transform_11(%arg0: i32, %arg1: i32) -> (i32, i32) {
    %c0_i32 = arith.constant 0 : i32
    %c0_i32_0 = arith.constant 0 : i32
    %c0_i32_1 = arith.constant 0 : i32
    return %c0_i32, %c0_i32_0 : i32, i32
  }
  func.func @transform_12(%arg0: i32, %arg1: i32) -> (i32, i32) {
    %c0_i32 = arith.constant 0 : i32
    %c0_i32_0 = arith.constant 0 : i32
    %c0_i32_1 = arith.constant 0 : i32
    return %c0_i32, %c0_i32_0 : i32, i32
  }
  func.func @transform_13(%arg0: i32, %arg1: i32) -> (i32, i32) {
    %c0_i32 = arith.constant 0 : i32
    %c0_i32_0 = arith.constant 0 : i32
    %c0_i32_1 = arith.constant 0 : i32
    return %c0_i32, %c0_i32_0 : i32, i32
  }
  func.func @transform_14(%arg0: i32, %arg1: i32) -> (i32, i32) {
    %c0_i32 = arith.constant 0 : i32
    %c0_i32_0 = arith.constant 0 : i32
    %c0_i32_1 = arith.constant 0 : i32
    return %c0_i32, %c0_i32_0 : i32, i32
  }
  func.func @transform_15(%arg0: i32, %arg1: i32) -> (i32, i32) {
    %c0_i32 = arith.constant 0 : i32
    %c0_i32_0 = arith.constant 0 : i32
    %c0_i32_1 = arith.constant 0 : i32
    return %c0_i32, %c0_i32_0 : i32, i32
  }
  func.func @transform_16(%arg0: i32, %arg1: i32) -> (i32, i32) {
    %c0_i32 = arith.constant 0 : i32
    %c0_i32_0 = arith.constant 0 : i32
    %c0_i32_1 = arith.constant 0 : i32
    return %c0_i32, %c0_i32_0 : i32, i32
  }
  func.func @transform_17(%arg0: i32, %arg1: i32) -> (i32, i32) {
    %c0_i32 = arith.constant 0 : i32
    %c0_i32_0 = arith.constant 0 : i32
    %c0_i32_1 = arith.constant 0 : i32
    return %c0_i32, %c0_i32_0 : i32, i32
  }
  func.func @transform_18(%arg0: i32, %arg1: i32) -> (i32, i32) {
    %c0_i32 = arith.constant 0 : i32
    %c0_i32_0 = arith.constant 0 : i32
    %c0_i32_1 = arith.constant 0 : i32
    return %c0_i32, %c0_i32_0 : i32, i32
  }
  func.func @transform_19(%arg0: i32, %arg1: i32) -> (i32, i32) {
    %c0_i32 = arith.constant 0 : i32
    %c0_i32_0 = arith.constant 0 : i32
    %c0_i32_1 = arith.constant 0 : i32
    return %c0_i32, %c0_i32_0 : i32, i32
  }
  func.func @transform_20(%arg0: i32, %arg1: i32) -> (i32, i32) {
    %c0_i32 = arith.constant 0 : i32
    %c0_i32_0 = arith.constant 0 : i32
    %c0_i32_1 = arith.constant 0 : i32
    return %c0_i32, %c0_i32_0 : i32, i32
  }
  func.func @transform_21(%arg0: i32, %arg1: i32) -> (i32, i32) {
    %c0_i32 = arith.constant 0 : i32
    %c0_i32_0 = arith.constant 0 : i32
    %c0_i32_1 = arith.constant 0 : i32
    return %c0_i32, %c0_i32_0 : i32, i32
  }
  func.func @transform_22(%arg0: i32, %arg1: i32) -> (i32, i32) {
    %c0_i32 = arith.constant 0 : i32
    %c0_i32_0 = arith.constant 0 : i32
    %c0_i32_1 = arith.constant 0 : i32
    return %c0_i32, %c0_i32_0 : i32, i32
  }
  func.func @transform_23(%arg0: i32, %arg1: i32) -> (i32, i32) {
    %c0_i32 = arith.constant 0 : i32
    %c0_i32_0 = arith.constant 0 : i32
    %c0_i32_1 = arith.constant 0 : i32
    return %c0_i32, %c0_i32_0 : i32, i32
  }
  func.func @transform_24(%arg0: i32, %arg1: i32) -> (i32, i32) {
    %c0_i32 = arith.constant 0 : i32
    %c0_i32_0 = arith.constant 0 : i32
    %c0_i32_1 = arith.constant 0 : i32
    return %c0_i32, %c0_i32_0 : i32, i32
  }
  func.func @transform_25(%arg0: i32, %arg1: i32) -> (i32, i32) {
    %c0_i32 = arith.constant 0 : i32
    %c0_i32_0 = arith.constant 0 : i32
    %c0_i32_1 = arith.constant 0 : i32
    return %c0_i32, %c0_i32_0 : i32, i32
  }
  func.func @transform_26(%arg0: i32, %arg1: i32) -> (i32, i32) {
    %c0_i32 = arith.constant 0 : i32
    %c0_i32_0 = arith.constant 0 : i32
    %c0_i32_1 = arith.constant 0 : i32
    return %c0_i32, %c0_i32_0 : i32, i32
  }
  func.func @transform_27(%arg0: i32, %arg1: i32) -> (i32, i32) {
    %c0_i32 = arith.constant 0 : i32
    %c0_i32_0 = arith.constant 0 : i32
    %c0_i32_1 = arith.constant 0 : i32
    return %c0_i32, %c0_i32_0 : i32, i32
  }
  func.func @transform_28(%arg0: i32, %arg1: i32) -> (i32, i32) {
    %c0_i32 = arith.constant 0 : i32
    %c0_i32_0 = arith.constant 0 : i32
    %c0_i32_1 = arith.constant 0 : i32
    return %c0_i32, %c0_i32_0 : i32, i32
  }
  func.func @transform_29(%arg0: i32, %arg1: i32) -> (i32, i32) {
    %c0_i32 = arith.constant 0 : i32
    %c0_i32_0 = arith.constant 0 : i32
    %c0_i32_1 = arith.constant 0 : i32
    return %c0_i32, %c0_i32_0 : i32, i32
  }
  func.func @transform_30(%arg0: i32, %arg1: i32) -> (i32, i32) {
    %c0_i32 = arith.constant 0 : i32
    %c0_i32_0 = arith.constant 0 : i32
    %c0_i32_1 = arith.constant 0 : i32
    return %c0_i32, %c0_i32_0 : i32, i32
  }
  func.func @transform_31(%arg0: i32, %arg1: i32) -> (i32, i32) {
    %c0_i32 = arith.constant 0 : i32
    %c0_i32_0 = arith.constant 0 : i32
    %c0_i32_1 = arith.constant 0 : i32
    return %c0_i32, %c0_i32_0 : i32, i32
  }
  func.func @transform_32(%arg0: i32, %arg1: i32) -> (i32, i32) {
    %c0_i32 = arith.constant 0 : i32
    %c0_i32_0 = arith.constant 0 : i32
    %c0_i32_1 = arith.constant 0 : i32
    return %c0_i32, %c0_i32_0 : i32, i32
  }
  func.func @transform_33(%arg0: i32, %arg1: i32) -> (i32, i32) {
    %c0_i32 = arith.constant 0 : i32
    %c0_i32_0 = arith.constant 0 : i32
    return %c0_i32, %arg1 : i32, i32
  }
  func.func @transform_34(%arg0: i32, %arg1: i32) -> (i32, i32) {
    %c0_i32 = arith.constant 0 : i32
    %c0_i32_0 = arith.constant 0 : i32
    return %c0_i32, %arg1 : i32, i32
  }
  func.func @transform_35(%arg0: i32, %arg1: i32) -> (i32, i32, i32) {
    %c0_i32 = arith.constant 0 : i32
    %c0_i32_0 = arith.constant 0 : i32
    return %arg0, %c0_i32, %arg1 : i32, i32, i32
  }
}

</mosaic_0001>

<llo_original>
// kernel: translator_forward.1
$region0: #{translator_forward.1}
  #allocation0 [shape = 'u32[]', space=smem, size = 0x4, offset = 0x4, fixed_abs, tag = 'smem constant byte address 0x4 - core index']
  #allocation1 [shape = 'u32[72,128]{1,0:T(1,128)}', space=vmem, size = 0x9000, scoped, tag = 'internal scratch']
  #allocation2 [shape = 'f32[8,32]{1,0:T(8,128)}', space=vmem, size = 0x1000, scoped, tag = 'scratch operand']
  %s0 = inlined_call_operand.smem [shape: u32[36], index: -1, kind: input, shape index: {}]
  %s1 = sld [smem:[%s0]]
  %s2 = scalar_lea.smem %s0, 1
  %s3 = sld [smem:[%s2]]
  %s4 = scalar_lea.smem %s0, 2
  %s5 = sld [smem:[%s4]]
  %s6 = scalar_lea.smem %s0, 3
  %s7 = sld [smem:[%s6]]
  %s8 = scalar_lea.smem %s0, 4
  %s9 = sld [smem:[%s8]]
  %s10 = scalar_lea.smem %s0, 5
  %s11 = sld [smem:[%s10]]
  %s12 = scalar_lea.smem %s0, 6
  %s13 = sld [smem:[%s12]]
  %s14 = scalar_lea.smem %s0, 7
  %s15 = sld [smem:[%s14]]
  %s16 = scalar_lea.smem %s0, 8
  %s17 = sld [smem:[%s16]]
  %s18 = scalar_lea.smem %s0, 9
  %s19 = sld [smem:[%s18]]
  %s20 = scalar_lea.smem %s0, 10
  %s21 = sld [smem:[%s20]]
  %s22 = scalar_lea.smem %s0, 11
  %s23 = sld [smem:[%s22]]
  %s24 = scalar_lea.smem %s0, 12
  %s25 = sld [smem:[%s24]]
  %s26 = scalar_lea.smem %s0, 13
  %s27 = sld [smem:[%s26]]
  %s28 = scalar_lea.smem %s0, 14
  %s29 = sld [smem:[%s28]]
  %s30 = scalar_lea.smem %s0, 15
  %s31 = sld [smem:[%s30]]
  %s32 = scalar_lea.smem %s0, 16
  %s33 = sld [smem:[%s32]]
  %s34 = scalar_lea.smem %s0, 17
  %s35 = sld [smem:[%s34]]
  %s36 = scalar_lea.smem %s0, 18
  %s37 = sld [smem:[%s36]]
  %s38 = scalar_lea.smem %s0, 19
  %s39 = sld [smem:[%s38]]
  %s40 = scalar_lea.smem %s0, 20
  %s41 = sld [smem:[%s40]]
  %s42 = scalar_lea.smem %s0, 21
  %s43 = sld [smem:[%s42]]
  %s44 = scalar_lea.smem %s0, 22
  %s45 = sld [smem:[%s44]]
  %s46 = scalar_lea.smem %s0, 23
  %s47 = sld [smem:[%s46]]
  %s48 = scalar_lea.smem %s0, 24
  %s49 = sld [smem:[%s48]]
  %s50 = scalar_lea.smem %s0, 25
  %s51 = sld [smem:[%s50]]
  %s52 = scalar_lea.smem %s0, 26
  %s53 = sld [smem:[%s52]]
  %s54 = scalar_lea.smem %s0, 27
  %s55 = sld [smem:[%s54]]
  %s56 = scalar_lea.smem %s0, 28
  %s57 = sld [smem:[%s56]]
  %s58 = scalar_lea.smem %s0, 29
  %s59 = sld [smem:[%s58]]
  %s60 = scalar_lea.smem %s0, 30
  %s61 = sld [smem:[%s60]]
  %s62 = scalar_lea.smem %s0, 31
  %s63 = sld [smem:[%s62]]
  %s64 = scalar_lea.smem %s0, 32
  %s65 = sld [smem:[%s64]]
  %s66 = scalar_lea.smem %s0, 33
  %s67 = sld [smem:[%s66]]
  %s68 = scalar_lea.smem %s0, 34
  %s69 = sld [smem:[%s68]]
  %s70 = scalar_lea.smem %s0, 35
  %s71 = sld [smem:[%s70]]
  %s72 = sld [smem:[#allocation0]]
  $region177: #{translator_forward.1} parent=0
    _
  %s74 = ssub.s32 1, %s72
  %s75 = scalar_select 0, %s74, %s72
  $region1: #{translator_forward.1} parent=0
    #allocation3 [shape = 'u8[8192]{0}', space=vmem, size = 0x2000, scoped, tag = 'output window, operand 0']
    #allocation4 [shape = 's32[2]{0}', space=sflag, size = 0x8, scoped, tag = 'scoped memory for translator_forward.1']
    %76 = vsyncpa [#allocation4], 0
    %s77 = scalar_lea.sflag [#allocation4], 1
    %78 = vsyncpa %s77, 0
    loop: start=0, step=1, limit=4
    $region2: #{translator_forward.1} parent=1 // loop_pre_header
      _
    $region3: #{translator_forward.1} parent=1 // loop_header
      %s80 = sphi 0, %s84
      %p81 = scmp.ge.s32.totalorder %s80, 4
      %s87 = sphi 0, %s99
      %s88 = sphi 0, %s95
      %s89 = sphi 0, %s87
      %s90 = sphi 0, %s88
      %s91 = sphi 0, %s89
      %s92 = sphi 0, %s90
      %s102 = sphi 0, %s104
      %s105 = sphi 0, %s102
      %s106 = sphi 0, %s105
      %s122 = sphi 0, %s106
      %s128 = sphi 0, %s130
      %s131 = sphi 0, %s128
      %s132 = sphi 0, %s131
      %s148 = sphi 0, %s132
      %s152 = sphi 0, %s152
      %s154 = sphi 0, %s152
      %s155 = sphi 0, %s154
      %s169 = sphi 0, %s155
      %s173 = sphi 0, %s173
      %s175 = sphi 0, %s173
      %s176 = sphi 0, %s175
      %s190 = sphi 0, %s176
      %s194 = sphi 0, %s194
      %s196 = sphi 0, %s194
      %s197 = sphi 0, %s196
      %s211 = sphi 0, %s197
      %s215 = sphi 0, %s215
      %s217 = sphi 0, %s215
      %s218 = sphi 0, %s217
      %s232 = sphi 0, %s218
      %s238 = sphi 0, %s240
      %s241 = sphi 0, %s238
      %s242 = sphi 0, %s241
      %s258 = sphi 0, %s242
      %s264 = sphi 0, %s266
      %s267 = sphi 0, %s264
      %s268 = sphi 0, %s267
      %s284 = sphi 0, %s268
      %s290 = sphi 0, %s292
      %s293 = sphi 0, %s290
      %s294 = sphi 0, %s293
      %s310 = sphi 0, %s294
      %s314 = sphi 0, %s314
      %s316 = sphi 0, %s314
      %s317 = sphi 0, %s316
      %s331 = sphi 0, %s317
      %s335 = sphi 0, %s335
      %s337 = sphi 0, %s335
      %s338 = sphi 0, %s337
      %s352 = sphi 0, %s338
      %s356 = sphi 0, %s356
      %s358 = sphi 0, %s356
      %s359 = sphi 0, %s358
      %s373 = sphi 0, %s359
      %s377 = sphi 0, %s377
      %s379 = sphi 0, %s377
      %s380 = sphi 0, %s379
      %s394 = sphi 0, %s380
      %s398 = sphi 0, %s398
      %s400 = sphi 0, %s398
      %s401 = sphi 0, %s400
      %s415 = sphi 0, %s401
      %s419 = sphi 0, %s419
      %s421 = sphi 0, %s419
      %s422 = sphi 0, %s421
      %s436 = sphi 0, %s422
      %s440 = sphi 0, %s440
      %s442 = sphi 0, %s440
      %s443 = sphi 0, %s442
      %s457 = sphi 0, %s443
      %s461 = sphi 0, %s461
      %s463 = sphi 0, %s461
      %s464 = sphi 0, %s463
      %s478 = sphi 0, %s464
      %s482 = sphi 0, %s482
      %s484 = sphi 0, %s482
      %s485 = sphi 0, %s484
      %s499 = sphi 0, %s485
      %s503 = sphi 0, %s503
      %s505 = sphi 0, %s503
      %s506 = sphi 0, %s505
      %s520 = sphi 0, %s506
      %s524 = sphi 0, %s524
      %s526 = sphi 0, %s524
      %s527 = sphi 0, %s526
      %s541 = sphi 0, %s527
      %s545 = sphi 0, %s545
      %s547 = sphi 0, %s545
      %s548 = sphi 0, %s547
      %s562 = sphi 0, %s548
      %s566 = sphi 0, %s566
      %s568 = sphi 0, %s566
      %s569 = sphi 0, %s568
      %s583 = sphi 0, %s569
      %s587 = sphi 0, %s587
      %s589 = sphi 0, %s587
      %s590 = sphi 0, %s589
      %s604 = sphi 0, %s590
      %s608 = sphi 0, %s608
      %s610 = sphi 0, %s608
      %s611 = sphi 0, %s610
      %s625 = sphi 0, %s611
      %s629 = sphi 0, %s629
      %s631 = sphi 0, %s629
      %s632 = sphi 0, %s631
      %s646 = sphi 0, %s632
      %s650 = sphi 0, %s650
      %s652 = sphi 0, %s650
      %s653 = sphi 0, %s652
      %s667 = sphi 0, %s653
      %s671 = sphi 0, %s671
      %s673 = sphi 0, %s671
      %s674 = sphi 0, %s673
      %s688 = sphi 0, %s674
      %s692 = sphi 0, %s692
      %s694 = sphi 0, %s692
      %s695 = sphi 0, %s694
      %s709 = sphi 0, %s695
      %s713 = sphi 0, %s713
      %s715 = sphi 0, %s713
      %s716 = sphi 0, %s715
      %s730 = sphi 0, %s716
      %s734 = sphi 0, %s734
      %s736 = sphi 0, %s734
      %s737 = sphi 0, %s736
      %s751 = sphi 0, %s737
      %s755 = sphi 0, %s755
      %s757 = sphi 0, %s755
      %s758 = sphi 0, %s757
      %s772 = sphi 0, %s758
      %s776 = sphi 0, %s776
      %s778 = sphi 0, %s776
      %s779 = sphi 0, %s778
      %s793 = sphi 0, %s779
      %s797 = sphi 0, %s797
      %s799 = sphi 0, %s797
      %s800 = sphi 0, %s799
      %s814 = sphi 0, %s800
      %s820 = sphi 0, %s822
      %s823 = sphi 0, %s820
      %s824 = sphi 0, %s823
      %s840 = sphi 0, %s824
      %s846 = sphi 0, %s848
      %s849 = sphi 0, %s846
      %s850 = sphi 0, %s849
      %s866 = sphi 0, %s850
      %s874 = sphi 0, %s876
      %s877 = sphi 0, %s874
      %s878 = sphi 0, %s877
      %s894 = sphi 0, %s878
    $region4: #{translator_forward.1} parent=1 // loop_header_branch
      %83 = sbr.rel (%p81) target = $region8
    $region5: #{translator_forward.1} parent=1 // loop_body
      %s85 = ssub.s32 %s80, 1
      %s86 = ssub.s32 %s80, 2
      %s93 = sadd.s32 1, %s88
      %p94 = scmp.ge.s32.totalorder %s93, 1
      %s95 = scalar_select %p94, 0, %s93
      %s96 = sadd.s32 1, %s87
      %s97 = scalar_select %p94, %s96, %s87
      %p98 = scmp.ge.s32.totalorder %s97, 2
      %s99 = scalar_select %p98, 0, %s97
      %s100 = ssub.s32 %s87, %s99
      %p101 = scmp.eq.s32.totalorder %s100, 0
      %s103 = sadd.s32 %s102, 1
      %s104 = scalar_select %p101, %s102, %s103
      %p107 = pneg %p101
      %p108 = scmp.eq.s32.totalorder %s80, 1
      %p109 = por %p107, %p108
      %p110 = scmp.ne.s32.totalorder %s102, %s105
      %p111 = scmp.eq.s32.totalorder %s80, 0
      %p112 = por %p110, %p111
      %p113 = scmp.ne.s32.totalorder %s102, %s105
      %p114 = scmp.eq.s32.totalorder %s85, 1
      %p115 = por %p113, %p114
      %p116 = scmp.ne.s32.totalorder %s105, %s106
      %p117 = scmp.eq.s32.totalorder %s85, 0
      %p118 = por %p116, %p117
      %p119 = scmp.ne.s32.totalorder %s105, %s106
      %p120 = scmp.eq.s32.totalorder %s86, 1
      %p121 = por %p119, %p120
      %p123 = scmp.ne.s32.totalorder %s106, %s122
      %p124 = scmp.eq.s32.totalorder %s86, 0
      %p125 = por %p123, %p124
      %s126 = ssub.s32 %s87, %s99
      %p127 = scmp.eq.s32.totalorder %s126, 0
      %s129 = sadd.s32 %s128, 1
      %s130 = scalar_select %p127, %s128, %s129
      %p133 = pneg %p127
      %p134 = scmp.eq.s32.totalorder %s80, 1
      %p135 = por %p133, %p134
      %p136 = scmp.ne.s32.totalorder %s128, %s131
      %p137 = scmp.eq.s32.totalorder %s80, 0
      %p138 = por %p136, %p137
      %p139 = scmp.ne.s32.totalorder %s128, %s131
      %p140 = scmp.eq.s32.totalorder %s85, 1
      %p141 = por %p139, %p140
      %p142 = scmp.ne.s32.totalorder %s131, %s132
      %p143 = scmp.eq.s32.totalorder %s85, 0
      %p144 = por %p142, %p143
      %p145 = scmp.ne.s32.totalorder %s131, %s132
      %p146 = scmp.eq.s32.totalorder %s86, 1
      %p147 = por %p145, %p146
      %p149 = scmp.ne.s32.totalorder %s132, %s148
      %p150 = scmp.eq.s32.totalorder %s86, 0
      %p151 = por %p149, %p150
      %s153 = sadd.s32 %s152, 1
      %p156 = scmp.eq.s32.totalorder %s80, 1
      %p157 = scmp.ne.s32.totalorder %s152, %s154
      %p158 = scmp.eq.s32.totalorder %s80, 0
      %p159 = por %p157, %p158
      %p160 = scmp.ne.s32.totalorder %s152, %s154
      %p161 = scmp.eq.s32.totalorder %s85, 1
      %p162 = por %p160, %p161
      %p163 = scmp.ne.s32.totalorder %s154, %s155
      %p164 = scmp.eq.s32.totalorder %s85, 0
      %p165 = por %p163, %p164
      %p166 = scmp.ne.s32.totalorder %s154, %s155
      %p167 = scmp.eq.s32.totalorder %s86, 1
      %p168 = por %p166, %p167
      %p170 = scmp.ne.s32.totalorder %s155, %s169
      %p171 = scmp.eq.s32.totalorder %s86, 0
      %p172 = por %p170, %p171
      %s174 = sadd.s32 %s173, 1
      %p177 = scmp.eq.s32.totalorder %s80, 1
      %p178 = scmp.ne.s32.totalorder %s173, %s175
      %p179 = scmp.eq.s32.totalorder %s80, 0
      %p180 = por %p178, %p179
      %p181 = scmp.ne.s32.totalorder %s173, %s175
      %p182 = scmp.eq.s32.totalorder %s85, 1
      %p183 = por %p181, %p182
      %p184 = scmp.ne.s32.totalorder %s175, %s176
      %p185 = scmp.eq.s32.totalorder %s85, 0
      %p186 = por %p184, %p185
      %p187 = scmp.ne.s32.totalorder %s175, %s176
      %p188 = scmp.eq.s32.totalorder %s86, 1
      %p189 = por %p187, %p188
      %p191 = scmp.ne.s32.totalorder %s176, %s190
      %p192 = scmp.eq.s32.totalorder %s86, 0
      %p193 = por %p191, %p192
      %s195 = sadd.s32 %s194, 1
      %p198 = scmp.eq.s32.totalorder %s80, 1
      %p199 = scmp.ne.s32.totalorder %s194, %s196
      %p200 = scmp.eq.s32.totalorder %s80, 0
      %p201 = por %p199, %p200
      %p202 = scmp.ne.s32.totalorder %s194, %s196
      %p203 = scmp.eq.s32.totalorder %s85, 1
      %p204 = por %p202, %p203
      %p205 = scmp.ne.s32.totalorder %s196, %s197
      %p206 = scmp.eq.s32.totalorder %s85, 0
      %p207 = por %p205, %p206
      %p208 = scmp.ne.s32.totalorder %s196, %s197
      %p209 = scmp.eq.s32.totalorder %s86, 1
      %p210 = por %p208, %p209
      %p212 = scmp.ne.s32.totalorder %s197, %s211
      %p213 = scmp.eq.s32.totalorder %s86, 0
      %p214 = por %p212, %p213
      %s216 = sadd.s32 %s215, 1
      %p219 = scmp.eq.s32.totalorder %s80, 1
      %p220 = scmp.ne.s32.totalorder %s215, %s217
      %p221 = scmp.eq.s32.totalorder %s80, 0
      %p222 = por %p220, %p221
      %p223 = scmp.ne.s32.totalorder %s215, %s217
      %p224 = scmp.eq.s32.totalorder %s85, 1
      %p225 = por %p223, %p224
      %p226 = scmp.ne.s32.totalorder %s217, %s218
      %p227 = scmp.eq.s32.totalorder %s85, 0
      %p228 = por %p226, %p227
      %p229 = scmp.ne.s32.totalorder %s217, %s218
      %p230 = scmp.eq.s32.totalorder %s86, 1
      %p231 = por %p229, %p230
      %p233 = scmp.ne.s32.totalorder %s218, %s232
      %p234 = scmp.eq.s32.totalorder %s86, 0
      %p235 = por %p233, %p234
      %s236 = ssub.s32 %s87, %s99
      %p237 = scmp.eq.s32.totalorder %s236, 0
      %s239 = sadd.s32 %s238, 1
      %s240 = scalar_select %p237, %s238, %s239
      %p243 = pneg %p237
      %p244 = scmp.eq.s32.totalorder %s80, 1
      %p245 = por %p243, %p244
      %p246 = scmp.ne.s32.totalorder %s238, %s241
      %p247 = scmp.eq.s32.totalorder %s80, 0
      %p248 = por %p246, %p247
      %p249 = scmp.ne.s32.totalorder %s238, %s241
      %p250 = scmp.eq.s32.totalorder %s85, 1
      %p251 = por %p249, %p250
      %p252 = scmp.ne.s32.totalorder %s241, %s242
      %p253 = scmp.eq.s32.totalorder %s85, 0
      %p254 = por %p252, %p253
      %p255 = scmp.ne.s32.totalorder %s241, %s242
      %p256 = scmp.eq.s32.totalorder %s86, 1
      %p257 = por %p255, %p256
      %p259 = scmp.ne.s32.totalorder %s242, %s258
      %p260 = scmp.eq.s32.totalorder %s86, 0
      %p261 = por %p259, %p260
      %s262 = ssub.s32 %s87, %s99
      %p263 = scmp.eq.s32.totalorder %s262, 0
      %s265 = sadd.s32 %s264, 1
      %s266 = scalar_select %p263, %s264, %s265
      %p269 = pneg %p263
      %p270 = scmp.eq.s32.totalorder %s80, 1
      %p271 = por %p269, %p270
      %p272 = scmp.ne.s32.totalorder %s264, %s267
      %p273 = scmp.eq.s32.totalorder %s80, 0
      %p274 = por %p272, %p273
      %p275 = scmp.ne.s32.totalorder %s264, %s267
      %p276 = scmp.eq.s32.totalorder %s85, 1
      %p277 = por %p275, %p276
      %p278 = scmp.ne.s32.totalorder %s267, %s268
      %p279 = scmp.eq.s32.totalorder %s85, 0
      %p280 = por %p278, %p279
      %p281 = scmp.ne.s32.totalorder %s267, %s268
      %p282 = scmp.eq.s32.totalorder %s86, 1
      %p283 = por %p281, %p282
      %p285 = scmp.ne.s32.totalorder %s268, %s284
      %p286 = scmp.eq.s32.totalorder %s86, 0
      %p287 = por %p285, %p286
      %s288 = ssub.s32 %s87, %s99
      %p289 = scmp.eq.s32.totalorder %s288, 0
      %s291 = sadd.s32 %s290, 1
      %s292 = scalar_select %p289, %s290, %s291
      %p295 = pneg %p289
      %p296 = scmp.eq.s32.totalorder %s80, 1
      %p297 = por %p295, %p296
      %p298 = scmp.ne.s32.totalorder %s290, %s293
      %p299 = scmp.eq.s32.totalorder %s80, 0
      %p300 = por %p298, %p299
      %p301 = scmp.ne.s32.totalorder %s290, %s293
      %p302 = scmp.eq.s32.totalorder %s85, 1
      %p303 = por %p301, %p302
      %p304 = scmp.ne.s32.totalorder %s293, %s294
      %p305 = scmp.eq.s32.totalorder %s85, 0
      %p306 = por %p304, %p305
      %p307 = scmp.ne.s32.totalorder %s293, %s294
      %p308 = scmp.eq.s32.totalorder %s86, 1
      %p309 = por %p307, %p308
      %p311 = scmp.ne.s32.totalorder %s294, %s310
      %p312 = scmp.eq.s32.totalorder %s86, 0
      %p313 = por %p311, %p312
      %s315 = sadd.s32 %s314, 1
      %p318 = scmp.eq.s32.totalorder %s80, 1
      %p319 = scmp.ne.s32.totalorder %s314, %s316
      %p320 = scmp.eq.s32.totalorder %s80, 0
      %p321 = por %p319, %p320
      %p322 = scmp.ne.s32.totalorder %s314, %s316
      %p323 = scmp.eq.s32.totalorder %s85, 1
      %p324 = por %p322, %p323
      %p325 = scmp.ne.s32.totalorder %s316, %s317
      %p326 = scmp.eq.s32.totalorder %s85, 0
      %p327 = por %p325, %p326
      %p328 = scmp.ne.s32.totalorder %s316, %s317
      %p329 = scmp.eq.s32.totalorder %s86, 1
      %p330 = por %p328, %p329
      %p332 = scmp.ne.s32.totalorder %s317, %s331
      %p333 = scmp.eq.s32.totalorder %s86, 0
      %p334 = por %p332, %p333
      %s336 = sadd.s32 %s335, 1
      %p339 = scmp.eq.s32.totalorder %s80, 1
      %p340 = scmp.ne.s32.totalorder %s335, %s337
      %p341 = scmp.eq.s32.totalorder %s80, 0
      %p342 = por %p340, %p341
      %p343 = scmp.ne.s32.totalorder %s335, %s337
      %p344 = scmp.eq.s32.totalorder %s85, 1
      %p345 = por %p343, %p344
      %p346 = scmp.ne.s32.totalorder %s337, %s338
      %p347 = scmp.eq.s32.totalorder %s85, 0
      %p348 = por %p346, %p347
      %p349 = scmp.ne.s32.totalorder %s337, %s338
      %p350 = scmp.eq.s32.totalorder %s86, 1
      %p351 = por %p349, %p350
      %p353 = scmp.ne.s32.totalorder %s338, %s352
      %p354 = scmp.eq.s32.totalorder %s86, 0
      %p355 = por %p353, %p354
      %s357 = sadd.s32 %s356, 1
      %p360 = scmp.eq.s32.totalorder %s80, 1
      %p361 = scmp.ne.s32.totalorder %s356, %s358
      %p362 = scmp.eq.s32.totalorder %s80, 0
      %p363 = por %p361, %p362
      %p364 = scmp.ne.s32.totalorder %s356, %s358
      %p365 = scmp.eq.s32.totalorder %s85, 1
      %p366 = por %p364, %p365
      %p367 = scmp.ne.s32.totalorder %s358, %s359
      %p368 = scmp.eq.s32.totalorder %s85, 0
      %p369 = por %p367, %p368
      %p370 = scmp.ne.s32.totalorder %s358, %s359
      %p371 = scmp.eq.s32.totalorder %s86, 1
      %p372 = por %p370, %p371
      %p374 = scmp.ne.s32.totalorder %s359, %s373
      %p375 = scmp.eq.s32.totalorder %s86, 0
      %p376 = por %p374, %p375
      %s378 = sadd.s32 %s377, 1
      %p381 = scmp.eq.s32.totalorder %s80, 1
      %p382 = scmp.ne.s32.totalorder %s377, %s379
      %p383 = scmp.eq.s32.totalorder %s80, 0
      %p384 = por %p382, %p383
      %p385 = scmp.ne.s32.totalorder %s377, %s379
      %p386 = scmp.eq.s32.totalorder %s85, 1
      %p387 = por %p385, %p386
      %p388 = scmp.ne.s32.totalorder %s379, %s380
      %p389 = scmp.eq.s32.totalorder %s85, 0
      %p390 = por %p388, %p389
      %p391 = scmp.ne.s32.totalorder %s379, %s380
      %p392 = scmp.eq.s32.totalorder %s86, 1
      %p393 = por %p391, %p392
      %p395 = scmp.ne.s32.totalorder %s380, %s394
      %p396 = scmp.eq.s32.totalorder %s86, 0
      %p397 = por %p395, %p396
      %s399 = sadd.s32 %s398, 1
      %p402 = scmp.eq.s32.totalorder %s80, 1
      %p403 = scmp.ne.s32.totalorder %s398, %s400
      %p404 = scmp.eq.s32.totalorder %s80, 0
      %p405 = por %p403, %p404
      %p406 = scmp.ne.s32.totalorder %s398, %s400
      %p407 = scmp.eq.s32.totalorder %s85, 1
      %p408 = por %p406, %p407
      %p409 = scmp.ne.s32.totalorder %s400, %s401
      %p410 = scmp.eq.s32.totalorder %s85, 0
      %p411 = por %p409, %p410
      %p412 = scmp.ne.s32.totalorder %s400, %s401
      %p413 = scmp.eq.s32.totalorder %s86, 1
      %p414 = por %p412, %p413
      %p416 = scmp.ne.s32.totalorder %s401, %s415
      %p417 = scmp.eq.s32.totalorder %s86, 0
      %p418 = por %p416, %p417
      %s420 = sadd.s32 %s419, 1
      %p423 = scmp.eq.s32.totalorder %s80, 1
      %p424 = scmp.ne.s32.totalorder %s419, %s421
      %p425 = scmp.eq.s32.totalorder %s80, 0
      %p426 = por %p424, %p425
      %p427 = scmp.ne.s32.totalorder %s419, %s421
      %p428 = scmp.eq.s32.totalorder %s85, 1
      %p429 = por %p427, %p428
      %p430 = scmp.ne.s32.totalorder %s421, %s422
      %p431 = scmp.eq.s32.totalorder %s85, 0
      %p432 = por %p430, %p431
      %p433 = scmp.ne.s32.totalorder %s421, %s422
      %p434 = scmp.eq.s32.totalorder %s86, 1
      %p435 = por %p433, %p434
      %p437 = scmp.ne.s32.totalorder %s422, %s436
      %p438 = scmp.eq.s32.totalorder %s86, 0
      %p439 = por %p437, %p438
      %s441 = sadd.s32 %s440, 1
      %p444 = scmp.eq.s32.totalorder %s80, 1
      %p445 = scmp.ne.s32.totalorder %s440, %s442
      %p446 = scmp.eq.s32.totalorder %s80, 0
      %p447 = por %p445, %p446
      %p448 = scmp.ne.s32.totalorder %s440, %s442
      %p449 = scmp.eq.s32.totalorder %s85, 1
      %p450 = por %p448, %p449
      %p451 = scmp.ne.s32.totalorder %s442, %s443
      %p452 = scmp.eq.s32.totalorder %s85, 0
      %p453 = por %p451, %p452
      %p454 = scmp.ne.s32.totalorder %s442, %s443
      %p455 = scmp.eq.s32.totalorder %s86, 1
      %p456 = por %p454, %p455
      %p458 = scmp.ne.s32.totalorder %s443, %s457
      %p459 = scmp.eq.s32.totalorder %s86, 0
      %p460 = por %p458, %p459
      %s462 = sadd.s32 %s461, 1
      %p465 = scmp.eq.s32.totalorder %s80, 1
      %p466 = scmp.ne.s32.totalorder %s461, %s463
      %p467 = scmp.eq.s32.totalorder %s80, 0
      %p468 = por %p466, %p467
      %p469 = scmp.ne.s32.totalorder %s461, %s463
      %p470 = scmp.eq.s32.totalorder %s85, 1
      %p471 = por %p469, %p470
      %p472 = scmp.ne.s32.totalorder %s463, %s464
      %p473 = scmp.eq.s32.totalorder %s85, 0
      %p474 = por %p472, %p473
      %p475 = scmp.ne.s32.totalorder %s463, %s464
      %p476 = scmp.eq.s32.totalorder %s86, 1
      %p477 = por %p475, %p476
      %p479 = scmp.ne.s32.totalorder %s464, %s478
      %p480 = scmp.eq.s32.totalorder %s86, 0
      %p481 = por %p479, %p480
      %s483 = sadd.s32 %s482, 1
      %p486 = scmp.eq.s32.totalorder %s80, 1
      %p487 = scmp.ne.s32.totalorder %s482, %s484
      %p488 = scmp.eq.s32.totalorder %s80, 0
      %p489 = por %p487, %p488
      %p490 = scmp.ne.s32.totalorder %s482, %s484
      %p491 = scmp.eq.s32.totalorder %s85, 1
      %p492 = por %p490, %p491
      %p493 = scmp.ne.s32.totalorder %s484, %s485
      %p494 = scmp.eq.s32.totalorder %s85, 0
      %p495 = por %p493, %p494
      %p496 = scmp.ne.s32.totalorder %s484, %s485
      %p497 = scmp.eq.s32.totalorder %s86, 1
      %p498 = por %p496, %p497
      %p500 = scmp.ne.s32.totalorder %s485, %s499
      %p501 = scmp.eq.s32.totalorder %s86, 0
      %p502 = por %p500, %p501
      %s504 = sadd.s32 %s503, 1
      %p507 = scmp.eq.s32.totalorder %s80, 1
      %p508 = scmp.ne.s32.totalorder %s503, %s505
      %p509 = scmp.eq.s32.totalorder %s80, 0
      %p510 = por %p508, %p509
      %p511 = scmp.ne.s32.totalorder %s503, %s505
      %p512 = scmp.eq.s32.totalorder %s85, 1
      %p513 = por %p511, %p512
      %p514 = scmp.ne.s32.totalorder %s505, %s506
      %p515 = scmp.eq.s32.totalorder %s85, 0
      %p516 = por %p514, %p515
      %p517 = scmp.ne.s32.totalorder %s505, %s506
      %p518 = scmp.eq.s32.totalorder %s86, 1
      %p519 = por %p517, %p518
      %p521 = scmp.ne.s32.totalorder %s506, %s520
      %p522 = scmp.eq.s32.totalorder %s86, 0
      %p523 = por %p521, %p522
      %s525 = sadd.s32 %s524, 1
      %p528 = scmp.eq.s32.totalorder %s80, 1
      %p529 = scmp.ne.s32.totalorder %s524, %s526
      %p530 = scmp.eq.s32.totalorder %s80, 0
      %p531 = por %p529, %p530
      %p532 = scmp.ne.s32.totalorder %s524, %s526
      %p533 = scmp.eq.s32.totalorder %s85, 1
      %p534 = por %p532, %p533
      %p535 = scmp.ne.s32.totalorder %s526, %s527
      %p536 = scmp.eq.s32.totalorder %s85, 0
      %p537 = por %p535, %p536
      %p538 = scmp.ne.s32.totalorder %s526, %s527
      %p539 = scmp.eq.s32.totalorder %s86, 1
      %p540 = por %p538, %p539
      %p542 = scmp.ne.s32.totalorder %s527, %s541
      %p543 = scmp.eq.s32.totalorder %s86, 0
      %p544 = por %p542, %p543
      %s546 = sadd.s32 %s545, 1
      %p549 = scmp.eq.s32.totalorder %s80, 1
      %p550 = scmp.ne.s32.totalorder %s545, %s547
      %p551 = scmp.eq.s32.totalorder %s80, 0
      %p552 = por %p550, %p551
      %p553 = scmp.ne.s32.totalorder %s545, %s547
      %p554 = scmp.eq.s32.totalorder %s85, 1
      %p555 = por %p553, %p554
      %p556 = scmp.ne.s32.totalorder %s547, %s548
      %p557 = scmp.eq.s32.totalorder %s85, 0
      %p558 = por %p556, %p557
      %p559 = scmp.ne.s32.totalorder %s547, %s548
      %p560 = scmp.eq.s32.totalorder %s86, 1
      %p561 = por %p559, %p560
      %p563 = scmp.ne.s32.totalorder %s548, %s562
      %p564 = scmp.eq.s32.totalorder %s86, 0
      %p565 = por %p563, %p564
      %s567 = sadd.s32 %s566, 1
      %p570 = scmp.eq.s32.totalorder %s80, 1
      %p571 = scmp.ne.s32.totalorder %s566, %s568
      %p572 = scmp.eq.s32.totalorder %s80, 0
      %p573 = por %p571, %p572
      %p574 = scmp.ne.s32.totalorder %s566, %s568
      %p575 = scmp.eq.s32.totalorder %s85, 1
      %p576 = por %p574, %p575
      %p577 = scmp.ne.s32.totalorder %s568, %s569
      %p578 = scmp.eq.s32.totalorder %s85, 0
      %p579 = por %p577, %p578
      %p580 = scmp.ne.s32.totalorder %s568, %s569
      %p581 = scmp.eq.s32.totalorder %s86, 1
      %p582 = por %p580, %p581
      %p584 = scmp.ne.s32.totalorder %s569, %s583
      %p585 = scmp.eq.s32.totalorder %s86, 0
      %p586 = por %p584, %p585
      %s588 = sadd.s32 %s587, 1
      %p591 = scmp.eq.s32.totalorder %s80, 1
      %p592 = scmp.ne.s32.totalorder %s587, %s589
      %p593 = scmp.eq.s32.totalorder %s80, 0
      %p594 = por %p592, %p593
      %p595 = scmp.ne.s32.totalorder %s587, %s589
      %p596 = scmp.eq.s32.totalorder %s85, 1
      %p597 = por %p595, %p596
      %p598 = scmp.ne.s32.totalorder %s589, %s590
      %p599 = scmp.eq.s32.totalorder %s85, 0
      %p600 = por %p598, %p599
      %p601 = scmp.ne.s32.totalorder %s589, %s590
      %p602 = scmp.eq.s32.totalorder %s86, 1
      %p603 = por %p601, %p602
      %p605 = scmp.ne.s32.totalorder %s590, %s604
      %p606 = scmp.eq.s32.totalorder %s86, 0
      %p607 = por %p605, %p606
      %s609 = sadd.s32 %s608, 1
      %p612 = scmp.eq.s32.totalorder %s80, 1
      %p613 = scmp.ne.s32.totalorder %s608, %s610
      %p614 = scmp.eq.s32.totalorder %s80, 0
      %p615 = por %p613, %p614
      %p616 = scmp.ne.s32.totalorder %s608, %s610
      %p617 = scmp.eq.s32.totalorder %s85, 1
      %p618 = por %p616, %p617
      %p619 = scmp.ne.s32.totalorder %s610, %s611
      %p620 = scmp.eq.s32.totalorder %s85, 0
      %p621 = por %p619, %p620
      %p622 = scmp.ne.s32.totalorder %s610, %s611
      %p623 = scmp.eq.s32.totalorder %s86, 1
      %p624 = por %p622, %p623
      %p626 = scmp.ne.s32.totalorder %s611, %s625
      %p627 = scmp.eq.s32.totalorder %s86, 0
      %p628 = por %p626, %p627
      %s630 = sadd.s32 %s629, 1
      %p633 = scmp.eq.s32.totalorder %s80, 1
      %p634 = scmp.ne.s32.totalorder %s629, %s631
      %p635 = scmp.eq.s32.totalorder %s80, 0
      %p636 = por %p634, %p635
      %p637 = scmp.ne.s32.totalorder %s629, %s631
      %p638 = scmp.eq.s32.totalorder %s85, 1
      %p639 = por %p637, %p638
      %p640 = scmp.ne.s32.totalorder %s631, %s632
      %p641 = scmp.eq.s32.totalorder %s85, 0
      %p642 = por %p640, %p641
      %p643 = scmp.ne.s32.totalorder %s631, %s632
      %p644 = scmp.eq.s32.totalorder %s86, 1
      %p645 = por %p643, %p644
      %p647 = scmp.ne.s32.totalorder %s632, %s646
      %p648 = scmp.eq.s32.totalorder %s86, 0
      %p649 = por %p647, %p648
      %s651 = sadd.s32 %s650, 1
      %p654 = scmp.eq.s32.totalorder %s80, 1
      %p655 = scmp.ne.s32.totalorder %s650, %s652
      %p656 = scmp.eq.s32.totalorder %s80, 0
      %p657 = por %p655, %p656
      %p658 = scmp.ne.s32.totalorder %s650, %s652
      %p659 = scmp.eq.s32.totalorder %s85, 1
      %p660 = por %p658, %p659
      %p661 = scmp.ne.s32.totalorder %s652, %s653
      %p662 = scmp.eq.s32.totalorder %s85, 0
      %p663 = por %p661, %p662
      %p664 = scmp.ne.s32.totalorder %s652, %s653
      %p665 = scmp.eq.s32.totalorder %s86, 1
      %p666 = por %p664, %p665
      %p668 = scmp.ne.s32.totalorder %s653, %s667
      %p669 = scmp.eq.s32.totalorder %s86, 0
      %p670 = por %p668, %p669
      %s672 = sadd.s32 %s671, 1
      %p675 = scmp.eq.s32.totalorder %s80, 1
      %p676 = scmp.ne.s32.totalorder %s671, %s673
      %p677 = scmp.eq.s32.totalorder %s80, 0
      %p678 = por %p676, %p677
      %p679 = scmp.ne.s32.totalorder %s671, %s673
      %p680 = scmp.eq.s32.totalorder %s85, 1
      %p681 = por %p679, %p680
      %p682 = scmp.ne.s32.totalorder %s673, %s674
      %p683 = scmp.eq.s32.totalorder %s85, 0
      %p684 = por %p682, %p683
      %p685 = scmp.ne.s32.totalorder %s673, %s674
      %p686 = scmp.eq.s32.totalorder %s86, 1
      %p687 = por %p685, %p686
      %p689 = scmp.ne.s32.totalorder %s674, %s688
      %p690 = scmp.eq.s32.totalorder %s86, 0
      %p691 = por %p689, %p690
      %s693 = sadd.s32 %s692, 1
      %p696 = scmp.eq.s32.totalorder %s80, 1
      %p697 = scmp.ne.s32.totalorder %s692, %s694
      %p698 = scmp.eq.s32.totalorder %s80, 0
      %p699 = por %p697, %p698
      %p700 = scmp.ne.s32.totalorder %s692, %s694
      %p701 = scmp.eq.s32.totalorder %s85, 1
      %p702 = por %p700, %p701
      %p703 = scmp.ne.s32.totalorder %s694, %s695
      %p704 = scmp.eq.s32.totalorder %s85, 0
      %p705 = por %p703, %p704
      %p706 = scmp.ne.s32.totalorder %s694, %s695
      %p707 = scmp.eq.s32.totalorder %s86, 1
      %p708 = por %p706, %p707
      %p710 = scmp.ne.s32.totalorder %s695, %s709
      %p711 = scmp.eq.s32.totalorder %s86, 0
      %p712 = por %p710, %p711
      %s714 = sadd.s32 %s713, 1
      %p717 = scmp.eq.s32.totalorder %s80, 1
      %p718 = scmp.ne.s32.totalorder %s713, %s715
      %p719 = scmp.eq.s32.totalorder %s80, 0
      %p720 = por %p718, %p719
      %p721 = scmp.ne.s32.totalorder %s713, %s715
      %p722 = scmp.eq.s32.totalorder %s85, 1
      %p723 = por %p721, %p722
      %p724 = scmp.ne.s32.totalorder %s715, %s716
      %p725 = scmp.eq.s32.totalorder %s85, 0
      %p726 = por %p724, %p725
      %p727 = scmp.ne.s32.totalorder %s715, %s716
      %p728 = scmp.eq.s32.totalorder %s86, 1
      %p729 = por %p727, %p728
      %p731 = scmp.ne.s32.totalorder %s716, %s730
      %p732 = scmp.eq.s32.totalorder %s86, 0
      %p733 = por %p731, %p732
      %s735 = sadd.s32 %s734, 1
      %p738 = scmp.eq.s32.totalorder %s80, 1
      %p739 = scmp.ne.s32.totalorder %s734, %s736
      %p740 = scmp.eq.s32.totalorder %s80, 0
      %p741 = por %p739, %p740
      %p742 = scmp.ne.s32.totalorder %s734, %s736
      %p743 = scmp.eq.s32.totalorder %s85, 1
      %p744 = por %p742, %p743
      %p745 = scmp.ne.s32.totalorder %s736, %s737
      %p746 = scmp.eq.s32.totalorder %s85, 0
      %p747 = por %p745, %p746
      %p748 = scmp.ne.s32.totalorder %s736, %s737
      %p749 = scmp.eq.s32.totalorder %s86, 1
      %p750 = por %p748, %p749
      %p752 = scmp.ne.s32.totalorder %s737, %s751
      %p753 = scmp.eq.s32.totalorder %s86, 0
      %p754 = por %p752, %p753
      %s756 = sadd.s32 %s755, 1
      %p759 = scmp.eq.s32.totalorder %s80, 1
      %p760 = scmp.ne.s32.totalorder %s755, %s757
      %p761 = scmp.eq.s32.totalorder %s80, 0
      %p762 = por %p760, %p761
      %p763 = scmp.ne.s32.totalorder %s755, %s757
      %p764 = scmp.eq.s32.totalorder %s85, 1
      %p765 = por %p763, %p764
      %p766 = scmp.ne.s32.totalorder %s757, %s758
      %p767 = scmp.eq.s32.totalorder %s85, 0
      %p768 = por %p766, %p767
      %p769 = scmp.ne.s32.totalorder %s757, %s758
      %p770 = scmp.eq.s32.totalorder %s86, 1
      %p771 = por %p769, %p770
      %p773 = scmp.ne.s32.totalorder %s758, %s772
      %p774 = scmp.eq.s32.totalorder %s86, 0
      %p775 = por %p773, %p774
      %s777 = sadd.s32 %s776, 1
      %p780 = scmp.eq.s32.totalorder %s80, 1
      %p781 = scmp.ne.s32.totalorder %s776, %s778
      %p782 = scmp.eq.s32.totalorder %s80, 0
      %p783 = por %p781, %p782
      %p784 = scmp.ne.s32.totalorder %s776, %s778
      %p785 = scmp.eq.s32.totalorder %s85, 1
      %p786 = por %p784, %p785
      %p787 = scmp.ne.s32.totalorder %s778, %s779
      %p788 = scmp.eq.s32.totalorder %s85, 0
      %p789 = por %p787, %p788
      %p790 = scmp.ne.s32.totalorder %s778, %s779
      %p791 = scmp.eq.s32.totalorder %s86, 1
      %p792 = por %p790, %p791
      %p794 = scmp.ne.s32.totalorder %s779, %s793
      %p795 = scmp.eq.s32.totalorder %s86, 0
      %p796 = por %p794, %p795
      %s798 = sadd.s32 %s797, 1
      %p801 = scmp.eq.s32.totalorder %s80, 1
      %p802 = scmp.ne.s32.totalorder %s797, %s799
      %p803 = scmp.eq.s32.totalorder %s80, 0
      %p804 = por %p802, %p803
      %p805 = scmp.ne.s32.totalorder %s797, %s799
      %p806 = scmp.eq.s32.totalorder %s85, 1
      %p807 = por %p805, %p806
      %p808 = scmp.ne.s32.totalorder %s799, %s800
      %p809 = scmp.eq.s32.totalorder %s85, 0
      %p810 = por %p808, %p809
      %p811 = scmp.ne.s32.totalorder %s799, %s800
      %p812 = scmp.eq.s32.totalorder %s86, 1
      %p813 = por %p811, %p812
      %p815 = scmp.ne.s32.totalorder %s800, %s814
      %p816 = scmp.eq.s32.totalorder %s86, 0
      %p817 = por %p815, %p816
      %s818 = ssub.s32 %s88, %s95
      %p819 = scmp.eq.s32.totalorder %s818, 0
      %s821 = sadd.s32 %s820, 1
      %s822 = scalar_select %p819, %s820, %s821
      %p825 = pneg %p819
      %p826 = scmp.eq.s32.totalorder %s80, 1
      %p827 = por %p825, %p826
      %p828 = scmp.ne.s32.totalorder %s820, %s823
      %p829 = scmp.eq.s32.totalorder %s80, 0
      %p830 = por %p828, %p829
      %p831 = scmp.ne.s32.totalorder %s820, %s823
      %p832 = scmp.eq.s32.totalorder %s85, 1
      %p833 = por %p831, %p832
      %p834 = scmp.ne.s32.totalorder %s823, %s824
      %p835 = scmp.eq.s32.totalorder %s85, 0
      %p836 = por %p834, %p835
      %p837 = scmp.ne.s32.totalorder %s823, %s824
      %p838 = scmp.eq.s32.totalorder %s86, 1
      %p839 = por %p837, %p838
      %p841 = scmp.ne.s32.totalorder %s824, %s840
      %p842 = scmp.eq.s32.totalorder %s86, 0
      %p843 = por %p841, %p842
      %s844 = ssub.s32 %s88, %s95
      %p845 = scmp.eq.s32.totalorder %s844, 0
      %s847 = sadd.s32 %s846, 1
      %s848 = scalar_select %p845, %s846, %s847
      %p851 = pneg %p845
      %p852 = scmp.eq.s32.totalorder %s80, 1
      %p853 = por %p851, %p852
      %p854 = scmp.ne.s32.totalorder %s846, %s849
      %p855 = scmp.eq.s32.totalorder %s80, 0
      %p856 = por %p854, %p855
      %p857 = scmp.ne.s32.totalorder %s846, %s849
      %p858 = scmp.eq.s32.totalorder %s85, 1
      %p859 = por %p857, %p858
      %p860 = scmp.ne.s32.totalorder %s849, %s850
      %p861 = scmp.eq.s32.totalorder %s85, 0
      %p862 = por %p860, %p861
      %p863 = scmp.ne.s32.totalorder %s849, %s850
      %p864 = scmp.eq.s32.totalorder %s86, 1
      %p865 = por %p863, %p864
      %p867 = scmp.ne.s32.totalorder %s850, %s866
      %p868 = scmp.eq.s32.totalorder %s86, 0
      %p869 = por %p867, %p868
      %s870 = ssub.s32 %s87, %s99
      %s871 = ssub.s32 %s88, %s95
      %s872 = sor.u32 %s870, %s871
      %p873 = scmp.eq.s32.totalorder %s872, 0
      %s875 = sadd.s32 %s874, 1
      %s876 = scalar_select %p873, %s874, %s875
      %p879 = pneg %p873
      %p880 = scmp.eq.s32.totalorder %s80, 1
      %p881 = por %p879, %p880
      %p882 = scmp.ne.s32.totalorder %s874, %s877
      %p883 = scmp.eq.s32.totalorder %s80, 0
      %p884 = por %p882, %p883
      %p885 = scmp.ne.s32.totalorder %s874, %s877
      %p886 = scmp.eq.s32.totalorder %s85, 1
      %p887 = por %p885, %p886
      %p888 = scmp.ne.s32.totalorder %s877, %s878
      %p889 = scmp.eq.s32.totalorder %s85, 0
      %p890 = por %p888, %p889
      %p891 = scmp.ne.s32.totalorder %s877, %s878
      %p892 = scmp.eq.s32.totalorder %s86, 1
      %p893 = por %p891, %p892
      %p895 = scmp.ne.s32.totalorder %s878, %s894
      %p896 = scmp.eq.s32.totalorder %s86, 0
      %p897 = por %p895, %p896
      %p898 = scmp.le.s32.totalorder 1, %s80
      %p899 = scmp.lt.s32.totalorder %s80, 3
      %p900 = pnand %p898, %p899
      %p901 = pneg %p900
      // Predicated region
      $region9: #{translator_forward.1} parent=5 // pred_check
        _
      $region10: #{translator_forward.1} parent=5 // pred_check_branch
        %903 = sbr.rel (%p900) target = $region12
      $region11: #{translator_forward.1} parent=5 // pred_region
        %s904 = ssub.s32 %s80, 1
        // Predicated region
        $region13: #{translator_forward.1} parent=11 // pred_check
          %p905 = pneg %p165
        $region14: #{translator_forward.1} parent=11 // pred_check_branch
          %907 = sbr.rel (%p905) target = $region16
        $region15: #{translator_forward.1} parent=11 // pred_region
          _
        $region16: #{translator_forward.1} parent=11 // pred_fallthru
          _
        // Predicated region
        $region17: #{translator_forward.1} parent=11 // pred_check
          %p908 = pneg %p186
        $region18: #{translator_forward.1} parent=11 // pred_check_branch
          %910 = sbr.rel (%p908) target = $region20
        $region19: #{translator_forward.1} parent=11 // pred_region
          _
        $region20: #{translator_forward.1} parent=11 // pred_fallthru
          _
        // Predicated region
        $region21: #{translator_forward.1} parent=11 // pred_check
          %p911 = pneg %p207
        $region22: #{translator_forward.1} parent=11 // pred_check_branch
          %913 = sbr.rel (%p911) target = $region24
        $region23: #{translator_forward.1} parent=11 // pred_region
          _
        $region24: #{translator_forward.1} parent=11 // pred_fallthru
          _
        // Predicated region
        $region25: #{translator_forward.1} parent=11 // pred_check
          %p914 = pneg %p228
        $region26: #{translator_forward.1} parent=11 // pred_check_branch
          %916 = sbr.rel (%p914) target = $region28
        $region27: #{translator_forward.1} parent=11 // pred_region
          _
        $region28: #{translator_forward.1} parent=11 // pred_fallthru
          _
        // Predicated region
        $region29: #{translator_forward.1} parent=11 // pred_check
          %p917 = pneg %p327
        $region30: #{translator_forward.1} parent=11 // pred_check_branch
          %919 = sbr.rel (%p917) target = $region32
        $region31: #{translator_forward.1} parent=11 // pred_region
          _
        $region32: #{translator_forward.1} parent=11 // pred_fallthru
          _
        // Predicated region
        $region33: #{translator_forward.1} parent=11 // pred_check
          %p920 = pneg %p348
        $region34: #{translator_forward.1} parent=11 // pred_check_branch
          %922 = sbr.rel (%p920) target = $region36
        $region35: #{translator_forward.1} parent=11 // pred_region
          _
        $region36: #{translator_forward.1} parent=11 // pred_fallthru
          _
        // Predicated region
        $region37: #{translator_forward.1} parent=11 // pred_check
          %p923 = pneg %p369
        $region38: #{translator_forward.1} parent=11 // pred_check_branch
          %925 = sbr.rel (%p923) target = $region40
        $region39: #{translator_forward.1} parent=11 // pred_region
          _
        $region40: #{translator_forward.1} parent=11 // pred_fallthru
          _
        // Predicated region
        $region41: #{translator_forward.1} parent=11 // pred_check
          %p926 = pneg %p390
        $region42: #{translator_forward.1} parent=11 // pred_check_branch
          %928 = sbr.rel (%p926) target = $region44
        $region43: #{translator_forward.1} parent=11 // pred_region
          _
        $region44: #{translator_forward.1} parent=11 // pred_fallthru
          _
        // Predicated region
        $region45: #{translator_forward.1} parent=11 // pred_check
          %p929 = pneg %p411
        $region46: #{translator_forward.1} parent=11 // pred_check_branch
          %931 = sbr.rel (%p929) target = $region48
        $region47: #{translator_forward.1} parent=11 // pred_region
          _
        $region48: #{translator_forward.1} parent=11 // pred_fallthru
          _
        // Predicated region
        $region49: #{translator_forward.1} parent=11 // pred_check
          %p932 = pneg %p432
        $region50: #{translator_forward.1} parent=11 // pred_check_branch
          %934 = sbr.rel (%p932) target = $region52
        $region51: #{translator_forward.1} parent=11 // pred_region
          _
        $region52: #{translator_forward.1} parent=11 // pred_fallthru
          _
        // Predicated region
        $region53: #{translator_forward.1} parent=11 // pred_check
          %p935 = pneg %p453
        $region54: #{translator_forward.1} parent=11 // pred_check_branch
          %937 = sbr.rel (%p935) target = $region56
        $region55: #{translator_forward.1} parent=11 // pred_region
          _
        $region56: #{translator_forward.1} parent=11 // pred_fallthru
          _
        // Predicated region
        $region57: #{translator_forward.1} parent=11 // pred_check
          %p938 = pneg %p474
        $region58: #{translator_forward.1} parent=11 // pred_check_branch
          %940 = sbr.rel (%p938) target = $region60
        $region59: #{translator_forward.1} parent=11 // pred_region
          _
        $region60: #{translator_forward.1} parent=11 // pred_fallthru
          _
        // Predicated region
        $region61: #{translator_forward.1} parent=11 // pred_check
          %p941 = pneg %p495
        $region62: #{translator_forward.1} parent=11 // pred_check_branch
          %943 = sbr.rel (%p941) target = $region64
        $region63: #{translator_forward.1} parent=11 // pred_region
          _
        $region64: #{translator_forward.1} parent=11 // pred_fallthru
          _
        // Predicated region
        $region65: #{translator_forward.1} parent=11 // pred_check
          %p944 = pneg %p516
        $region66: #{translator_forward.1} parent=11 // pred_check_branch
          %946 = sbr.rel (%p944) target = $region68
        $region67: #{translator_forward.1} parent=11 // pred_region
          _
        $region68: #{translator_forward.1} parent=11 // pred_fallthru
          _
        // Predicated region
        $region69: #{translator_forward.1} parent=11 // pred_check
          %p947 = pneg %p537
        $region70: #{translator_forward.1} parent=11 // pred_check_branch
          %949 = sbr.rel (%p947) target = $region72
        $region71: #{translator_forward.1} parent=11 // pred_region
          _
        $region72: #{translator_forward.1} parent=11 // pred_fallthru
          _
        // Predicated region
        $region73: #{translator_forward.1} parent=11 // pred_check
          %p950 = pneg %p558
        $region74: #{translator_forward.1} parent=11 // pred_check_branch
          %952 = sbr.rel (%p950) target = $region76
        $region75: #{translator_forward.1} parent=11 // pred_region
          _
        $region76: #{translator_forward.1} parent=11 // pred_fallthru
          _
        // Predicated region
        $region77: #{translator_forward.1} parent=11 // pred_check
          %p953 = pneg %p579
        $region78: #{translator_forward.1} parent=11 // pred_check_branch
          %955 = sbr.rel (%p953) target = $region80
        $region79: #{translator_forward.1} parent=11 // pred_region
          _
        $region80: #{translator_forward.1} parent=11 // pred_fallthru
          _
        // Predicated region
        $region81: #{translator_forward.1} parent=11 // pred_check
          %p956 = pneg %p600
        $region82: #{translator_forward.1} parent=11 // pred_check_branch
          %958 = sbr.rel (%p956) target = $region84
        $region83: #{translator_forward.1} parent=11 // pred_region
          _
        $region84: #{translator_forward.1} parent=11 // pred_fallthru
          _
        // Predicated region
        $region85: #{translator_forward.1} parent=11 // pred_check
          %p959 = pneg %p621
        $region86: #{translator_forward.1} parent=11 // pred_check_branch
          %961 = sbr.rel (%p959) target = $region88
        $region87: #{translator_forward.1} parent=11 // pred_region
          _
        $region88: #{translator_forward.1} parent=11 // pred_fallthru
          _
        // Predicated region
        $region89: #{translator_forward.1} parent=11 // pred_check
          %p962 = pneg %p642
        $region90: #{translator_forward.1} parent=11 // pred_check_branch
          %964 = sbr.rel (%p962) target = $region92
        $region91: #{translator_forward.1} parent=11 // pred_region
          _
        $region92: #{translator_forward.1} parent=11 // pred_fallthru
          _
        // Predicated region
        $region93: #{translator_forward.1} parent=11 // pred_check
          %p965 = pneg %p663
        $region94: #{translator_forward.1} parent=11 // pred_check_branch
          %967 = sbr.rel (%p965) target = $region96
        $region95: #{translator_forward.1} parent=11 // pred_region
          _
        $region96: #{translator_forward.1} parent=11 // pred_fallthru
          _
        // Predicated region
        $region97: #{translator_forward.1} parent=11 // pred_check
          %p968 = pneg %p684
        $region98: #{translator_forward.1} parent=11 // pred_check_branch
          %970 = sbr.rel (%p968) target = $region100
        $region99: #{translator_forward.1} parent=11 // pred_region
          _
        $region100: #{translator_forward.1} parent=11 // pred_fallthru
          _
        // Predicated region
        $region101: #{translator_forward.1} parent=11 // pred_check
          %p971 = pneg %p705
        $region102: #{translator_forward.1} parent=11 // pred_check_branch
          %973 = sbr.rel (%p971) target = $region104
        $region103: #{translator_forward.1} parent=11 // pred_region
          _
        $region104: #{translator_forward.1} parent=11 // pred_fallthru
          _
        // Predicated region
        $region105: #{translator_forward.1} parent=11 // pred_check
          %p974 = pneg %p726
        $region106: #{translator_forward.1} parent=11 // pred_check_branch
          %976 = sbr.rel (%p974) target = $region108
        $region107: #{translator_forward.1} parent=11 // pred_region
          _
        $region108: #{translator_forward.1} parent=11 // pred_fallthru
          _
        // Predicated region
        $region109: #{translator_forward.1} parent=11 // pred_check
          %p977 = pneg %p747
        $region110: #{translator_forward.1} parent=11 // pred_check_branch
          %979 = sbr.rel (%p977) target = $region112
        $region111: #{translator_forward.1} parent=11 // pred_region
          _
        $region112: #{translator_forward.1} parent=11 // pred_fallthru
          _
        // Predicated region
        $region113: #{translator_forward.1} parent=11 // pred_check
          %p980 = pneg %p768
        $region114: #{translator_forward.1} parent=11 // pred_check_branch
          %982 = sbr.rel (%p980) target = $region116
        $region115: #{translator_forward.1} parent=11 // pred_region
          _
        $region116: #{translator_forward.1} parent=11 // pred_fallthru
          _
        // Predicated region
        $region117: #{translator_forward.1} parent=11 // pred_check
          %p983 = pneg %p789
        $region118: #{translator_forward.1} parent=11 // pred_check_branch
          %985 = sbr.rel (%p983) target = $region120
        $region119: #{translator_forward.1} parent=11 // pred_region
          _
        $region120: #{translator_forward.1} parent=11 // pred_fallthru
          _
        // Predicated region
        $region121: #{translator_forward.1} parent=11 // pred_check
          %p986 = pneg %p810
        $region122: #{translator_forward.1} parent=11 // pred_check_branch
          %988 = sbr.rel (%p986) target = $region124
        $region123: #{translator_forward.1} parent=11 // pred_region
          _
        $region124: #{translator_forward.1} parent=11 // pred_fallthru
          _
        // Predicated region
        $region125: #{translator_forward.1} parent=11 // pred_check
          %p989 = pneg %p836
        $region126: #{translator_forward.1} parent=11 // pred_check_branch
          %991 = sbr.rel (%p989) target = $region128
        $region127: #{translator_forward.1} parent=11 // pred_region
          %p992 = scmp.lt.s32.totalorder %s90, 0
          %s993 = scalar_select %p992, %s90, 0
          %s994 = smul.addr %s993, 4
          %s995 = scalar_lea.vmem %s67, %s994
        $region128: #{translator_forward.1} parent=11 // pred_fallthru
          _
        // Predicated region
        $region129: #{translator_forward.1} parent=11 // pred_check
          %p996 = pneg %p862
        $region130: #{translator_forward.1} parent=11 // pred_check_branch
          %998 = sbr.rel (%p996) target = $region132
        $region131: #{translator_forward.1} parent=11 // pred_region
          %p999 = scmp.lt.s32.totalorder %s90, 0
          %s1000 = scalar_select %p999, %s90, 0
          %s1001 = scalar_lea.vmem %s69, %s1000
        $region132: #{translator_forward.1} parent=11 // pred_fallthru
          _
      $region12: #{translator_forward.1} parent=5 // pred_fallthru
        _
      %p1002 = scmp.lt.s32.totalorder %s80, 2
      // Predicated region
      $region133: #{translator_forward.1} parent=5 // pred_check
        %p1003 = pneg %p1002
      $region134: #{translator_forward.1} parent=5 // pred_check_branch
        %1005 = sbr.rel (%p1003) target = $region136
      $region135: #{translator_forward.1} parent=5 // pred_region
        // Predicated region
        $region137: #{translator_forward.1} parent=135 // pred_check
          %p1006 = pneg %p112
        $region138: #{translator_forward.1} parent=135 // pred_check_branch
          %1008 = sbr.rel (%p1006) target = $region140
        $region139: #{translator_forward.1} parent=135 // pred_region
          %p1009 = scmp.lt.s32.totalorder %s87, 1
          %s1010 = scalar_select %p1009, %s87, 1
          %s1011 = smul.addr %s1010, 8
          %s1012 = scalar_lea.vmem %s1, %s1011
        $region140: #{translator_forward.1} parent=135 // pred_fallthru
          _
        // Predicated region
        $region141: #{translator_forward.1} parent=135 // pred_check
          %p1013 = pneg %p138
        $region142: #{translator_forward.1} parent=135 // pred_check_branch
          %1015 = sbr.rel (%p1013) target = $region144
        $region143: #{translator_forward.1} parent=135 // pred_region
          %p1016 = scmp.lt.s32.totalorder %s87, 1
          %s1017 = scalar_select %p1016, %s87, 1
          %s1018 = smul.addr %s1017, 8
          %s1019 = scalar_lea.vmem %s3, %s1018
        $region144: #{translator_forward.1} parent=135 // pred_fallthru
          _
        // Predicated region
        $region145: #{translator_forward.1} parent=135 // pred_check
          %p1020 = pneg %p248
        $region146: #{translator_forward.1} parent=135 // pred_check_branch
          %1022 = sbr.rel (%p1020) target = $region148
        $region147: #{translator_forward.1} parent=135 // pred_region
          %p1023 = scmp.lt.s32.totalorder %s87, 1
          %s1024 = scalar_select %p1023, %s87, 1
          %s1025 = scalar_lea.vmem %s13, %s1024
        $region148: #{translator_forward.1} parent=135 // pred_fallthru
          _
        // Predicated region
        $region149: #{translator_forward.1} parent=135 // pred_check
          %p1026 = pneg %p274
        $region150: #{translator_forward.1} parent=135 // pred_check_branch
          %1028 = sbr.rel (%p1026) target = $region152
        $region151: #{translator_forward.1} parent=135 // pred_region
          %p1029 = scmp.lt.s32.totalorder %s87, 1
          %s1030 = scalar_select %p1029, %s87, 1
          %s1031 = scalar_lea.vmem %s15, %s1030
        $region152: #{translator_forward.1} parent=135 // pred_fallthru
          _
        // Predicated region
        $region153: #{translator_forward.1} parent=135 // pred_check
          %p1032 = pneg %p300
        $region154: #{translator_forward.1} parent=135 // pred_check_branch
          %1034 = sbr.rel (%p1032) target = $region156
        $region155: #{translator_forward.1} parent=135 // pred_region
          %p1035 = scmp.lt.s32.totalorder %s87, 1
          %s1036 = scalar_select %p1035, %s87, 1
          %s1037 = scalar_lea.vmem %s17, %s1036
        $region156: #{translator_forward.1} parent=135 // pred_fallthru
          _
      $region136: #{translator_forward.1} parent=5 // pred_fallthru
        _
      %p1038 = scmp.le.s32.totalorder 1, %s80
      %p1039 = scmp.lt.s32.totalorder %s80, 3
      %p1040 = pnand %p1038, %p1039
      %p1041 = pneg %p1040
      // Predicated region
      $region157: #{translator_forward.1} parent=5 // pred_check
        _
      $region158: #{translator_forward.1} parent=5 // pred_check_branch
        %1043 = sbr.rel (%p1040) target = $region160
      $region159: #{translator_forward.1} parent=5 // pred_region
        %s1044 = ssub.s32 %s80, 1
        %p1045 = scmp.lt.s32.totalorder %s89, 1
        %s1046 = scalar_select %p1045, %s89, 1
        %s1047 = smul.addr %s1046, 8
        %s1048 = scalar_lea.vmem %s1, %s1047
        %p1049 = pneg %p118
        %p1050 = pneg %p115
        %p1051 = scmp.lt.s32.totalorder %s89, 1
        %s1052 = scalar_select %p1051, %s89, 1
        %s1053 = smul.addr %s1052, 8
        %s1054 = scalar_lea.vmem %s3, %s1053
        %p1055 = pneg %p144
        %p1056 = pneg %p141
        %p1057 = pneg %p165
        %p1058 = pneg %p162
        %p1059 = pneg %p186
        %p1060 = pneg %p183
        %p1061 = pneg %p207
        %p1062 = pneg %p204
        %p1063 = pneg %p228
        %p1064 = pneg %p225
        %p1065 = scmp.lt.s32.totalorder %s89, 1
        %s1066 = scalar_select %p1065, %s89, 1
        %s1067 = scalar_lea.vmem %s13, %s1066
        %p1068 = pneg %p254
        %p1069 = pneg %p251
        %p1070 = scmp.lt.s32.totalorder %s89, 1
        %s1071 = scalar_select %p1070, %s89, 1
        %s1072 = scalar_lea.vmem %s15, %s1071
        %p1073 = pneg %p280
        %p1074 = pneg %p277
        %p1075 = scmp.lt.s32.totalorder %s89, 1
        %s1076 = scalar_select %p1075, %s89, 1
        %s1077 = scalar_lea.vmem %s17, %s1076
        %p1078 = pneg %p306
        %p1079 = pneg %p303
        %p1080 = pneg %p327
        %p1081 = pneg %p324
        %p1082 = pneg %p348
        %p1083 = pneg %p345
        %p1084 = pneg %p369
        %p1085 = pneg %p366
        %p1086 = pneg %p390
        %p1087 = pneg %p387
        %p1088 = pneg %p411
        %p1089 = pneg %p408
        %p1090 = pneg %p432
        %p1091 = pneg %p429
        %p1092 = pneg %p453
        %p1093 = pneg %p450
        %p1094 = pneg %p474
        %p1095 = pneg %p471
        %p1096 = pneg %p495
        %p1097 = pneg %p492
        %p1098 = pneg %p516
        %p1099 = pneg %p513
        %p1100 = pneg %p537
        %p1101 = pneg %p534
        %p1102 = pneg %p558
        %p1103 = pneg %p555
        %p1104 = pneg %p579
        %p1105 = pneg %p576
        %p1106 = pneg %p600
        %p1107 = pneg %p597
        %p1108 = pneg %p621
        %p1109 = pneg %p618
        %p1110 = pneg %p642
        %p1111 = pneg %p639
        %p1112 = pneg %p663
        %p1113 = pneg %p660
        %p1114 = pneg %p684
        %p1115 = pneg %p681
        %p1116 = pneg %p705
        %p1117 = pneg %p702
        %p1118 = pneg %p726
        %p1119 = pneg %p723
        %p1120 = pneg %p747
        %p1121 = pneg %p744
        %p1122 = pneg %p768
        %p1123 = pneg %p765
        %p1124 = pneg %p789
        %p1125 = pneg %p786
        %p1126 = pneg %p810
        %p1127 = pneg %p807
        %p1128 = scmp.lt.s32.totalorder %s90, 0
        %s1129 = scalar_select %p1128, %s90, 0
        %s1130 = smul.addr %s1129, 4
        %s1131 = scalar_lea.vmem %s67, %s1130
        %p1132 = pneg %p836
        %p1133 = pneg %p833
        %p1134 = scmp.lt.s32.totalorder %s90, 0
        %s1135 = scalar_select %p1134, %s90, 0
        %s1136 = scalar_lea.vmem %s69, %s1135
        %p1137 = pneg %p862
        %p1138 = pneg %p859
        %p1139 = pneg %p890
        %p1140 = pneg %p887
        %s1141 = sand.u32 %s877, 1
        %s1142 = scalar_lea.sflag [#allocation4], %s1141
        %s1143 = sand.u32 %s877, 1
        %s1144 = smul.addr %s1143, 8
        %s1145 = scalar_lea.vmem [#allocation3], %s1144
        %p1146 = scmp.lt.s32.totalorder %s89, 1
        %s1147 = scalar_select %p1146, %s89, 1
        %s1148 = smul.addr %s1147, 8
        %s1149 = scalar_lea.vmem %s1, %s1148
        %p1150 = scmp.lt.s32.totalorder %s89, 1
        %s1151 = scalar_select %p1150, %s89, 1
        %s1152 = smul.addr %s1151, 8
        %s1153 = scalar_lea.vmem %s3, %s1152
        %p1154 = scmp.lt.s32.totalorder %s89, 1
        %s1155 = scalar_select %p1154, %s89, 1
        %s1156 = scalar_lea.vmem %s13, %s1155
        %p1157 = scmp.lt.s32.totalorder %s89, 1
        %s1158 = scalar_select %p1157, %s89, 1
        %s1159 = scalar_lea.vmem %s15, %s1158
        %p1160 = scmp.lt.s32.totalorder %s89, 1
        %s1161 = scalar_select %p1160, %s89, 1
        %s1162 = scalar_lea.vmem %s17, %s1161
        %p1163 = scmp.lt.s32.totalorder %s90, 0
        %s1164 = scalar_select %p1163, %s90, 0
        %s1165 = smul.addr %s1164, 4
        %s1166 = scalar_lea.vmem %s67, %s1165
        %p1167 = scmp.lt.s32.totalorder %s90, 0
        %s1168 = scalar_select %p1167, %s90, 0
        %s1169 = scalar_lea.vmem %s69, %s1168
        %p1171 = scmp.eq.s32.totalorder %s90, 0
        // Predicated region
        $region161: #{translator_forward.1} parent=159 // pred_check
          %p1172 = pneg %p1171
        $region162: #{translator_forward.1} parent=159 // pred_check_branch
          %1174 = sbr.rel (%p1172) target = $region164
        $region163: #{translator_forward.1} parent=159 // pred_region
          %v1175 = vld [vmem:[%s9] sm:$0xff]
          %v1176 = vld [vmem:[%s1156] sm:$0x1]
          %v1178 = vperm.slane %v1176, 0
          %v1180 = vadd.f32 %v1175, %v1178
          %v1181 = vmax.f32 %v1180, -1e+09
          %v1182 = vld [vmem:[%s11] sm:$0xff]
          %v1183 = vld [vmem:[%s1159] sm:$0x1]
          %v1185 = vperm.slane %v1183, 0
          %v1187 = vadd.f32 %v1182, %v1185
          %v1188 = vmax.f32 %v1187, -1e+09
          %v1189 = vld [vmem:[%s1162] sm:$0x1]
          %v1190 = vld [vmem:[%s1149] sm:$0xff]
          %v1191 = vld [vmem:[%s5] sm:$0xff]
          %v1192 = vadd.f32 %v1190, %v1191
          %v1193 = vld [vmem:[%s35] sm:$0x3f]
          %v1194 = vld [vmem:[%s19] sm:$0xf]
          %v1195 = vld [vmem:[%s19 + $0x4] sm:$0xf]
          %v1196 = vld [vmem:[%s19 + $0x8] sm:$0xf]
          %v1197 = vld [vmem:[%s19 + $0xc] sm:$0xf]
          %v1198 = vpack.c.bf16 %v1192, %v1192
          %v1199 = vld [vmem:[%s21] sm:$0x1]
          %v1201 = vperm.slane %v1199, 0
          %v1207 = vunpack.c.l.b16 %v1194
          %v1208 = vunpack.c.l.b16 %v1195
          %v1209 = vunpack.c.l.b16 %v1196
          %v1210 = vunpack.c.l.b16 %v1197
          %v1211 = vpack.c.b16 %v1208, %v1207
          %v1212 = vpack.c.b16 %v1210, %v1209
          %vm1215 = vcmask 261120
          %v1217 = vsel %vm1215, %v1198, 0
          %1219 = vmatpush.bf16.msra.mxu0 0
          %1220 = vmatpush.bf16.msra.mxu0 0
          %1221 = vmatpush.bf16.msra.mxu0 0
          %1222 = vmatpush.bf16.msra.mxu0 0
          %1223 = vmatpush.bf16.msra.mxu0 0
          %1224 = vmatpush.bf16.msra.mxu0 0
          %1225 = vmatpush.bf16.msra.mxu0 %v1212
          %1226 = vmatpush.bf16.msra.mxu0 %v1211
          %1227 = vmatmul.bf16.gmra.mxu0 %v1217
          %v1228 = vpop.f32.mrf.mxu0
          %v1229 = vadd.f32 %v1201, %v1228
          %v1230 = vpop.f32.mrf.mxu0
          %1231 = vdwg.mxu0
          %v1232 = vld [vmem:[%s23] sm:$0xf]
          %v1233 = vld [vmem:[%s23 + $0x4] sm:$0xf]
          %v1234 = vld [vmem:[%s23 + $0x8] sm:$0xf]
          %v1235 = vld [vmem:[%s23 + $0xc] sm:$0xf]
          %v1236 = vpack.c.bf16 %v1229, %v1229
          %v1238 = vunpack.c.l.b16 %v1236
          %v1239 = vpack.c.b16 %v1238, %v1238
          %1240 = vrot.lane.b32.xlu0 %v1239, 96
          %v1241 = vpop.permute.xlu0 %1240
          %vm1242 = vcmask 64512
          %v1244 = vsel %vm1242, %v1236, 0
          %v1247 = vsel %vm1242, %v1241, 0
          %1249 = vmatpush.bf16.xpose.msra.mxu0 0
          %1250 = vmatpush.bf16.xpose.msra.mxu0 0
          %1251 = vmatpush.bf16.xpose.msra.mxu0 0
          %1252 = vmatpush.bf16.xpose.msra.mxu0 0
          %1253 = vmatpush.bf16.xpose.msra.mxu0 0
          %1254 = vmatpush.bf16.xpose.msra.mxu0 0
          %1255 = vmatpush.bf16.xpose.msra.mxu0 0
          %1256 = vmatpush.bf16.xpose.msra.mxu0 %v1247
          %1257 = vmatmul.bf16.gmra.mxu0 %v1244
          %v1258 = vpop.f32.mrf.mxu0
          %v1259 = vadd.f32 %v1181, %v1258
          %v1260 = vpop.f32.mrf.mxu0
          %1261 = vdwg.mxu0
          %v1262 = vsel %vm1242, %v1259, -inf
          %1263 = vmax.xlane.f32.xlu0 %v1262
          %v1264 = vpop.xlane.xlu0 %1263
          %v1265 = vsub.f32 %v1259, %v1264
          %v1266 = vmul.f32 %v1265, 1.442695
          %v1267 = vpow.pop %v1266
          %v1268 = vsel %vm1242, %v1267, 0.0
          %1269 = vadd.xlane.f32.xlu0 %v1268
          %v1270 = vpop.xlane.xlu0 %1269
          %v1271 = vrcp.pop %v1270
          %v1272 = vmul.f32 %v1270, %v1271
          %v1273 = vsub.f32 1.0, %v1272
          %v1274 = vmul.f32 %v1271, %v1273
          %v1275 = vadd.f32 %v1271, %v1274
          %vm1276 = vweird.f32 %v1270
          %vm1277 = vweird.f32 %v1271
          %vm1278 = vmor %vm1276, %vm1277
          %v1279 = vsel %vm1278, %v1271, %v1275
          %v1280 = vand.u32 2147483647, %v1270
          %vm1281 = vcmp.eq.f32.partialorder %v1280, 8.507059e+37
          %v1282 = vand.u32 %v1270, 2147483648
          %v1283 = vor.u32 1.1754944e-38, %v1282
          %v1284 = vsel %vm1281, %v1283, %v1279
          %v1285 = vmul.f32 %v1267, %v1284
          %v1286 = vpack.c.bf16 %v1285, %v1285
          %1287 = vrot.lane.b32.xlu0 %v1239, 64
          %v1288 = vpop.permute.xlu0 %1287
          %v1290 = vsel %vm1242, %v1286, 0
          %vm1292 = vcmask 1043456
          %v1294 = vsel %vm1292, %v1288, 0
          %1296 = vmatpush.bf16.msra.mxu0 0
          %1297 = vmatpush.bf16.msra.mxu0 0
          %1298 = vmatpush.bf16.msra.mxu0 0
          %1299 = vmatpush.bf16.msra.mxu0 0
          %1300 = vmatpush.bf16.msra.mxu0 0
          %1301 = vmatpush.bf16.msra.mxu0 0
          %1302 = vmatpush.bf16.msra.mxu0 0
          %1303 = vmatpush.bf16.msra.mxu0 %v1294
          %1304 = vmatmul.bf16.gmra.mxu0 %v1290
          %v1305 = vpop.f32.mrf.mxu0
          %v1306 = vadd.f32 0.0, %v1305
          %v1307 = vpop.f32.mrf.mxu0
          %1308 = vdwg.mxu0
          %1309 = vrot.lane.b32.xlu0 %v1239, 120
          %v1310 = vpop.permute.xlu0 %1309
          %1311 = vrot.lane.b32.xlu0 %v1239, 88
          %v1312 = vpop.permute.xlu0 %1311
          %v1314 = vsel %vm1242, %v1310, 0
          %v1317 = vsel %vm1242, %v1312, 0
          %1319 = vmatpush.bf16.xpose.msra.mxu0 0
          %1320 = vmatpush.bf16.xpose.msra.mxu0 0
          %1321 = vmatpush.bf16.xpose.msra.mxu0 0
          %1322 = vmatpush.bf16.xpose.msra.mxu0 0
          %1323 = vmatpush.bf16.xpose.msra.mxu0 0
          %1324 = vmatpush.bf16.xpose.msra.mxu0 0
          %1325 = vmatpush.bf16.xpose.msra.mxu0 0
          %1326 = vmatpush.bf16.xpose.msra.mxu0 %v1317
          %1327 = vmatmul.bf16.gmra.mxu0 %v1314
          %v1328 = vpop.f32.mrf.mxu0
          %v1329 = vadd.f32 %v1181, %v1328
          %v1330 = vpop.f32.mrf.mxu0
          %1331 = vdwg.mxu0
          %v1332 = vsel %vm1242, %v1329, -inf
          %1333 = vmax.xlane.f32.xlu0 %v1332
          %v1334 = vpop.xlane.xlu0 %1333
          %v1335 = vsub.f32 %v1329, %v1334
          %v1336 = vmul.f32 %v1335, 1.442695
          %v1337 = vpow.pop %v1336
          %v1338 = vsel %vm1242, %v1337, 0.0
          %1339 = vadd.xlane.f32.xlu0 %v1338
          %v1340 = vpop.xlane.xlu0 %1339
          %v1341 = vrcp.pop %v1340
          %v1342 = vmul.f32 %v1340, %v1341
          %v1343 = vsub.f32 1.0, %v1342
          %v1344 = vmul.f32 %v1341, %v1343
          %v1345 = vadd.f32 %v1341, %v1344
          %vm1346 = vweird.f32 %v1340
          %vm1347 = vweird.f32 %v1341
          %vm1348 = vmor %vm1346, %vm1347
          %v1349 = vsel %vm1348, %v1341, %v1345
          %v1350 = vand.u32 2147483647, %v1340
          %vm1351 = vcmp.eq.f32.partialorder %v1350, 8.507059e+37
          %v1352 = vand.u32 %v1340, 2147483648
          %v1353 = vor.u32 1.1754944e-38, %v1352
          %v1354 = vsel %vm1351, %v1353, %v1349
          %v1355 = vmul.f32 %v1337, %v1354
          %v1356 = vpack.c.bf16 %v1355, %v1355
          %1357 = vrot.lane.b32.xlu0 %v1239, 56
          %v1358 = vpop.permute.xlu0 %1357
          %v1360 = vsel %vm1242, %v1356, 0
          %v1363 = vsel %vm1292, %v1358, 0
          %1365 = vmatpush.bf16.msra.mxu0 0
          %1366 = vmatpush.bf16.msra.mxu0 0
          %1367 = vmatpush.bf16.msra.mxu0 0
          %1368 = vmatpush.bf16.msra.mxu0 0
          %1369 = vmatpush.bf16.msra.mxu0 0
          %1370 = vmatpush.bf16.msra.mxu0 0
          %1371 = vmatpush.bf16.msra.mxu0 0
          %1372 = vmatpush.bf16.msra.mxu0 %v1363
          %1373 = vmatmul.bf16.gmra.mxu0 %v1360
          %v1374 = vpop.f32.mrf.mxu0
          %v1375 = vadd.f32 0.0, %v1374
          %v1376 = vpop.f32.mrf.mxu0
          %1377 = vdwg.mxu0
          %1378 = vrot.lane.b32.xlu0 %v1239, 112
          %v1379 = vpop.permute.xlu0 %1378
          %1380 = vrot.lane.b32.xlu0 %v1239, 80
          %v1381 = vpop.permute.xlu0 %1380
          %v1383 = vsel %vm1242, %v1379, 0
          %v1386 = vsel %vm1242, %v1381, 0
          %1388 = vmatpush.bf16.xpose.msra.mxu0 0
          %1389 = vmatpush.bf16.xpose.msra.mxu0 0
          %1390 = vmatpush.bf16.xpose.msra.mxu0 0
          %1391 = vmatpush.bf16.xpose.msra.mxu0 0
          %1392 = vmatpush.bf16.xpose.msra.mxu0 0
          %1393 = vmatpush.bf16.xpose.msra.mxu0 0
          %1394 = vmatpush.bf16.xpose.msra.mxu0 0
          %1395 = vmatpush.bf16.xpose.msra.mxu0 %v1386
          %1396 = vmatmul.bf16.gmra.mxu0 %v1383
          %v1397 = vpop.f32.mrf.mxu0
          %v1398 = vadd.f32 %v1181, %v1397
          %v1399 = vpop.f32.mrf.mxu0
          %1400 = vdwg.mxu0
          %v1401 = vsel %vm1242, %v1398, -inf
          %1402 = vmax.xlane.f32.xlu0 %v1401
          %v1403 = vpop.xlane.xlu0 %1402
          %v1404 = vsub.f32 %v1398, %v1403
          %v1405 = vmul.f32 %v1404, 1.442695
          %v1406 = vpow.pop %v1405
          %v1407 = vsel %vm1242, %v1406, 0.0
          %1408 = vadd.xlane.f32.xlu0 %v1407
          %v1409 = vpop.xlane.xlu0 %1408
          %v1410 = vrcp.pop %v1409
          %v1411 = vmul.f32 %v1409, %v1410
          %v1412 = vsub.f32 1.0, %v1411
          %v1413 = vmul.f32 %v1410, %v1412
          %v1414 = vadd.f32 %v1410, %v1413
          %vm1415 = vweird.f32 %v1409
          %vm1416 = vweird.f32 %v1410
          %vm1417 = vmor %vm1415, %vm1416
          %v1418 = vsel %vm1417, %v1410, %v1414
          %v1419 = vand.u32 2147483647, %v1409
          %vm1420 = vcmp.eq.f32.partialorder %v1419, 8.507059e+37
          %v1421 = vand.u32 %v1409, 2147483648
          %v1422 = vor.u32 1.1754944e-38, %v1421
          %v1423 = vsel %vm1420, %v1422, %v1418
          %v1424 = vmul.f32 %v1406, %v1423
          %v1425 = vpack.c.bf16 %v1424, %v1424
          %1426 = vrot.lane.b32.xlu0 %v1239, 48
          %v1427 = vpop.permute.xlu0 %1426
          %v1429 = vsel %vm1242, %v1425, 0
          %v1432 = vsel %vm1292, %v1427, 0
          %1434 = vmatpush.bf16.msra.mxu0 0
          %1435 = vmatpush.bf16.msra.mxu0 0
          %1436 = vmatpush.bf16.msra.mxu0 0
          %1437 = vmatpush.bf16.msra.mxu0 0
          %1438 = vmatpush.bf16.msra.mxu0 0
          %1439 = vmatpush.bf16.msra.mxu0 0
          %1440 = vmatpush.bf16.msra.mxu0 0
          %1441 = vmatpush.bf16.msra.mxu0 %v1432
          %1442 = vmatmul.bf16.gmra.mxu0 %v1429
          %v1443 = vpop.f32.mrf.mxu0
          %v1444 = vadd.f32 0.0, %v1443
          %v1445 = vpop.f32.mrf.mxu0
          %1446 = vdwg.mxu0
          %1447 = vrot.lane.b32.xlu0 %v1239, 104
          %v1448 = vpop.permute.xlu0 %1447
          %1449 = vrot.lane.b32.xlu0 %v1239, 72
          %v1450 = vpop.permute.xlu0 %1449
          %v1452 = vsel %vm1242, %v1448, 0
          %v1455 = vsel %vm1242, %v1450, 0
          %1457 = vmatpush.bf16.xpose.msra.mxu0 0
          %1458 = vmatpush.bf16.xpose.msra.mxu0 0
          %1459 = vmatpush.bf16.xpose.msra.mxu0 0
          %1460 = vmatpush.bf16.xpose.msra.mxu0 0
          %1461 = vmatpush.bf16.xpose.msra.mxu0 0
          %1462 = vmatpush.bf16.xpose.msra.mxu0 0
          %1463 = vmatpush.bf16.xpose.msra.mxu0 0
          %1464 = vmatpush.bf16.xpose.msra.mxu0 %v1455
          %1465 = vmatmul.bf16.gmra.mxu0 %v1452
          %v1466 = vpop.f32.mrf.mxu0
          %v1467 = vadd.f32 %v1181, %v1466
          %v1468 = vpop.f32.mrf.mxu0
          %1469 = vdwg.mxu0
          %v1470 = vsel %vm1242, %v1467, -inf
          %1471 = vmax.xlane.f32.xlu0 %v1470
          %v1472 = vpop.xlane.xlu0 %1471
          %v1473 = vsub.f32 %v1467, %v1472
          %v1474 = vmul.f32 %v1473, 1.442695
          %v1475 = vpow.pop %v1474
          %v1476 = vsel %vm1242, %v1475, 0.0
          %1477 = vadd.xlane.f32.xlu0 %v1476
          %v1478 = vpop.xlane.xlu0 %1477
          %v1479 = vrcp.pop %v1478
          %v1480 = vmul.f32 %v1478, %v1479
          %v1481 = vsub.f32 1.0, %v1480
          %v1482 = vmul.f32 %v1479, %v1481
          %v1483 = vadd.f32 %v1479, %v1482
          %vm1484 = vweird.f32 %v1478
          %vm1485 = vweird.f32 %v1479
          %vm1486 = vmor %vm1484, %vm1485
          %v1487 = vsel %vm1486, %v1479, %v1483
          %v1488 = vand.u32 2147483647, %v1478
          %vm1489 = vcmp.eq.f32.partialorder %v1488, 8.507059e+37
          %v1490 = vand.u32 %v1478, 2147483648
          %v1491 = vor.u32 1.1754944e-38, %v1490
          %v1492 = vsel %vm1489, %v1491, %v1487
          %v1493 = vmul.f32 %v1475, %v1492
          %v1494 = vpack.c.bf16 %v1493, %v1493
          %1495 = vrot.lane.b32.xlu0 %v1239, 40
          %v1496 = vpop.permute.xlu0 %1495
          %v1498 = vsel %vm1242, %v1494, 0
          %v1501 = vsel %vm1292, %v1496, 0
          %1503 = vmatpush.bf16.msra.mxu0 0
          %1504 = vmatpush.bf16.msra.mxu0 0
          %1505 = vmatpush.bf16.msra.mxu0 0
          %1506 = vmatpush.bf16.msra.mxu0 0
          %1507 = vmatpush.bf16.msra.mxu0 0
          %1508 = vmatpush.bf16.msra.mxu0 0
          %1509 = vmatpush.bf16.msra.mxu0 0
          %1510 = vmatpush.bf16.msra.mxu0 %v1501
          %1511 = vmatmul.bf16.gmra.mxu0 %v1498
          %v1512 = vpop.f32.mrf.mxu0
          %v1513 = vadd.f32 0.0, %v1512
          %v1514 = vpop.f32.mrf.mxu0
          %1515 = vdwg.mxu0
          %1517 = vrot.lane.b32.xlu0 %v1375, 8
          %v1518 = vpop.permute.xlu0 %1517
          %1521 = vrot.lane.b32.xlu0 %v1444, 16
          %v1522 = vpop.permute.xlu0 %1521
          %1525 = vrot.lane.b32.xlu0 %v1513, 24
          %v1526 = vpop.permute.xlu0 %1525
          %v1528 = vsel %vm1242, %v1306, %v1518
          %vm1529 = vcmask 130048
          %v1530 = vsel %vm1529, %v1528, %v1522
          %vm1531 = vcmask 195584
          %v1532 = vsel %vm1531, %v1530, %v1526
          %v1533 = vpack.c.bf16 %v1532, %v1532
          %v1534 = vld [vmem:[%s25] sm:$0x1]
          %v1536 = vperm.slane %v1534, 0
          %v1542 = vunpack.c.l.b16 %v1232
          %v1543 = vunpack.c.l.b16 %v1233
          %v1544 = vunpack.c.l.b16 %v1234
          %v1545 = vunpack.c.l.b16 %v1235
          %v1546 = vpack.c.b16 %v1543, %v1542
          %v1547 = vpack.c.b16 %v1545, %v1544
          %v1551 = vsel %vm1215, %v1533, 0
          %1553 = vmatpush.bf16.msra.mxu0 0
          %1554 = vmatpush.bf16.msra.mxu0 0
          %1555 = vmatpush.bf16.msra.mxu0 0
          %1556 = vmatpush.bf16.msra.mxu0 0
          %1557 = vmatpush.bf16.msra.mxu0 0
          %1558 = vmatpush.bf16.msra.mxu0 0
          %1559 = vmatpush.bf16.msra.mxu0 %v1547
          %1560 = vmatpush.bf16.msra.mxu0 %v1546
          %1561 = vmatmul.bf16.gmra.mxu0 %v1551
          %v1562 = vpop.f32.mrf.mxu0
          %v1563 = vadd.f32 %v1536, %v1562
          %v1564 = vpop.f32.mrf.mxu0
          %1565 = vdwg.mxu0
          %v1566 = vadd.f32 %v1192, %v1563
          %v1567 = vsel %vm1215, %v1566, 0.0
          %1568 = vadd.xlane.f32.xlu0 %v1567
          %v1569 = vpop.xlane.xlu0 %1568
          %v1570 = vrcp.pop 32.0
          %v1571 = vmul.f32 32.0, %v1570
          %v1572 = vsub.f32 1.0, %v1571
          %v1573 = vmul.f32 %v1570, %v1572
          %v1574 = vadd.f32 %v1570, %v1573
          %vm1575 = vweird.f32 %v1570
          %v1576 = vsel %vm1575, %v1570, %v1574
          %v1577 = vmul.f32 %v1569, %v1576
          %v1578 = vsub.f32 %v1566, %v1577
          %v1579 = vmul.f32 %v1578, %v1578
          %v1580 = vsel %vm1215, %v1579, 0.0
          %1581 = vadd.xlane.f32.xlu0 %v1580
          %v1582 = vpop.xlane.xlu0 %1581
          %v1583 = vmul.f32 %v1582, %v1576
          %v1584 = vadd.f32 %v1583, 1e-05
          %v1585 = vrsqrt.pop %v1584
          %v1586 = vmul.f32 %v1585, %v1584
          %v1587 = vmul.f32 %v1586, %v1585
          %v1588 = vmul.f32 0.5, %v1587
          %v1589 = vsub.f32 1.5, %v1588
          %v1590 = vmul.f32 %v1585, %v1589
          %vm1591 = vweird.f32 %v1584
          %vm1592 = vweird.f32 %v1585
          %vm1593 = vmor %vm1591, %vm1592
          %v1594 = vsel %vm1593, %v1585, %v1590
          %v1595 = vmul.f32 %v1578, %v1594
          %v1596 = vperm.slane %v1193, 0
          %v1597 = vmul.f32 %v1595, %v1596
          %v1598 = vperm.slane %v1193, 1
          %v1599 = vadd.f32 %v1597, %v1598
          %v1600 = vld [vmem:[%s27] sm:$0xf]
          %v1601 = vld [vmem:[%s27 + $0x4] sm:$0xf]
          %v1602 = vld [vmem:[%s27 + $0x8] sm:$0xf]
          %v1603 = vld [vmem:[%s27 + $0xc] sm:$0xf]
          %v1604 = vpack.c.bf16 %v1599, %v1599
          %v1605 = vld [vmem:[%s29] sm:$0x1]
          %v1607 = vperm.slane %v1605, 0
          %v1613 = vunpack.c.l.b16 %v1600
          %v1614 = vunpack.c.l.b16 %v1601
          %v1615 = vunpack.c.l.b16 %v1602
          %v1616 = vunpack.c.l.b16 %v1603
          %v1617 = vpack.c.b16 %v1614, %v1613
          %v1618 = vpack.c.b16 %v1616, %v1615
          %v1622 = vsel %vm1215, %v1604, 0
          %1624 = vmatpush.bf16.msra.mxu0 0
          %1625 = vmatpush.bf16.msra.mxu0 0
          %1626 = vmatpush.bf16.msra.mxu0 0
          %1627 = vmatpush.bf16.msra.mxu0 0
          %1628 = vmatpush.bf16.msra.mxu0 0
          %1629 = vmatpush.bf16.msra.mxu0 0
          %1630 = vmatpush.bf16.msra.mxu0 %v1618
          %1631 = vmatpush.bf16.msra.mxu0 %v1617
          %1632 = vmatmul.bf16.gmra.mxu0 %v1622
          %v1633 = vpop.f32.mrf.mxu0
          %v1634 = vadd.f32 %v1607, %v1633
          %v1635 = vpop.f32.mrf.mxu0
          %1636 = vdwg.mxu0
          %v1637 = vmax.f32 %v1634, 0.0
          %v1638 = vld [vmem:[%s31] sm:$0xf]
          %v1639 = vld [vmem:[%s31 + $0x4] sm:$0xf]
          %v1640 = vld [vmem:[%s31 + $0x8] sm:$0xf]
          %v1641 = vld [vmem:[%s31 + $0xc] sm:$0xf]
          %v1642 = vld [vmem:[%s31 + $0x10] sm:$0xf]
          %v1643 = vld [vmem:[%s31 + $0x14] sm:$0xf]
          %v1644 = vld [vmem:[%s31 + $0x18] sm:$0xf]
          %v1645 = vld [vmem:[%s31 + $0x1c] sm:$0xf]
          %v1646 = vpack.c.bf16 %v1637, %v1637
          %v1647 = vld [vmem:[%s33] sm:$0x1]
          %v1649 = vperm.slane %v1647, 0
          %v1659 = vunpack.c.l.b16 %v1638
          %v1660 = vunpack.c.l.b16 %v1639
          %v1661 = vunpack.c.l.b16 %v1640
          %v1662 = vunpack.c.l.b16 %v1641
          %v1663 = vunpack.c.l.b16 %v1642
          %v1664 = vunpack.c.l.b16 %v1643
          %v1665 = vunpack.c.l.b16 %v1644
          %v1666 = vunpack.c.l.b16 %v1645
          %v1667 = vpack.c.b16 %v1660, %v1659
          %v1668 = vpack.c.b16 %v1662, %v1661
          %v1669 = vpack.c.b16 %v1664, %v1663
          %v1670 = vpack.c.b16 %v1666, %v1665
          %vm1675 = vcmask 523264
          %v1677 = vsel %vm1675, %v1646, 0
          %1679 = vmatpush.bf16.msra.mxu0 0
          %1680 = vmatpush.bf16.msra.mxu0 0
          %1681 = vmatpush.bf16.msra.mxu0 0
          %1682 = vmatpush.bf16.msra.mxu0 0
          %1683 = vmatpush.bf16.msra.mxu0 %v1670
          %1684 = vmatpush.bf16.msra.mxu0 %v1669
          %1685 = vmatpush.bf16.msra.mxu0 %v1668
          %1686 = vmatpush.bf16.msra.mxu0 %v1667
          %1687 = vmatmul.bf16.gmra.mxu0 %v1677
          %v1688 = vpop.f32.mrf.mxu0
          %v1689 = vadd.f32 %v1649, %v1688
          %v1690 = vpop.f32.mrf.mxu0
          %1691 = vdwg.mxu0
          %v1692 = vadd.f32 %v1599, %v1689
          %v1693 = vsel %vm1215, %v1692, 0.0
          %1694 = vadd.xlane.f32.xlu0 %v1693
          %v1695 = vpop.xlane.xlu0 %1694
          %v1696 = vmul.f32 %v1695, %v1576
          %v1697 = vsub.f32 %v1692, %v1696
          %v1698 = vmul.f32 %v1697, %v1697
          %v1699 = vsel %vm1215, %v1698, 0.0
          %1700 = vadd.xlane.f32.xlu0 %v1699
          %v1701 = vpop.xlane.xlu0 %1700
          %v1702 = vmul.f32 %v1701, %v1576
          %v1703 = vadd.f32 %v1702, 1e-05
          %v1704 = vrsqrt.pop %v1703
          %v1705 = vmul.f32 %v1704, %v1703
          %v1706 = vmul.f32 %v1705, %v1704
          %v1707 = vmul.f32 0.5, %v1706
          %v1708 = vsub.f32 1.5, %v1707
          %v1709 = vmul.f32 %v1704, %v1708
          %vm1710 = vweird.f32 %v1703
          %vm1711 = vweird.f32 %v1704
          %vm1712 = vmor %vm1710, %vm1711
          %v1713 = vsel %vm1712, %v1704, %v1709
          %v1714 = vmul.f32 %v1697, %v1713
          %v1715 = vperm.slane %v1193, 2
          %v1716 = vmul.f32 %v1714, %v1715
          %v1717 = vperm.slane %v1193, 3
          %v1718 = vadd.f32 %v1716, %v1717
          %v1719 = vsel %vm1215, %v1718, 0.0
          %1720 = vadd.xlane.f32.xlu0 %v1719
          %v1721 = vpop.xlane.xlu0 %1720
          %v1722 = vmul.f32 %v1721, %v1576
          %v1723 = vsub.f32 %v1718, %v1722
          %v1724 = vmul.f32 %v1723, %v1723
          %v1725 = vsel %vm1215, %v1724, 0.0
          %1726 = vadd.xlane.f32.xlu0 %v1725
          %v1727 = vpop.xlane.xlu0 %1726
          %v1728 = vmul.f32 %v1727, %v1576
          %v1729 = vadd.f32 %v1728, 1e-05
          %v1730 = vrsqrt.pop %v1729
          %v1731 = vmul.f32 %v1730, %v1729
          %v1732 = vmul.f32 %v1731, %v1730
          %v1733 = vmul.f32 0.5, %v1732
          %v1734 = vsub.f32 1.5, %v1733
          %v1735 = vmul.f32 %v1730, %v1734
          %vm1736 = vweird.f32 %v1729
          %vm1737 = vweird.f32 %v1730
          %vm1738 = vmor %vm1736, %vm1737
          %v1739 = vsel %vm1738, %v1730, %v1735
          %v1740 = vmul.f32 %v1723, %v1739
          %v1741 = vperm.slane %v1193, 4
          %v1742 = vmul.f32 %v1740, %v1741
          %v1743 = vperm.slane %v1193, 5
          %v1744 = vadd.f32 %v1742, %v1743
          %v1745 = vld [vmem:[%s1153] sm:$0xff]
          %v1746 = vld [vmem:[%s7] sm:$0xff]
          %v1747 = vadd.f32 %v1745, %v1746
          %v1748 = vld [vmem:[%s65] sm:$0xff]
          %v1749 = vld [vmem:[%s37] sm:$0xf]
          %v1750 = vld [vmem:[%s37 + $0x4] sm:$0xf]
          %v1751 = vld [vmem:[%s37 + $0x8] sm:$0xf]
          %v1752 = vld [vmem:[%s37 + $0xc] sm:$0xf]
          %v1753 = vpack.c.bf16 %v1747, %v1747
          %v1754 = vld [vmem:[%s39] sm:$0x1]
          %v1756 = vperm.slane %v1754, 0
          %v1762 = vunpack.c.l.b16 %v1749
          %v1763 = vunpack.c.l.b16 %v1750
          %v1764 = vunpack.c.l.b16 %v1751
          %v1765 = vunpack.c.l.b16 %v1752
          %v1766 = vpack.c.b16 %v1763, %v1762
          %v1767 = vpack.c.b16 %v1765, %v1764
          %v1771 = vsel %vm1215, %v1753, 0
          %1773 = vmatpush.bf16.msra.mxu0 0
          %1774 = vmatpush.bf16.msra.mxu0 0
          %1775 = vmatpush.bf16.msra.mxu0 0
          %1776 = vmatpush.bf16.msra.mxu0 0
          %1777 = vmatpush.bf16.msra.mxu0 0
          %1778 = vmatpush.bf16.msra.mxu0 0
          %1779 = vmatpush.bf16.msra.mxu0 %v1767
          %1780 = vmatpush.bf16.msra.mxu0 %v1766
          %1781 = vmatmul.bf16.gmra.mxu0 %v1771
          %v1782 = vpop.f32.mrf.mxu0
          %v1783 = vadd.f32 %v1756, %v1782
          %v1784 = vpop.f32.mrf.mxu0
          %1785 = vdwg.mxu0
          %v1786 = vld [vmem:[%s41] sm:$0xf]
          %v1787 = vld [vmem:[%s41 + $0x4] sm:$0xf]
          %v1788 = vld [vmem:[%s41 + $0x8] sm:$0xf]
          %v1789 = vld [vmem:[%s41 + $0xc] sm:$0xf]
          %v1790 = vpack.c.bf16 %v1783, %v1783
          %v1792 = vunpack.c.l.b16 %v1790
          %v1793 = vpack.c.b16 %v1792, %v1792
          %1794 = vrot.lane.b32.xlu0 %v1793, 96
          %v1795 = vpop.permute.xlu0 %1794
          %v1797 = vsel %vm1242, %v1790, 0
          %v1800 = vsel %vm1242, %v1795, 0
          %1802 = vmatpush.bf16.xpose.msra.mxu0 0
          %1803 = vmatpush.bf16.xpose.msra.mxu0 0
          %1804 = vmatpush.bf16.xpose.msra.mxu0 0
          %1805 = vmatpush.bf16.xpose.msra.mxu0 0
          %1806 = vmatpush.bf16.xpose.msra.mxu0 0
          %1807 = vmatpush.bf16.xpose.msra.mxu0 0
          %1808 = vmatpush.bf16.xpose.msra.mxu0 0
          %1809 = vmatpush.bf16.xpose.msra.mxu0 %v1800
          %1810 = vmatmul.bf16.gmra.mxu0 %v1797
          %v1811 = vpop.f32.mrf.mxu0
          %v1812 = vadd.f32 %v1188, %v1811
          %v1813 = vpop.f32.mrf.mxu0
          %1814 = vdwg.mxu0
          %v1815 = vsel %vm1242, %v1812, -inf
          %1816 = vmax.xlane.f32.xlu0 %v1815
          %v1817 = vpop.xlane.xlu0 %1816
          %v1818 = vsub.f32 %v1812, %v1817
          %v1819 = vmul.f32 %v1818, 1.442695
          %v1820 = vpow.pop %v1819
          %v1821 = vsel %vm1242, %v1820, 0.0
          %1822 = vadd.xlane.f32.xlu0 %v1821
          %v1823 = vpop.xlane.xlu0 %1822
          %v1824 = vrcp.pop %v1823
          %v1825 = vmul.f32 %v1823, %v1824
          %v1826 = vsub.f32 1.0, %v1825
          %v1827 = vmul.f32 %v1824, %v1826
          %v1828 = vadd.f32 %v1824, %v1827
          %vm1829 = vweird.f32 %v1823
          %vm1830 = vweird.f32 %v1824
          %vm1831 = vmor %vm1829, %vm1830
          %v1832 = vsel %vm1831, %v1824, %v1828
          %v1833 = vand.u32 2147483647, %v1823
          %vm1834 = vcmp.eq.f32.partialorder %v1833, 8.507059e+37
          %v1835 = vand.u32 %v1823, 2147483648
          %v1836 = vor.u32 1.1754944e-38, %v1835
          %v1837 = vsel %vm1834, %v1836, %v1832
          %v1838 = vmul.f32 %v1820, %v1837
          %v1839 = vpack.c.bf16 %v1838, %v1838
          %1840 = vrot.lane.b32.xlu0 %v1793, 64
          %v1841 = vpop.permute.xlu0 %1840
          %v1843 = vsel %vm1242, %v1839, 0
          %v1846 = vsel %vm1292, %v1841, 0
          %1848 = vmatpush.bf16.msra.mxu0 0
          %1849 = vmatpush.bf16.msra.mxu0 0
          %1850 = vmatpush.bf16.msra.mxu0 0
          %1851 = vmatpush.bf16.msra.mxu0 0
          %1852 = vmatpush.bf16.msra.mxu0 0
          %1853 = vmatpush.bf16.msra.mxu0 0
          %1854 = vmatpush.bf16.msra.mxu0 0
          %1855 = vmatpush.bf16.msra.mxu0 %v1846
          %1856 = vmatmul.bf16.gmra.mxu0 %v1843
          %v1857 = vpop.f32.mrf.mxu0
          %v1858 = vadd.f32 0.0, %v1857
          %v1859 = vpop.f32.mrf.mxu0
          %1860 = vdwg.mxu0
          %1861 = vrot.lane.b32.xlu0 %v1793, 120
          %v1862 = vpop.permute.xlu0 %1861
          %1863 = vrot.lane.b32.xlu0 %v1793, 88
          %v1864 = vpop.permute.xlu0 %1863
          %v1866 = vsel %vm1242, %v1862, 0
          %v1869 = vsel %vm1242, %v1864, 0
          %1871 = vmatpush.bf16.xpose.msra.mxu0 0
          %1872 = vmatpush.bf16.xpose.msra.mxu0 0
          %1873 = vmatpush.bf16.xpose.msra.mxu0 0
          %1874 = vmatpush.bf16.xpose.msra.mxu0 0
          %1875 = vmatpush.bf16.xpose.msra.mxu0 0
          %1876 = vmatpush.bf16.xpose.msra.mxu0 0
          %1877 = vmatpush.bf16.xpose.msra.mxu0 0
          %1878 = vmatpush.bf16.xpose.msra.mxu0 %v1869
          %1879 = vmatmul.bf16.gmra.mxu0 %v1866
          %v1880 = vpop.f32.mrf.mxu0
          %v1881 = vadd.f32 %v1188, %v1880
          %v1882 = vpop.f32.mrf.mxu0
          %1883 = vdwg.mxu0
          %v1884 = vsel %vm1242, %v1881, -inf
          %1885 = vmax.xlane.f32.xlu0 %v1884
          %v1886 = vpop.xlane.xlu0 %1885
          %v1887 = vsub.f32 %v1881, %v1886
          %v1888 = vmul.f32 %v1887, 1.442695
          %v1889 = vpow.pop %v1888
          %v1890 = vsel %vm1242, %v1889, 0.0
          %1891 = vadd.xlane.f32.xlu0 %v1890
          %v1892 = vpop.xlane.xlu0 %1891
          %v1893 = vrcp.pop %v1892
          %v1894 = vmul.f32 %v1892, %v1893
          %v1895 = vsub.f32 1.0, %v1894
          %v1896 = vmul.f32 %v1893, %v1895
          %v1897 = vadd.f32 %v1893, %v1896
          %vm1898 = vweird.f32 %v1892
          %vm1899 = vweird.f32 %v1893
          %vm1900 = vmor %vm1898, %vm1899
          %v1901 = vsel %vm1900, %v1893, %v1897
          %v1902 = vand.u32 2147483647, %v1892
          %vm1903 = vcmp.eq.f32.partialorder %v1902, 8.507059e+37
          %v1904 = vand.u32 %v1892, 2147483648
          %v1905 = vor.u32 1.1754944e-38, %v1904
          %v1906 = vsel %vm1903, %v1905, %v1901
          %v1907 = vmul.f32 %v1889, %v1906
          %v1908 = vpack.c.bf16 %v1907, %v1907
          %1909 = vrot.lane.b32.xlu0 %v1793, 56
          %v1910 = vpop.permute.xlu0 %1909
          %v1912 = vsel %vm1242, %v1908, 0
          %v1915 = vsel %vm1292, %v1910, 0
          %1917 = vmatpush.bf16.msra.mxu0 0
          %1918 = vmatpush.bf16.msra.mxu0 0
          %1919 = vmatpush.bf16.msra.mxu0 0
          %1920 = vmatpush.bf16.msra.mxu0 0
          %1921 = vmatpush.bf16.msra.mxu0 0
          %1922 = vmatpush.bf16.msra.mxu0 0
          %1923 = vmatpush.bf16.msra.mxu0 0
          %1924 = vmatpush.bf16.msra.mxu0 %v1915
          %1925 = vmatmul.bf16.gmra.mxu0 %v1912
          %v1926 = vpop.f32.mrf.mxu0
          %v1927 = vadd.f32 0.0, %v1926
          %v1928 = vpop.f32.mrf.mxu0
          %1929 = vdwg.mxu0
          %1930 = vrot.lane.b32.xlu0 %v1793, 112
          %v1931 = vpop.permute.xlu0 %1930
          %1932 = vrot.lane.b32.xlu0 %v1793, 80
          %v1933 = vpop.permute.xlu0 %1932
          %v1935 = vsel %vm1242, %v1931, 0
          %v1938 = vsel %vm1242, %v1933, 0
          %1940 = vmatpush.bf16.xpose.msra.mxu0 0
          %1941 = vmatpush.bf16.xpose.msra.mxu0 0
          %1942 = vmatpush.bf16.xpose.msra.mxu0 0
          %1943 = vmatpush.bf16.xpose.msra.mxu0 0
          %1944 = vmatpush.bf16.xpose.msra.mxu0 0
          %1945 = vmatpush.bf16.xpose.msra.mxu0 0
          %1946 = vmatpush.bf16.xpose.msra.mxu0 0
          %1947 = vmatpush.bf16.xpose.msra.mxu0 %v1938
          %1948 = vmatmul.bf16.gmra.mxu0 %v1935
          %v1949 = vpop.f32.mrf.mxu0
          %v1950 = vadd.f32 %v1188, %v1949
          %v1951 = vpop.f32.mrf.mxu0
          %1952 = vdwg.mxu0
          %v1953 = vsel %vm1242, %v1950, -inf
          %1954 = vmax.xlane.f32.xlu0 %v1953
          %v1955 = vpop.xlane.xlu0 %1954
          %v1956 = vsub.f32 %v1950, %v1955
          %v1957 = vmul.f32 %v1956, 1.442695
          %v1958 = vpow.pop %v1957
          %v1959 = vsel %vm1242, %v1958, 0.0
          %1960 = vadd.xlane.f32.xlu0 %v1959
          %v1961 = vpop.xlane.xlu0 %1960
          %v1962 = vrcp.pop %v1961
          %v1963 = vmul.f32 %v1961, %v1962
          %v1964 = vsub.f32 1.0, %v1963
          %v1965 = vmul.f32 %v1962, %v1964
          %v1966 = vadd.f32 %v1962, %v1965
          %vm1967 = vweird.f32 %v1961
          %vm1968 = vweird.f32 %v1962
          %vm1969 = vmor %vm1967, %vm1968
          %v1970 = vsel %vm1969, %v1962, %v1966
          %v1971 = vand.u32 2147483647, %v1961
          %vm1972 = vcmp.eq.f32.partialorder %v1971, 8.507059e+37
          %v1973 = vand.u32 %v1961, 2147483648
          %v1974 = vor.u32 1.1754944e-38, %v1973
          %v1975 = vsel %vm1972, %v1974, %v1970
          %v1976 = vmul.f32 %v1958, %v1975
          %v1977 = vpack.c.bf16 %v1976, %v1976
          %1978 = vrot.lane.b32.xlu0 %v1793, 48
          %v1979 = vpop.permute.xlu0 %1978
          %v1981 = vsel %vm1242, %v1977, 0
          %v1984 = vsel %vm1292, %v1979, 0
          %1986 = vmatpush.bf16.msra.mxu0 0
          %1987 = vmatpush.bf16.msra.mxu0 0
          %1988 = vmatpush.bf16.msra.mxu0 0
          %1989 = vmatpush.bf16.msra.mxu0 0
          %1990 = vmatpush.bf16.msra.mxu0 0
          %1991 = vmatpush.bf16.msra.mxu0 0
          %1992 = vmatpush.bf16.msra.mxu0 0
          %1993 = vmatpush.bf16.msra.mxu0 %v1984
          %1994 = vmatmul.bf16.gmra.mxu0 %v1981
          %v1995 = vpop.f32.mrf.mxu0
          %v1996 = vadd.f32 0.0, %v1995
          %v1997 = vpop.f32.mrf.mxu0
          %1998 = vdwg.mxu0
          %1999 = vrot.lane.b32.xlu0 %v1793, 104
          %v2000 = vpop.permute.xlu0 %1999
          %2001 = vrot.lane.b32.xlu0 %v1793, 72
          %v2002 = vpop.permute.xlu0 %2001
          %v2004 = vsel %vm1242, %v2000, 0
          %v2007 = vsel %vm1242, %v2002, 0
          %2009 = vmatpush.bf16.xpose.msra.mxu0 0
          %2010 = vmatpush.bf16.xpose.msra.mxu0 0
          %2011 = vmatpush.bf16.xpose.msra.mxu0 0
          %2012 = vmatpush.bf16.xpose.msra.mxu0 0
          %2013 = vmatpush.bf16.xpose.msra.mxu0 0
          %2014 = vmatpush.bf16.xpose.msra.mxu0 0
          %2015 = vmatpush.bf16.xpose.msra.mxu0 0
          %2016 = vmatpush.bf16.xpose.msra.mxu0 %v2007
          %2017 = vmatmul.bf16.gmra.mxu0 %v2004
          %v2018 = vpop.f32.mrf.mxu0
          %v2019 = vadd.f32 %v1188, %v2018
          %v2020 = vpop.f32.mrf.mxu0
          %2021 = vdwg.mxu0
          %v2022 = vsel %vm1242, %v2019, -inf
          %2023 = vmax.xlane.f32.xlu0 %v2022
          %v2024 = vpop.xlane.xlu0 %2023
          %v2025 = vsub.f32 %v2019, %v2024
          %v2026 = vmul.f32 %v2025, 1.442695
          %v2027 = vpow.pop %v2026
          %v2028 = vsel %vm1242, %v2027, 0.0
          %2029 = vadd.xlane.f32.xlu0 %v2028
          %v2030 = vpop.xlane.xlu0 %2029
          %v2031 = vrcp.pop %v2030
          %v2032 = vmul.f32 %v2030, %v2031
          %v2033 = vsub.f32 1.0, %v2032
          %v2034 = vmul.f32 %v2031, %v2033
          %v2035 = vadd.f32 %v2031, %v2034
          %vm2036 = vweird.f32 %v2030
          %vm2037 = vweird.f32 %v2031
          %vm2038 = vmor %vm2036, %vm2037
          %v2039 = vsel %vm2038, %v2031, %v2035
          %v2040 = vand.u32 2147483647, %v2030
          %vm2041 = vcmp.eq.f32.partialorder %v2040, 8.507059e+37
          %v2042 = vand.u32 %v2030, 2147483648
          %v2043 = vor.u32 1.1754944e-38, %v2042
          %v2044 = vsel %vm2041, %v2043, %v2039
          %v2045 = vmul.f32 %v2027, %v2044
          %v2046 = vpack.c.bf16 %v2045, %v2045
          %2047 = vrot.lane.b32.xlu0 %v1793, 40
          %v2048 = vpop.permute.xlu0 %2047
          %v2050 = vsel %vm1242, %v2046, 0
          %v2053 = vsel %vm1292, %v2048, 0
          %2055 = vmatpush.bf16.msra.mxu0 0
          %2056 = vmatpush.bf16.msra.mxu0 0
          %2057 = vmatpush.bf16.msra.mxu0 0
          %2058 = vmatpush.bf16.msra.mxu0 0
          %2059 = vmatpush.bf16.msra.mxu0 0
          %2060 = vmatpush.bf16.msra.mxu0 0
          %2061 = vmatpush.bf16.msra.mxu0 0
          %2062 = vmatpush.bf16.msra.mxu0 %v2053
          %2063 = vmatmul.bf16.gmra.mxu0 %v2050
          %v2064 = vpop.f32.mrf.mxu0
          %v2065 = vadd.f32 0.0, %v2064
          %v2066 = vpop.f32.mrf.mxu0
          %2067 = vdwg.mxu0
          %2069 = vrot.lane.b32.xlu0 %v1927, 8
          %v2070 = vpop.permute.xlu0 %2069
          %2073 = vrot.lane.b32.xlu0 %v1996, 16
          %v2074 = vpop.permute.xlu0 %2073
          %2077 = vrot.lane.b32.xlu0 %v2065, 24
          %v2078 = vpop.permute.xlu0 %2077
          %v2080 = vsel %vm1242, %v1858, %v2070
          %v2081 = vsel %vm1529, %v2080, %v2074
          %v2082 = vsel %vm1531, %v2081, %v2078
          %v2083 = vpack.c.bf16 %v2082, %v2082
          %v2084 = vld [vmem:[%s43] sm:$0x1]
          %v2086 = vperm.slane %v2084, 0
          %v2092 = vunpack.c.l.b16 %v1786
          %v2093 = vunpack.c.l.b16 %v1787
          %v2094 = vunpack.c.l.b16 %v1788
          %v2095 = vunpack.c.l.b16 %v1789
          %v2096 = vpack.c.b16 %v2093, %v2092
          %v2097 = vpack.c.b16 %v2095, %v2094
          %v2101 = vsel %vm1215, %v2083, 0
          %2103 = vmatpush.bf16.msra.mxu0 0
          %2104 = vmatpush.bf16.msra.mxu0 0
          %2105 = vmatpush.bf16.msra.mxu0 0
          %2106 = vmatpush.bf16.msra.mxu0 0
          %2107 = vmatpush.bf16.msra.mxu0 0
          %2108 = vmatpush.bf16.msra.mxu0 0
          %2109 = vmatpush.bf16.msra.mxu0 %v2097
          %2110 = vmatpush.bf16.msra.mxu0 %v2096
          %2111 = vmatmul.bf16.gmra.mxu0 %v2101
          %v2112 = vpop.f32.mrf.mxu0
          %v2113 = vadd.f32 %v2086, %v2112
          %v2114 = vpop.f32.mrf.mxu0
          %2115 = vdwg.mxu0
          %v2116 = vadd.f32 %v1747, %v2113
          %v2117 = vsel %vm1215, %v2116, 0.0
          %2118 = vadd.xlane.f32.xlu0 %v2117
          %v2119 = vpop.xlane.xlu0 %2118
          %v2120 = vmul.f32 %v2119, %v1576
          %v2121 = vsub.f32 %v2116, %v2120
          %v2122 = vmul.f32 %v2121, %v2121
          %v2123 = vsel %vm1215, %v2122, 0.0
          %2124 = vadd.xlane.f32.xlu0 %v2123
          %v2125 = vpop.xlane.xlu0 %2124
          %v2126 = vmul.f32 %v2125, %v1576
          %v2127 = vadd.f32 %v2126, 1e-05
          %v2128 = vrsqrt.pop %v2127
          %v2129 = vmul.f32 %v2128, %v2127
          %v2130 = vmul.f32 %v2129, %v2128
          %v2131 = vmul.f32 0.5, %v2130
          %v2132 = vsub.f32 1.5, %v2131
          %v2133 = vmul.f32 %v2128, %v2132
          %vm2134 = vweird.f32 %v2127
          %vm2135 = vweird.f32 %v2128
          %vm2136 = vmor %vm2134, %vm2135
          %v2137 = vsel %vm2136, %v2128, %v2133
          %v2138 = vmul.f32 %v2121, %v2137
          %v2139 = vperm.slane %v1748, 0
          %v2140 = vmul.f32 %v2138, %v2139
          %v2141 = vperm.slane %v1748, 1
          %v2142 = vadd.f32 %v2140, %v2141
          %v2143 = vld [vmem:[%s45] sm:$0xf]
          %v2144 = vld [vmem:[%s45 + $0x4] sm:$0xf]
          %v2145 = vld [vmem:[%s45 + $0x8] sm:$0xf]
          %v2146 = vld [vmem:[%s45 + $0xc] sm:$0xf]
          %v2147 = vpack.c.bf16 %v2142, %v2142
          %v2148 = vld [vmem:[%s47] sm:$0x1]
          %v2150 = vperm.slane %v2148, 0
          %v2156 = vunpack.c.l.b16 %v2143
          %v2157 = vunpack.c.l.b16 %v2144
          %v2158 = vunpack.c.l.b16 %v2145
          %v2159 = vunpack.c.l.b16 %v2146
          %v2160 = vpack.c.b16 %v2157, %v2156
          %v2161 = vpack.c.b16 %v2159, %v2158
          %v2165 = vsel %vm1215, %v2147, 0
          %2167 = vmatpush.bf16.msra.mxu0 0
          %2168 = vmatpush.bf16.msra.mxu0 0
          %2169 = vmatpush.bf16.msra.mxu0 0
          %2170 = vmatpush.bf16.msra.mxu0 0
          %2171 = vmatpush.bf16.msra.mxu0 0
          %2172 = vmatpush.bf16.msra.mxu0 0
          %2173 = vmatpush.bf16.msra.mxu0 %v2161
          %2174 = vmatpush.bf16.msra.mxu0 %v2160
          %2175 = vmatmul.bf16.gmra.mxu0 %v2165
          %v2176 = vpop.f32.mrf.mxu0
          %v2177 = vadd.f32 %v2150, %v2176
          %v2178 = vpop.f32.mrf.mxu0
          %2179 = vdwg.mxu0
          %v2180 = vld [vmem:[%s49] sm:$0xf]
          %v2181 = vld [vmem:[%s49 + $0x4] sm:$0xf]
          %v2182 = vld [vmem:[%s49 + $0x8] sm:$0xf]
          %v2183 = vld [vmem:[%s49 + $0xc] sm:$0xf]
          %v2184 = vpack.c.bf16 %v1744, %v1744
          %v2185 = vld [vmem:[%s51] sm:$0x1]
          %v2187 = vperm.slane %v2185, 0
          %v2193 = vunpack.c.l.b16 %v2180
          %v2194 = vunpack.c.l.b16 %v2181
          %v2195 = vunpack.c.l.b16 %v2182
          %v2196 = vunpack.c.l.b16 %v2183
          %v2197 = vpack.c.b16 %v2194, %v2193
          %v2198 = vpack.c.b16 %v2196, %v2195
          %v2202 = vsel %vm1215, %v2184, 0
          %2204 = vmatpush.bf16.msra.mxu0 0
          %2205 = vmatpush.bf16.msra.mxu0 0
          %2206 = vmatpush.bf16.msra.mxu0 0
          %2207 = vmatpush.bf16.msra.mxu0 0
          %2208 = vmatpush.bf16.msra.mxu0 0
          %2209 = vmatpush.bf16.msra.mxu0 0
          %2210 = vmatpush.bf16.msra.mxu0 %v2198
          %2211 = vmatpush.bf16.msra.mxu0 %v2197
          %2212 = vmatmul.bf16.gmra.mxu0 %v2202
          %v2213 = vpop.f32.mrf.mxu0
          %v2214 = vadd.f32 %v2187, %v2213
          %v2215 = vpop.f32.mrf.mxu0
          %2216 = vdwg.mxu0
          %v2217 = vld [vmem:[%s53] sm:$0xf]
          %v2218 = vld [vmem:[%s53 + $0x4] sm:$0xf]
          %v2219 = vld [vmem:[%s53 + $0x8] sm:$0xf]
          %v2220 = vld [vmem:[%s53 + $0xc] sm:$0xf]
          %v2221 = vpack.c.bf16 %v2177, %v2177
          %v2222 = vpack.c.bf16 %v2214, %v2214
          %v2224 = vperm.slane %v1189, 0
          %v2227 = vsel %vm1242, %v2221, 0
          %v2230 = vsel %vm1242, %v2222, 0
          %2232 = vmatpush.bf16.xpose.msra.mxu0 0
          %2233 = vmatpush.bf16.xpose.msra.mxu0 0
          %2234 = vmatpush.bf16.xpose.msra.mxu0 0
          %2235 = vmatpush.bf16.xpose.msra.mxu0 0
          %2236 = vmatpush.bf16.xpose.msra.mxu0 0
          %2237 = vmatpush.bf16.xpose.msra.mxu0 0
          %2238 = vmatpush.bf16.xpose.msra.mxu0 0
          %2239 = vmatpush.bf16.xpose.msra.mxu0 %v2230
          %2240 = vmatmul.bf16.gmra.mxu0 %v2227
          %v2241 = vpop.f32.mrf.mxu0
          %v2242 = vadd.f32 %v2224, %v2241
          %v2243 = vpop.f32.mrf.mxu0
          %2244 = vdwg.mxu0
          %v2245 = vsel %vm1242, %v2242, -inf
          %2246 = vmax.xlane.f32.xlu0 %v2245
          %v2247 = vpop.xlane.xlu0 %2246
          %v2248 = vsub.f32 %v2242, %v2247
          %v2249 = vmul.f32 %v2248, 1.442695
          %v2250 = vpow.pop %v2249
          %v2251 = vsel %vm1242, %v2250, 0.0
          %2252 = vadd.xlane.f32.xlu0 %v2251
          %v2253 = vpop.xlane.xlu0 %2252
          %v2254 = vrcp.pop %v2253
          %v2255 = vmul.f32 %v2253, %v2254
          %v2256 = vsub.f32 1.0, %v2255
          %v2257 = vmul.f32 %v2254, %v2256
          %v2258 = vadd.f32 %v2254, %v2257
          %vm2259 = vweird.f32 %v2253
          %vm2260 = vweird.f32 %v2254
          %vm2261 = vmor %vm2259, %vm2260
          %v2262 = vsel %vm2261, %v2254, %v2258
          %v2263 = vand.u32 2147483647, %v2253
          %vm2264 = vcmp.eq.f32.partialorder %v2263, 8.507059e+37
          %v2265 = vand.u32 %v2253, 2147483648
          %v2266 = vor.u32 1.1754944e-38, %v2265
          %v2267 = vsel %vm2264, %v2266, %v2262
          %v2268 = vmul.f32 %v2250, %v2267
          %v2269 = vpack.c.bf16 %v2268, %v2268
          %v2271 = vunpack.c.l.b16 %v2222
          %v2272 = vpack.c.b16 %v2271, %v2271
          %2273 = vrot.lane.b32.xlu0 %v2272, 96
          %v2274 = vpop.permute.xlu0 %2273
          %v2276 = vsel %vm1242, %v2269, 0
          %v2279 = vsel %vm1292, %v2274, 0
          %2281 = vmatpush.bf16.msra.mxu0 0
          %2282 = vmatpush.bf16.msra.mxu0 0
          %2283 = vmatpush.bf16.msra.mxu0 0
          %2284 = vmatpush.bf16.msra.mxu0 0
          %2285 = vmatpush.bf16.msra.mxu0 0
          %2286 = vmatpush.bf16.msra.mxu0 0
          %2287 = vmatpush.bf16.msra.mxu0 0
          %2288 = vmatpush.bf16.msra.mxu0 %v2279
          %2289 = vmatmul.bf16.gmra.mxu0 %v2276
          %v2290 = vpop.f32.mrf.mxu0
          %v2291 = vadd.f32 0.0, %v2290
          %v2292 = vpop.f32.mrf.mxu0
          %2293 = vdwg.mxu0
          %v2295 = vunpack.c.l.b16 %v2221
          %v2296 = vpack.c.b16 %v2295, %v2295
          %2297 = vrot.lane.b32.xlu0 %v2296, 120
          %v2298 = vpop.permute.xlu0 %2297
          %2299 = vrot.lane.b32.xlu0 %v2272, 120
          %v2300 = vpop.permute.xlu0 %2299
          %v2302 = vsel %vm1242, %v2298, 0
          %v2305 = vsel %vm1242, %v2300, 0
          %2307 = vmatpush.bf16.xpose.msra.mxu0 0
          %2308 = vmatpush.bf16.xpose.msra.mxu0 0
          %2309 = vmatpush.bf16.xpose.msra.mxu0 0
          %2310 = vmatpush.bf16.xpose.msra.mxu0 0
          %2311 = vmatpush.bf16.xpose.msra.mxu0 0
          %2312 = vmatpush.bf16.xpose.msra.mxu0 0
          %2313 = vmatpush.bf16.xpose.msra.mxu0 0
          %2314 = vmatpush.bf16.xpose.msra.mxu0 %v2305
          %2315 = vmatmul.bf16.gmra.mxu0 %v2302
          %v2316 = vpop.f32.mrf.mxu0
          %v2317 = vadd.f32 %v2224, %v2316
          %v2318 = vpop.f32.mrf.mxu0
          %2319 = vdwg.mxu0
          %v2320 = vsel %vm1242, %v2317, -inf
          %2321 = vmax.xlane.f32.xlu0 %v2320
          %v2322 = vpop.xlane.xlu0 %2321
          %v2323 = vsub.f32 %v2317, %v2322
          %v2324 = vmul.f32 %v2323, 1.442695
          %v2325 = vpow.pop %v2324
          %v2326 = vsel %vm1242, %v2325, 0.0
          %2327 = vadd.xlane.f32.xlu0 %v2326
          %v2328 = vpop.xlane.xlu0 %2327
          %v2329 = vrcp.pop %v2328
          %v2330 = vmul.f32 %v2328, %v2329
          %v2331 = vsub.f32 1.0, %v2330
          %v2332 = vmul.f32 %v2329, %v2331
          %v2333 = vadd.f32 %v2329, %v2332
          %vm2334 = vweird.f32 %v2328
          %vm2335 = vweird.f32 %v2329
          %vm2336 = vmor %vm2334, %vm2335
          %v2337 = vsel %vm2336, %v2329, %v2333
          %v2338 = vand.u32 2147483647, %v2328
          %vm2339 = vcmp.eq.f32.partialorder %v2338, 8.507059e+37
          %v2340 = vand.u32 %v2328, 2147483648
          %v2341 = vor.u32 1.1754944e-38, %v2340
          %v2342 = vsel %vm2339, %v2341, %v2337
          %v2343 = vmul.f32 %v2325, %v2342
          %v2344 = vpack.c.bf16 %v2343, %v2343
          %2345 = vrot.lane.b32.xlu0 %v2272, 88
          %v2346 = vpop.permute.xlu0 %2345
          %v2348 = vsel %vm1242, %v2344, 0
          %v2351 = vsel %vm1292, %v2346, 0
          %2353 = vmatpush.bf16.msra.mxu0 0
          %2354 = vmatpush.bf16.msra.mxu0 0
          %2355 = vmatpush.bf16.msra.mxu0 0
          %2356 = vmatpush.bf16.msra.mxu0 0
          %2357 = vmatpush.bf16.msra.mxu0 0
          %2358 = vmatpush.bf16.msra.mxu0 0
          %2359 = vmatpush.bf16.msra.mxu0 0
          %2360 = vmatpush.bf16.msra.mxu0 %v2351
          %2361 = vmatmul.bf16.gmra.mxu0 %v2348
          %v2362 = vpop.f32.mrf.mxu0
          %v2363 = vadd.f32 0.0, %v2362
          %v2364 = vpop.f32.mrf.mxu0
          %2365 = vdwg.mxu0
          %2366 = vrot.lane.b32.xlu0 %v2296, 112
          %v2367 = vpop.permute.xlu0 %2366
          %2368 = vrot.lane.b32.xlu0 %v2272, 112
          %v2369 = vpop.permute.xlu0 %2368
          %v2371 = vsel %vm1242, %v2367, 0
          %v2374 = vsel %vm1242, %v2369, 0
          %2376 = vmatpush.bf16.xpose.msra.mxu0 0
          %2377 = vmatpush.bf16.xpose.msra.mxu0 0
          %2378 = vmatpush.bf16.xpose.msra.mxu0 0
          %2379 = vmatpush.bf16.xpose.msra.mxu0 0
          %2380 = vmatpush.bf16.xpose.msra.mxu0 0
          %2381 = vmatpush.bf16.xpose.msra.mxu0 0
          %2382 = vmatpush.bf16.xpose.msra.mxu0 0
          %2383 = vmatpush.bf16.xpose.msra.mxu0 %v2374
          %2384 = vmatmul.bf16.gmra.mxu0 %v2371
          %v2385 = vpop.f32.mrf.mxu0
          %v2386 = vadd.f32 %v2224, %v2385
          %v2387 = vpop.f32.mrf.mxu0
          %2388 = vdwg.mxu0
          %v2389 = vsel %vm1242, %v2386, -inf
          %2390 = vmax.xlane.f32.xlu0 %v2389
          %v2391 = vpop.xlane.xlu0 %2390
          %v2392 = vsub.f32 %v2386, %v2391
          %v2393 = vmul.f32 %v2392, 1.442695
          %v2394 = vpow.pop %v2393
          %v2395 = vsel %vm1242, %v2394, 0.0
          %2396 = vadd.xlane.f32.xlu0 %v2395
          %v2397 = vpop.xlane.xlu0 %2396
          %v2398 = vrcp.pop %v2397
          %v2399 = vmul.f32 %v2397, %v2398
          %v2400 = vsub.f32 1.0, %v2399
          %v2401 = vmul.f32 %v2398, %v2400
          %v2402 = vadd.f32 %v2398, %v2401
          %vm2403 = vweird.f32 %v2397
          %vm2404 = vweird.f32 %v2398
          %vm2405 = vmor %vm2403, %vm2404
          %v2406 = vsel %vm2405, %v2398, %v2402
          %v2407 = vand.u32 2147483647, %v2397
          %vm2408 = vcmp.eq.f32.partialorder %v2407, 8.507059e+37
          %v2409 = vand.u32 %v2397, 2147483648
          %v2410 = vor.u32 1.1754944e-38, %v2409
          %v2411 = vsel %vm2408, %v2410, %v2406
          %v2412 = vmul.f32 %v2394, %v2411
          %v2413 = vpack.c.bf16 %v2412, %v2412
          %2414 = vrot.lane.b32.xlu0 %v2272, 80
          %v2415 = vpop.permute.xlu0 %2414
          %v2417 = vsel %vm1242, %v2413, 0
          %v2420 = vsel %vm1292, %v2415, 0
          %2422 = vmatpush.bf16.msra.mxu0 0
          %2423 = vmatpush.bf16.msra.mxu0 0
          %2424 = vmatpush.bf16.msra.mxu0 0
          %2425 = vmatpush.bf16.msra.mxu0 0
          %2426 = vmatpush.bf16.msra.mxu0 0
          %2427 = vmatpush.bf16.msra.mxu0 0
          %2428 = vmatpush.bf16.msra.mxu0 0
          %2429 = vmatpush.bf16.msra.mxu0 %v2420
          %2430 = vmatmul.bf16.gmra.mxu0 %v2417
          %v2431 = vpop.f32.mrf.mxu0
          %v2432 = vadd.f32 0.0, %v2431
          %v2433 = vpop.f32.mrf.mxu0
          %2434 = vdwg.mxu0
          %2435 = vrot.lane.b32.xlu0 %v2296, 104
          %v2436 = vpop.permute.xlu0 %2435
          %2437 = vrot.lane.b32.xlu0 %v2272, 104
          %v2438 = vpop.permute.xlu0 %2437
          %v2440 = vsel %vm1242, %v2436, 0
          %v2443 = vsel %vm1242, %v2438, 0
          %2445 = vmatpush.bf16.xpose.msra.mxu0 0
          %2446 = vmatpush.bf16.xpose.msra.mxu0 0
          %2447 = vmatpush.bf16.xpose.msra.mxu0 0
          %2448 = vmatpush.bf16.xpose.msra.mxu0 0
          %2449 = vmatpush.bf16.xpose.msra.mxu0 0
          %2450 = vmatpush.bf16.xpose.msra.mxu0 0
          %2451 = vmatpush.bf16.xpose.msra.mxu0 0
          %2452 = vmatpush.bf16.xpose.msra.mxu0 %v2443
          %2453 = vmatmul.bf16.gmra.mxu0 %v2440
          %v2454 = vpop.f32.mrf.mxu0
          %v2455 = vadd.f32 %v2224, %v2454
          %v2456 = vpop.f32.mrf.mxu0
          %2457 = vdwg.mxu0
          %v2458 = vsel %vm1242, %v2455, -inf
          %2459 = vmax.xlane.f32.xlu0 %v2458
          %v2460 = vpop.xlane.xlu0 %2459
          %v2461 = vsub.f32 %v2455, %v2460
          %v2462 = vmul.f32 %v2461, 1.442695
          %v2463 = vpow.pop %v2462
          %v2464 = vsel %vm1242, %v2463, 0.0
          %2465 = vadd.xlane.f32.xlu0 %v2464
          %v2466 = vpop.xlane.xlu0 %2465
          %v2467 = vrcp.pop %v2466
          %v2468 = vmul.f32 %v2466, %v2467
          %v2469 = vsub.f32 1.0, %v2468
          %v2470 = vmul.f32 %v2467, %v2469
          %v2471 = vadd.f32 %v2467, %v2470
          %vm2472 = vweird.f32 %v2466
          %vm2473 = vweird.f32 %v2467
          %vm2474 = vmor %vm2472, %vm2473
          %v2475 = vsel %vm2474, %v2467, %v2471
          %v2476 = vand.u32 2147483647, %v2466
          %vm2477 = vcmp.eq.f32.partialorder %v2476, 8.507059e+37
          %v2478 = vand.u32 %v2466, 2147483648
          %v2479 = vor.u32 1.1754944e-38, %v2478
          %v2480 = vsel %vm2477, %v2479, %v2475
          %v2481 = vmul.f32 %v2463, %v2480
          %v2482 = vpack.c.bf16 %v2481, %v2481
          %2483 = vrot.lane.b32.xlu0 %v2272, 72
          %v2484 = vpop.permute.xlu0 %2483
          %v2486 = vsel %vm1242, %v2482, 0
          %v2489 = vsel %vm1292, %v2484, 0
          %2491 = vmatpush.bf16.msra.mxu0 0
          %2492 = vmatpush.bf16.msra.mxu0 0
          %2493 = vmatpush.bf16.msra.mxu0 0
          %2494 = vmatpush.bf16.msra.mxu0 0
          %2495 = vmatpush.bf16.msra.mxu0 0
          %2496 = vmatpush.bf16.msra.mxu0 0
          %2497 = vmatpush.bf16.msra.mxu0 0
          %2498 = vmatpush.bf16.msra.mxu0 %v2489
          %2499 = vmatmul.bf16.gmra.mxu0 %v2486
          %v2500 = vpop.f32.mrf.mxu0
          %v2501 = vadd.f32 0.0, %v2500
          %v2502 = vpop.f32.mrf.mxu0
          %2503 = vdwg.mxu0
          %2505 = vrot.lane.b32.xlu0 %v2363, 8
          %v2506 = vpop.permute.xlu0 %2505
          %2509 = vrot.lane.b32.xlu0 %v2432, 16
          %v2510 = vpop.permute.xlu0 %2509
          %2513 = vrot.lane.b32.xlu0 %v2501, 24
          %v2514 = vpop.permute.xlu0 %2513
          %v2516 = vsel %vm1242, %v2291, %v2506
          %v2517 = vsel %vm1529, %v2516, %v2510
          %v2518 = vsel %vm1531, %v2517, %v2514
          %v2519 = vpack.c.bf16 %v2518, %v2518
          %v2520 = vld [vmem:[%s55] sm:$0x1]
          %v2522 = vperm.slane %v2520, 0
          %v2528 = vunpack.c.l.b16 %v2217
          %v2529 = vunpack.c.l.b16 %v2218
          %v2530 = vunpack.c.l.b16 %v2219
          %v2531 = vunpack.c.l.b16 %v2220
          %v2532 = vpack.c.b16 %v2529, %v2528
          %v2533 = vpack.c.b16 %v2531, %v2530
          %v2537 = vsel %vm1215, %v2519, 0
          %2539 = vmatpush.bf16.msra.mxu0 0
          %2540 = vmatpush.bf16.msra.mxu0 0
          %2541 = vmatpush.bf16.msra.mxu0 0
          %2542 = vmatpush.bf16.msra.mxu0 0
          %2543 = vmatpush.bf16.msra.mxu0 0
          %2544 = vmatpush.bf16.msra.mxu0 0
          %2545 = vmatpush.bf16.msra.mxu0 %v2533
          %2546 = vmatpush.bf16.msra.mxu0 %v2532
          %2547 = vmatmul.bf16.gmra.mxu0 %v2537
          %v2548 = vpop.f32.mrf.mxu0
          %v2549 = vadd.f32 %v2522, %v2548
          %v2550 = vpop.f32.mrf.mxu0
          %2551 = vdwg.mxu0
          %v2552 = vadd.f32 %v2142, %v2549
          %v2553 = vsel %vm1215, %v2552, 0.0
          %2554 = vadd.xlane.f32.xlu0 %v2553
          %v2555 = vpop.xlane.xlu0 %2554
          %v2556 = vmul.f32 %v2555, %v1576
          %v2557 = vsub.f32 %v2552, %v2556
          %v2558 = vmul.f32 %v2557, %v2557
          %v2559 = vsel %vm1215, %v2558, 0.0
          %2560 = vadd.xlane.f32.xlu0 %v2559
          %v2561 = vpop.xlane.xlu0 %2560
          %v2562 = vmul.f32 %v2561, %v1576
          %v2563 = vadd.f32 %v2562, 1e-05
          %v2564 = vrsqrt.pop %v2563
          %v2565 = vmul.f32 %v2564, %v2563
          %v2566 = vmul.f32 %v2565, %v2564
          %v2567 = vmul.f32 0.5, %v2566
          %v2568 = vsub.f32 1.5, %v2567
          %v2569 = vmul.f32 %v2564, %v2568
          %vm2570 = vweird.f32 %v2563
          %vm2571 = vweird.f32 %v2564
          %vm2572 = vmor %vm2570, %vm2571
          %v2573 = vsel %vm2572, %v2564, %v2569
          %v2574 = vmul.f32 %v2557, %v2573
          %v2575 = vperm.slane %v1748, 2
          %v2576 = vmul.f32 %v2574, %v2575
          %v2577 = vperm.slane %v1748, 3
          %v2578 = vadd.f32 %v2576, %v2577
          %v2579 = vld [vmem:[%s57] sm:$0xf]
          %v2580 = vld [vmem:[%s57 + $0x4] sm:$0xf]
          %v2581 = vld [vmem:[%s57 + $0x8] sm:$0xf]
          %v2582 = vld [vmem:[%s57 + $0xc] sm:$0xf]
          %v2583 = vpack.c.bf16 %v2578, %v2578
          %v2584 = vld [vmem:[%s59] sm:$0x1]
          %v2586 = vperm.slane %v2584, 0
          %v2592 = vunpack.c.l.b16 %v2579
          %v2593 = vunpack.c.l.b16 %v2580
          %v2594 = vunpack.c.l.b16 %v2581
          %v2595 = vunpack.c.l.b16 %v2582
          %v2596 = vpack.c.b16 %v2593, %v2592
          %v2597 = vpack.c.b16 %v2595, %v2594
          %v2601 = vsel %vm1215, %v2583, 0
          %2603 = vmatpush.bf16.msra.mxu0 0
          %2604 = vmatpush.bf16.msra.mxu0 0
          %2605 = vmatpush.bf16.msra.mxu0 0
          %2606 = vmatpush.bf16.msra.mxu0 0
          %2607 = vmatpush.bf16.msra.mxu0 0
          %2608 = vmatpush.bf16.msra.mxu0 0
          %2609 = vmatpush.bf16.msra.mxu0 %v2597
          %2610 = vmatpush.bf16.msra.mxu0 %v2596
          %2611 = vmatmul.bf16.gmra.mxu0 %v2601
          %v2612 = vpop.f32.mrf.mxu0
          %v2613 = vadd.f32 %v2586, %v2612
          %v2614 = vpop.f32.mrf.mxu0
          %2615 = vdwg.mxu0
          %v2616 = vmax.f32 %v2613, 0.0
          %v2617 = vld [vmem:[%s61] sm:$0xf]
          %v2618 = vld [vmem:[%s61 + $0x4] sm:$0xf]
          %v2619 = vld [vmem:[%s61 + $0x8] sm:$0xf]
          %v2620 = vld [vmem:[%s61 + $0xc] sm:$0xf]
          %v2621 = vld [vmem:[%s61 + $0x10] sm:$0xf]
          %v2622 = vld [vmem:[%s61 + $0x14] sm:$0xf]
          %v2623 = vld [vmem:[%s61 + $0x18] sm:$0xf]
          %v2624 = vld [vmem:[%s61 + $0x1c] sm:$0xf]
          %v2625 = vpack.c.bf16 %v2616, %v2616
          %v2626 = vld [vmem:[%s63] sm:$0x1]
          %v2628 = vperm.slane %v2626, 0
          %v2638 = vunpack.c.l.b16 %v2617
          %v2639 = vunpack.c.l.b16 %v2618
          %v2640 = vunpack.c.l.b16 %v2619
          %v2641 = vunpack.c.l.b16 %v2620
          %v2642 = vunpack.c.l.b16 %v2621
          %v2643 = vunpack.c.l.b16 %v2622
          %v2644 = vunpack.c.l.b16 %v2623
          %v2645 = vunpack.c.l.b16 %v2624
          %v2646 = vpack.c.b16 %v2639, %v2638
          %v2647 = vpack.c.b16 %v2641, %v2640
          %v2648 = vpack.c.b16 %v2643, %v2642
          %v2649 = vpack.c.b16 %v2645, %v2644
          %v2655 = vsel %vm1675, %v2625, 0
          %2657 = vmatpush.bf16.msra.mxu0 0
          %2658 = vmatpush.bf16.msra.mxu0 0
          %2659 = vmatpush.bf16.msra.mxu0 0
          %2660 = vmatpush.bf16.msra.mxu0 0
          %2661 = vmatpush.bf16.msra.mxu0 %v2649
          %2662 = vmatpush.bf16.msra.mxu0 %v2648
          %2663 = vmatpush.bf16.msra.mxu0 %v2647
          %2664 = vmatpush.bf16.msra.mxu0 %v2646
          %2665 = vmatmul.bf16.gmra.mxu0 %v2655
          %v2666 = vpop.f32.mrf.mxu0
          %v2667 = vadd.f32 %v2628, %v2666
          %v2668 = vpop.f32.mrf.mxu0
          %2669 = vdwg.mxu0
          %v2670 = vadd.f32 %v2578, %v2667
          %v2671 = vsel %vm1215, %v2670, 0.0
          %2672 = vadd.xlane.f32.xlu0 %v2671
          %v2673 = vpop.xlane.xlu0 %2672
          %v2674 = vmul.f32 %v2673, %v1576
          %v2675 = vsub.f32 %v2670, %v2674
          %v2676 = vmul.f32 %v2675, %v2675
          %v2677 = vsel %vm1215, %v2676, 0.0
          %2678 = vadd.xlane.f32.xlu0 %v2677
          %v2679 = vpop.xlane.xlu0 %2678
          %v2680 = vmul.f32 %v2679, %v1576
          %v2681 = vadd.f32 %v2680, 1e-05
          %v2682 = vrsqrt.pop %v2681
          %v2683 = vmul.f32 %v2682, %v2681
          %v2684 = vmul.f32 %v2683, %v2682
          %v2685 = vmul.f32 0.5, %v2684
          %v2686 = vsub.f32 1.5, %v2685
          %v2687 = vmul.f32 %v2682, %v2686
          %vm2688 = vweird.f32 %v2681
          %vm2689 = vweird.f32 %v2682
          %vm2690 = vmor %vm2688, %vm2689
          %v2691 = vsel %vm2690, %v2682, %v2687
          %v2692 = vmul.f32 %v2675, %v2691
          %v2693 = vperm.slane %v1748, 4
          %v2694 = vmul.f32 %v2692, %v2693
          %v2695 = vperm.slane %v1748, 5
          %v2696 = vadd.f32 %v2694, %v2695
          %v2697 = vsel %vm1215, %v2696, 0.0
          %2698 = vadd.xlane.f32.xlu0 %v2697
          %v2699 = vpop.xlane.xlu0 %2698
          %v2700 = vmul.f32 %v2699, %v1576
          %v2701 = vsub.f32 %v2696, %v2700
          %v2702 = vmul.f32 %v2701, %v2701
          %v2703 = vsel %vm1215, %v2702, 0.0
          %2704 = vadd.xlane.f32.xlu0 %v2703
          %v2705 = vpop.xlane.xlu0 %2704
          %v2706 = vmul.f32 %v2705, %v1576
          %v2707 = vadd.f32 %v2706, 1e-05
          %v2708 = vrsqrt.pop %v2707
          %v2709 = vmul.f32 %v2708, %v2707
          %v2710 = vmul.f32 %v2709, %v2708
          %v2711 = vmul.f32 0.5, %v2710
          %v2712 = vsub.f32 1.5, %v2711
          %v2713 = vmul.f32 %v2708, %v2712
          %vm2714 = vweird.f32 %v2707
          %vm2715 = vweird.f32 %v2708
          %vm2716 = vmor %vm2714, %vm2715
          %v2717 = vsel %vm2716, %v2708, %v2713
          %v2718 = vmul.f32 %v2701, %v2717
          %v2719 = vperm.slane %v1748, 6
          %v2720 = vmul.f32 %v2718, %v2719
          %v2721 = vperm.slane %v1748, 7
          %v2722 = vadd.f32 %v2720, %v2721
          %2723 = vst.msk [vmem:[#allocation2] sm:$0xff] %vm1215, %v2722
        $region164: #{translator_forward.1} parent=159 // pred_fallthru
          _
        %v2724 = vld [vmem:[#allocation2] sm:$0xff]
        %v2725 = vld [vmem:[%s1166] sm:$0xf]
        %v2726 = vld [vmem:[%s1166 + $0x4] sm:$0xf]
        %v2727 = vld [vmem:[%s1166 + $0x8] sm:$0xf]
        %v2728 = vld [vmem:[%s1166 + $0xc] sm:$0xf]
        %v2729 = vpack.c.bf16 %v2724, %v2724
        %v2730 = vld [vmem:[%s1169] sm:$0x1]
        %v2732 = vperm.slane %v2730, 0
        %v2738 = vunpack.c.l.b16 %v2725
        %v2739 = vunpack.c.l.b16 %v2726
        %v2740 = vunpack.c.l.b16 %v2727
        %v2741 = vunpack.c.l.b16 %v2728
        %v2742 = vpack.c.b16 %v2739, %v2738
        %v2743 = vpack.c.b16 %v2741, %v2740
        %vm2746 = vcmask 261120
        %v2748 = vsel %vm2746, %v2729, 0
        %2750 = vmatpush.bf16.msra.mxu0 0
        %2751 = vmatpush.bf16.msra.mxu0 0
        %2752 = vmatpush.bf16.msra.mxu0 0
        %2753 = vmatpush.bf16.msra.mxu0 0
        %2754 = vmatpush.bf16.msra.mxu0 0
        %2755 = vmatpush.bf16.msra.mxu0 0
        %2756 = vmatpush.bf16.msra.mxu0 %v2743
        %2757 = vmatpush.bf16.msra.mxu0 %v2742
        %2758 = vmatmul.bf16.gmra.mxu0 %v2748
        %v2759 = vpop.f32.mrf.mxu0
        %v2760 = vadd.f32 %v2732, %v2759
        %v2761 = vpop.f32.mrf.mxu0
        %2762 = vdwg.mxu0
        %2763 = vst [vmem:[%s1145] sm:$0xff] %v2760
        %s2764 = sand.u32 %s877, 1
        %s2765 = scalar_lea.sflag [#allocation4], %s2764
        %s2766 = sand.u32 %s877, 1
        %s2767 = smul.addr %s2766, 8
        %s2768 = scalar_lea.vmem [#allocation3], %s2767
        // Predicated region
        $region165: #{translator_forward.1} parent=159 // pred_check
          %p2769 = pneg %p887
        $region166: #{translator_forward.1} parent=159 // pred_check_branch
          %2771 = sbr.rel (%p2769) target = $region168
        $region167: #{translator_forward.1} parent=159 // pred_region
          %2773 = vsyncadd %s2765, 0
          %s2774 = sadd.s32 %s90, %s89
          %s2775 = smul.addr %s2774, 8
          %s2776 = scalar_lea.hbm %s71, %s2775
          %s2778 = sshll.u32 %s2768, 4
          %s2779 = int_to_ptr.vmem [resolvable:$true] %s2778
          %s2780 = sshll.u32 %s2776, 4
          %s2781 = int_to_ptr.hbm [resolvable:$true] %s2780
          %2783 = dma.vmem_to_hbm [thread:$0]  %s2779, 128, %s2781, %s2765
        $region168: #{translator_forward.1} parent=159 // pred_fallthru
          _
      $region160: #{translator_forward.1} parent=5 // pred_fallthru
        _
      %p2784 = scmp.le.s32.totalorder 2, %s80
      // Predicated region
      $region169: #{translator_forward.1} parent=5 // pred_check
        %p2785 = pneg %p2784
      $region170: #{translator_forward.1} parent=5 // pred_check_branch
        %2787 = sbr.rel (%p2785) target = $region172
      $region171: #{translator_forward.1} parent=5 // pred_region
        %s2788 = ssub.s32 %s80, 2
        // Predicated region
        $region173: #{translator_forward.1} parent=171 // pred_check
          %p2789 = pneg %p893
        $region174: #{translator_forward.1} parent=171 // pred_check_branch
          %2791 = sbr.rel (%p2789) target = $region176
        $region175: #{translator_forward.1} parent=171 // pred_region
          %s2792 = sand.u32 %s878, 1
          %s2793 = scalar_lea.sflag [#allocation4], %s2792
          %s2794 = sand.u32 %s878, 1
          %s2795 = smul.addr %s2794, 8
          %s2796 = scalar_lea.vmem [#allocation3], %s2795
          %2798 = dma.done %s2793, 128
        $region176: #{translator_forward.1} parent=171 // pred_fallthru
          _
      $region172: #{translator_forward.1} parent=5 // pred_fallthru
        _
    $region6: #{translator_forward.1} parent=1 // loop_footer
      %s84 = sadd.s32 1, %s80
    $region7: #{translator_forward.1} parent=1 // loop_footer_branch
      %79 = sbr.rel target = $region3
    $region8: #{translator_forward.1} parent=1 // loop_exit
      _
    %2799 = vsyncpa [#allocation4], 1
    %s2800 = scalar_lea.sflag [#allocation4], 1
    %2801 = vsyncpa %s2800, 1

</llo_original>
